<compile_context>
chip_gen: v7x
topology: tpu7x:2x2x1
jax: 0.10.0
libtpu: 0.0.40
codegen_flags: <defaults>
</compile_context>

<pallas_src>
import jax
import jax.numpy as jnp
from jax.experimental import pallas as pl
from jax.experimental.pallas import tpu as pltpu


# ----------------------------- fused Pallas kernel -------------------------- #

def _make_fused_kernel(num_layers, seq_len, batch, hidden):
    """Builds the fused (LSTM stack + Linear head) kernel body."""
    T, B, H = seq_len, batch, hidden

    def kernel(*refs):
        # refs layout: x, (w_ih_t, w_hh_t, bias) * num_layers, w_out_t, b_out, out
        x_ref = refs[0]
        layer_refs = [tuple(refs[1 + 3 * l: 4 + 3 * l]) for l in range(num_layers)]
        w_out_ref = refs[1 + 3 * num_layers]
        b_out_ref = refs[2 + 3 * num_layers]
        out_ref = refs[3 + 3 * num_layers]

        # Per-timestep inputs of the current layer as a list of (B, feat) values.
        xs = [x_ref[t] for t in range(T)]

        h = None
        for wih_ref, whh_ref, b_ref in layer_refs:
            w_ih = wih_ref[...]                                # (in, 4H)
            w_hh = whh_ref[...]                                # (H, 4H)
            bias = jnp.broadcast_to(b_ref[...], (B, 4 * H))    # hoisted broadcast

            # Hoisted input projection: off the serial critical path.
            gates_in = [
                jnp.dot(x_t, w_ih, preferred_element_type=jnp.float32) + bias
                for x_t in xs
            ]

            h = jnp.zeros((B, H), jnp.float32)
            c = jnp.zeros((B, H), jnp.float32)
            outs = []
            # Recurrence: fully unrolled; per step only h @ W_hh + gate math.
            for t in range(T):
                g = gates_in[t] + jnp.dot(
                    h, w_hh, preferred_element_type=jnp.float32
                )                                              # (B, 4H)
                i_g = jax.nn.sigmoid(g[:, 0 * H:1 * H])
                f_g = jax.nn.sigmoid(g[:, 1 * H:2 * H])
                g_g = jnp.tanh(g[:, 2 * H:3 * H])
                o_g = jax.nn.sigmoid(g[:, 3 * H:4 * H])
                c = f_g * c + i_g * g_g
                h = o_g * jnp.tanh(c)
                outs.append(h)
            xs = outs  # next layer consumes the hidden sequence; stays on-chip

        # Linear head on the last timestep of the top layer only.
        out_ref[...] = (
            jnp.dot(h, w_out_ref[...], preferred_element_type=jnp.float32)
            + b_out_ref[...]
        )

    return kernel


# ------------------------------ JAX wrappers -------------------------------- #

_VMEM = pl.BlockSpec(memory_space=pltpu.MemorySpace.VMEM)


@jax.jit
def model_forward(params, x_bsi):
    """x_bsi: (batch, seq, input_size) -> (batch, output_size)."""
    B, T, _ = x_bsi.shape
    lstm_params = params["lstm"]
    num_layers = len(lstm_params)
    H = lstm_params[0]["w_hh_t"].shape[0]
    O = params["out"]["w_t"].shape[1]

    x_tbi = jnp.transpose(x_bsi, (1, 0, 2)).astype(jnp.float32)  # (T, B, I)

    args = [x_tbi]
    for lp in lstm_params:
        args.extend([lp["w_ih_t"], lp["w_hh_t"], lp["bias"]])
    args.extend([params["out"]["w_t"], params["out"]["bias"]])

    kernel = _make_fused_kernel(num_layers, T, B, H)
    return pl.pallas_call(
        kernel,
        out_shape=jax.ShapeDtypeStruct((B, O), jnp.float32),
        in_specs=[_VMEM] * len(args),
        out_specs=_VMEM,
    )(*args)


def init_params(key, input_size, lstm_size, lstm_layers, output_size):
    """Deterministic PyTorch-style uniform(-1/sqrt(H), 1/sqrt(H)) init."""
    params = {"lstm": [], "out": {}}
    k = 1.0 / jnp.sqrt(jnp.float32(lstm_size))
    for layer in range(lstm_layers):
        in_dim = input_size if layer == 0 else lstm_size
        key, k1, k2, k3, k4 = jax.random.split(key, 5)
        w_ih = jax.random.uniform(k1, (4 * lstm_size, in_dim), jnp.float32, -k, k)
        w_hh = jax.random.uniform(k2, (4 * lstm_size, lstm_size), jnp.float32, -k, k)
        b_ih = jax.random.uniform(k3, (4 * lstm_size,), jnp.float32, -k, k)
        b_hh = jax.random.uniform(k4, (4 * lstm_size,), jnp.float32, -k, k)
        params["lstm"].append(
            {
                "w_ih_t": w_ih.T,                       # (in, 4H)
                "w_hh_t": w_hh.T,                       # (H, 4H)
                "bias": (b_ih + b_hh)[None, :],         # (1, 4H)
            }
        )
    key, k1, k2 = jax.random.split(key, 3)
    w_out = jax.random.uniform(k1, (output_size, lstm_size), jnp.float32, -k, k)
    b_out = jax.random.uniform(k2, (output_size,), jnp.float32, -k, k)
    params["out"]["w_t"] = w_out.T                      # (H, O)
    params["out"]["bias"] = b_out[None, :]              # (1, O)
    return params


# ---------------------------------- main ------------------------------------ #

if __name__ == "__main__":
    batch = 2
    seq = 8
    input_size = 16
    lstm_size = 32
    lstm_layers = 2
    output_size = 10

    key = jax.random.PRNGKey(0)
    key, pkey, xkey = jax.random.split(key, 3)
    params = init_params(pkey, input_size, lstm_size, lstm_layers, output_size)
    x = jax.random.normal(xkey, (batch, seq, input_size), jnp.float32)

    out = model_forward(params, x)
    jax.block_until_ready(out)
    assert out.shape == (batch, output_size)
    print("KERNEL_OK")
</pallas_src>

<mosaic_0001>
module attributes {stable_mosaic.version = 11 : i64} {
  func.func @kernel(%arg0: memref<8x2x16xf32, #tpu.memory_space<vmem>>, %arg1: memref<16x128xf32, #tpu.memory_space<vmem>>, %arg2: memref<32x128xf32, #tpu.memory_space<vmem>>, %arg3: memref<1x128xf32, #tpu.memory_space<vmem>>, %arg4: memref<32x128xf32, #tpu.memory_space<vmem>>, %arg5: memref<32x128xf32, #tpu.memory_space<vmem>>, %arg6: memref<1x128xf32, #tpu.memory_space<vmem>>, %arg7: memref<32x10xf32, #tpu.memory_space<vmem>>, %arg8: memref<1x10xf32, #tpu.memory_space<vmem>>, %arg9: memref<2x10xf32, #tpu.memory_space<vmem>>) attributes {dimension_semantics = [], scalar_prefetch = 0 : i64, scratch_operands = 0 : i64, tpu.core_type = #tpu.core_type<tc>} {
    %c0 = arith.constant 0 : index
    %c0_0 = arith.constant 0 : index
    %c0_1 = arith.constant 0 : index
    %0 = vector.load %arg0[%c0, %c0_0, %c0_1] : memref<8x2x16xf32, #tpu.memory_space<vmem>>, vector<1x2x16xf32>
    %1 = vector.shape_cast %0 : vector<1x2x16xf32> to vector<2x16xf32>
    %c1 = arith.constant 1 : index
    %c0_2 = arith.constant 0 : index
    %c0_3 = arith.constant 0 : index
    %2 = vector.load %arg0[%c1, %c0_2, %c0_3] : memref<8x2x16xf32, #tpu.memory_space<vmem>>, vector<1x2x16xf32>
    %3 = vector.shape_cast %2 : vector<1x2x16xf32> to vector<2x16xf32>
    %c2 = arith.constant 2 : index
    %c0_4 = arith.constant 0 : index
    %c0_5 = arith.constant 0 : index
    %4 = vector.load %arg0[%c2, %c0_4, %c0_5] : memref<8x2x16xf32, #tpu.memory_space<vmem>>, vector<1x2x16xf32>
    %5 = vector.shape_cast %4 : vector<1x2x16xf32> to vector<2x16xf32>
    %c3 = arith.constant 3 : index
    %c0_6 = arith.constant 0 : index
    %c0_7 = arith.constant 0 : index
    %6 = vector.load %arg0[%c3, %c0_6, %c0_7] : memref<8x2x16xf32, #tpu.memory_space<vmem>>, vector<1x2x16xf32>
    %7 = vector.shape_cast %6 : vector<1x2x16xf32> to vector<2x16xf32>
    %c4 = arith.constant 4 : index
    %c0_8 = arith.constant 0 : index
    %c0_9 = arith.constant 0 : index
    %8 = vector.load %arg0[%c4, %c0_8, %c0_9] : memref<8x2x16xf32, #tpu.memory_space<vmem>>, vector<1x2x16xf32>
    %9 = vector.shape_cast %8 : vector<1x2x16xf32> to vector<2x16xf32>
    %c5 = arith.constant 5 : index
    %c0_10 = arith.constant 0 : index
    %c0_11 = arith.constant 0 : index
    %10 = vector.load %arg0[%c5, %c0_10, %c0_11] : memref<8x2x16xf32, #tpu.memory_space<vmem>>, vector<1x2x16xf32>
    %11 = vector.shape_cast %10 : vector<1x2x16xf32> to vector<2x16xf32>
    %c6 = arith.constant 6 : index
    %c0_12 = arith.constant 0 : index
    %c0_13 = arith.constant 0 : index
    %12 = vector.load %arg0[%c6, %c0_12, %c0_13] : memref<8x2x16xf32, #tpu.memory_space<vmem>>, vector<1x2x16xf32>
    %13 = vector.shape_cast %12 : vector<1x2x16xf32> to vector<2x16xf32>
    %c7 = arith.constant 7 : index
    %c0_14 = arith.constant 0 : index
    %c0_15 = arith.constant 0 : index
    %14 = vector.load %arg0[%c7, %c0_14, %c0_15] : memref<8x2x16xf32, #tpu.memory_space<vmem>>, vector<1x2x16xf32>
    %15 = vector.shape_cast %14 : vector<1x2x16xf32> to vector<2x16xf32>
    %c0_16 = arith.constant 0 : index
    %c0_17 = arith.constant 0 : index
    %16 = vector.load %arg1[%c0_16, %c0_17] : memref<16x128xf32, #tpu.memory_space<vmem>>, vector<16x128xf32>
    %c0_18 = arith.constant 0 : index
    %c0_19 = arith.constant 0 : index
    %17 = vector.load %arg2[%c0_18, %c0_19] : memref<32x128xf32, #tpu.memory_space<vmem>>, vector<32x128xf32>
    %c0_20 = arith.constant 0 : index
    %c0_21 = arith.constant 0 : index
    %18 = vector.load %arg3[%c0_20, %c0_21] : memref<1x128xf32, #tpu.memory_space<vmem>>, vector<1x128xf32>
    %19 = vector.shape_cast %18 : vector<1x128xf32> to vector<1x128xf32>
    %20 = vector.broadcast %19 : vector<1x128xf32> to vector<2x128xf32>
    %cst = arith.constant dense<0.000000e+00> : vector<2x128xf32>
    %21 = tpu.matmul %1, %16, %cst {dimension_numbers = #tpu.dot_dimension_numbers<[1], [0], [0], [1], [0, 0, 1, 1], [], []>} : vector<2x16xf32>, vector<16x128xf32>, vector<2x128xf32> -> vector<2x128xf32>
    %22 = arith.addf %21, %20 : vector<2x128xf32>
    %cst_22 = arith.constant dense<0.000000e+00> : vector<2x128xf32>
    %23 = tpu.matmul %3, %16, %cst_22 {dimension_numbers = #tpu.dot_dimension_numbers<[1], [0], [0], [1], [0, 0, 1, 1], [], []>} : vector<2x16xf32>, vector<16x128xf32>, vector<2x128xf32> -> vector<2x128xf32>
    %24 = arith.addf %23, %20 : vector<2x128xf32>
    %cst_23 = arith.constant dense<0.000000e+00> : vector<2x128xf32>
    %25 = tpu.matmul %5, %16, %cst_23 {dimension_numbers = #tpu.dot_dimension_numbers<[1], [0], [0], [1], [0, 0, 1, 1], [], []>} : vector<2x16xf32>, vector<16x128xf32>, vector<2x128xf32> -> vector<2x128xf32>
    %26 = arith.addf %25, %20 : vector<2x128xf32>
    %cst_24 = arith.constant dense<0.000000e+00> : vector<2x128xf32>
    %27 = tpu.matmul %7, %16, %cst_24 {dimension_numbers = #tpu.dot_dimension_numbers<[1], [0], [0], [1], [0, 0, 1, 1], [], []>} : vector<2x16xf32>, vector<16x128xf32>, vector<2x128xf32> -> vector<2x128xf32>
    %28 = arith.addf %27, %20 : vector<2x128xf32>
    %cst_25 = arith.constant dense<0.000000e+00> : vector<2x128xf32>
    %29 = tpu.matmul %9, %16, %cst_25 {dimension_numbers = #tpu.dot_dimension_numbers<[1], [0], [0], [1], [0, 0, 1, 1], [], []>} : vector<2x16xf32>, vector<16x128xf32>, vector<2x128xf32> -> vector<2x128xf32>
    %30 = arith.addf %29, %20 : vector<2x128xf32>
    %cst_26 = arith.constant dense<0.000000e+00> : vector<2x128xf32>
    %31 = tpu.matmul %11, %16, %cst_26 {dimension_numbers = #tpu.dot_dimension_numbers<[1], [0], [0], [1], [0, 0, 1, 1], [], []>} : vector<2x16xf32>, vector<16x128xf32>, vector<2x128xf32> -> vector<2x128xf32>
    %32 = arith.addf %31, %20 : vector<2x128xf32>
    %cst_27 = arith.constant dense<0.000000e+00> : vector<2x128xf32>
    %33 = tpu.matmul %13, %16, %cst_27 {dimension_numbers = #tpu.dot_dimension_numbers<[1], [0], [0], [1], [0, 0, 1, 1], [], []>} : vector<2x16xf32>, vector<16x128xf32>, vector<2x128xf32> -> vector<2x128xf32>
    %34 = arith.addf %33, %20 : vector<2x128xf32>
    %cst_28 = arith.constant dense<0.000000e+00> : vector<2x128xf32>
    %35 = tpu.matmul %15, %16, %cst_28 {dimension_numbers = #tpu.dot_dimension_numbers<[1], [0], [0], [1], [0, 0, 1, 1], [], []>} : vector<2x16xf32>, vector<16x128xf32>, vector<2x128xf32> -> vector<2x128xf32>
    %36 = arith.addf %35, %20 : vector<2x128xf32>
    %cst_29 = arith.constant 0.000000e+00 : f32
    %37 = vector.broadcast %cst_29 : f32 to vector<2x32xf32>
    %cst_30 = arith.constant 0.000000e+00 : f32
    %38 = vector.broadcast %cst_30 : f32 to vector<2x32xf32>
    %cst_31 = arith.constant dense<0.000000e+00> : vector<2x128xf32>
    %39 = tpu.matmul %37, %17, %cst_31 {dimension_numbers = #tpu.dot_dimension_numbers<[1], [0], [0], [1], [0, 0, 1, 1], [], []>} : vector<2x32xf32>, vector<32x128xf32>, vector<2x128xf32> -> vector<2x128xf32>
    %40 = arith.addf %22, %39 : vector<2x128xf32>
    %41 = vector.extract_strided_slice %40 {offsets = [0, 0], sizes = [2, 32], strides = [1, 1]} : vector<2x128xf32> to vector<2x32xf32>
    %42 = arith.negf %41 : vector<2x32xf32>
    %43 = math.exp %42 : vector<2x32xf32>
    %cst_32 = arith.constant 1.000000e+00 : f32
    %44 = vector.broadcast %cst_32 : f32 to vector<2x32xf32>
    %45 = arith.addf %44, %43 : vector<2x32xf32>
    %46 = arith.divf %44, %45 : vector<2x32xf32>
    %47 = vector.extract_strided_slice %40 {offsets = [0, 32], sizes = [2, 32], strides = [1, 1]} : vector<2x128xf32> to vector<2x32xf32>
    %48 = arith.negf %47 : vector<2x32xf32>
    %49 = math.exp %48 : vector<2x32xf32>
    %cst_33 = arith.constant 1.000000e+00 : f32
    %50 = vector.broadcast %cst_33 : f32 to vector<2x32xf32>
    %51 = arith.addf %50, %49 : vector<2x32xf32>
    %52 = arith.divf %50, %51 : vector<2x32xf32>
    %53 = vector.extract_strided_slice %40 {offsets = [0, 64], sizes = [2, 32], strides = [1, 1]} : vector<2x128xf32> to vector<2x32xf32>
    %54 = math.tanh %53 : vector<2x32xf32>
    %55 = vector.extract_strided_slice %40 {offsets = [0, 96], sizes = [2, 32], strides = [1, 1]} : vector<2x128xf32> to vector<2x32xf32>
    %56 = arith.negf %55 : vector<2x32xf32>
    %57 = math.exp %56 : vector<2x32xf32>
    %cst_34 = arith.constant 1.000000e+00 : f32
    %58 = vector.broadcast %cst_34 : f32 to vector<2x32xf32>
    %59 = arith.addf %58, %57 : vector<2x32xf32>
    %60 = arith.divf %58, %59 : vector<2x32xf32>
    %61 = arith.mulf %52, %38 : vector<2x32xf32>
    %62 = arith.mulf %46, %54 : vector<2x32xf32>
    %63 = arith.addf %61, %62 : vector<2x32xf32>
    %64 = math.tanh %63 : vector<2x32xf32>
    %65 = arith.mulf %60, %64 : vector<2x32xf32>
    %cst_35 = arith.constant dense<0.000000e+00> : vector<2x128xf32>
    %66 = tpu.matmul %65, %17, %cst_35 {dimension_numbers = #tpu.dot_dimension_numbers<[1], [0], [0], [1], [0, 0, 1, 1], [], []>} : vector<2x32xf32>, vector<32x128xf32>, vector<2x128xf32> -> vector<2x128xf32>
    %67 = arith.addf %24, %66 : vector<2x128xf32>
    %68 = vector.extract_strided_slice %67 {offsets = [0, 0], sizes = [2, 32], strides = [1, 1]} : vector<2x128xf32> to vector<2x32xf32>
    %69 = arith.negf %68 : vector<2x32xf32>
    %70 = math.exp %69 : vector<2x32xf32>
    %cst_36 = arith.constant 1.000000e+00 : f32
    %71 = vector.broadcast %cst_36 : f32 to vector<2x32xf32>
    %72 = arith.addf %71, %70 : vector<2x32xf32>
    %73 = arith.divf %71, %72 : vector<2x32xf32>
    %74 = vector.extract_strided_slice %67 {offsets = [0, 32], sizes = [2, 32], strides = [1, 1]} : vector<2x128xf32> to vector<2x32xf32>
    %75 = arith.negf %74 : vector<2x32xf32>
    %76 = math.exp %75 : vector<2x32xf32>
    %cst_37 = arith.constant 1.000000e+00 : f32
    %77 = vector.broadcast %cst_37 : f32 to vector<2x32xf32>
    %78 = arith.addf %77, %76 : vector<2x32xf32>
    %79 = arith.divf %77, %78 : vector<2x32xf32>
    %80 = vector.extract_strided_slice %67 {offsets = [0, 64], sizes = [2, 32], strides = [1, 1]} : vector<2x128xf32> to vector<2x32xf32>
    %81 = math.tanh %80 : vector<2x32xf32>
    %82 = vector.extract_strided_slice %67 {offsets = [0, 96], sizes = [2, 32], strides = [1, 1]} : vector<2x128xf32> to vector<2x32xf32>
    %83 = arith.negf %82 : vector<2x32xf32>
    %84 = math.exp %83 : vector<2x32xf32>
    %cst_38 = arith.constant 1.000000e+00 : f32
    %85 = vector.broadcast %cst_38 : f32 to vector<2x32xf32>
    %86 = arith.addf %85, %84 : vector<2x32xf32>
    %87 = arith.divf %85, %86 : vector<2x32xf32>
    %88 = arith.mulf %79, %63 : vector<2x32xf32>
    %89 = arith.mulf %73, %81 : vector<2x32xf32>
    %90 = arith.addf %88, %89 : vector<2x32xf32>
    %91 = math.tanh %90 : vector<2x32xf32>
    %92 = arith.mulf %87, %91 : vector<2x32xf32>
    %cst_39 = arith.constant dense<0.000000e+00> : vector<2x128xf32>
    %93 = tpu.matmul %92, %17, %cst_39 {dimension_numbers = #tpu.dot_dimension_numbers<[1], [0], [0], [1], [0, 0, 1, 1], [], []>} : vector<2x32xf32>, vector<32x128xf32>, vector<2x128xf32> -> vector<2x128xf32>
    %94 = arith.addf %26, %93 : vector<2x128xf32>
    %95 = vector.extract_strided_slice %94 {offsets = [0, 0], sizes = [2, 32], strides = [1, 1]} : vector<2x128xf32> to vector<2x32xf32>
    %96 = arith.negf %95 : vector<2x32xf32>
    %97 = math.exp %96 : vector<2x32xf32>
    %cst_40 = arith.constant 1.000000e+00 : f32
    %98 = vector.broadcast %cst_40 : f32 to vector<2x32xf32>
    %99 = arith.addf %98, %97 : vector<2x32xf32>
    %100 = arith.divf %98, %99 : vector<2x32xf32>
    %101 = vector.extract_strided_slice %94 {offsets = [0, 32], sizes = [2, 32], strides = [1, 1]} : vector<2x128xf32> to vector<2x32xf32>
    %102 = arith.negf %101 : vector<2x32xf32>
    %103 = math.exp %102 : vector<2x32xf32>
    %cst_41 = arith.constant 1.000000e+00 : f32
    %104 = vector.broadcast %cst_41 : f32 to vector<2x32xf32>
    %105 = arith.addf %104, %103 : vector<2x32xf32>
    %106 = arith.divf %104, %105 : vector<2x32xf32>
    %107 = vector.extract_strided_slice %94 {offsets = [0, 64], sizes = [2, 32], strides = [1, 1]} : vector<2x128xf32> to vector<2x32xf32>
    %108 = math.tanh %107 : vector<2x32xf32>
    %109 = vector.extract_strided_slice %94 {offsets = [0, 96], sizes = [2, 32], strides = [1, 1]} : vector<2x128xf32> to vector<2x32xf32>
    %110 = arith.negf %109 : vector<2x32xf32>
    %111 = math.exp %110 : vector<2x32xf32>
    %cst_42 = arith.constant 1.000000e+00 : f32
    %112 = vector.broadcast %cst_42 : f32 to vector<2x32xf32>
    %113 = arith.addf %112, %111 : vector<2x32xf32>
    %114 = arith.divf %112, %113 : vector<2x32xf32>
    %115 = arith.mulf %106, %90 : vector<2x32xf32>
    %116 = arith.mulf %100, %108 : vector<2x32xf32>
    %117 = arith.addf %115, %116 : vector<2x32xf32>
    %118 = math.tanh %117 : vector<2x32xf32>
    %119 = arith.mulf %114, %118 : vector<2x32xf32>
    %cst_43 = arith.constant dense<0.000000e+00> : vector<2x128xf32>
    %120 = tpu.matmul %119, %17, %cst_43 {dimension_numbers = #tpu.dot_dimension_numbers<[1], [0], [0], [1], [0, 0, 1, 1], [], []>} : vector<2x32xf32>, vector<32x128xf32>, vector<2x128xf32> -> vector<2x128xf32>
    %121 = arith.addf %28, %120 : vector<2x128xf32>
    %122 = vector.extract_strided_slice %121 {offsets = [0, 0], sizes = [2, 32], strides = [1, 1]} : vector<2x128xf32> to vector<2x32xf32>
    %123 = arith.negf %122 : vector<2x32xf32>
    %124 = math.exp %123 : vector<2x32xf32>
    %cst_44 = arith.constant 1.000000e+00 : f32
    %125 = vector.broadcast %cst_44 : f32 to vector<2x32xf32>
    %126 = arith.addf %125, %124 : vector<2x32xf32>
    %127 = arith.divf %125, %126 : vector<2x32xf32>
    %128 = vector.extract_strided_slice %121 {offsets = [0, 32], sizes = [2, 32], strides = [1, 1]} : vector<2x128xf32> to vector<2x32xf32>
    %129 = arith.negf %128 : vector<2x32xf32>
    %130 = math.exp %129 : vector<2x32xf32>
    %cst_45 = arith.constant 1.000000e+00 : f32
    %131 = vector.broadcast %cst_45 : f32 to vector<2x32xf32>
    %132 = arith.addf %131, %130 : vector<2x32xf32>
    %133 = arith.divf %131, %132 : vector<2x32xf32>
    %134 = vector.extract_strided_slice %121 {offsets = [0, 64], sizes = [2, 32], strides = [1, 1]} : vector<2x128xf32> to vector<2x32xf32>
    %135 = math.tanh %134 : vector<2x32xf32>
    %136 = vector.extract_strided_slice %121 {offsets = [0, 96], sizes = [2, 32], strides = [1, 1]} : vector<2x128xf32> to vector<2x32xf32>
    %137 = arith.negf %136 : vector<2x32xf32>
    %138 = math.exp %137 : vector<2x32xf32>
    %cst_46 = arith.constant 1.000000e+00 : f32
    %139 = vector.broadcast %cst_46 : f32 to vector<2x32xf32>
    %140 = arith.addf %139, %138 : vector<2x32xf32>
    %141 = arith.divf %139, %140 : vector<2x32xf32>
    %142 = arith.mulf %133, %117 : vector<2x32xf32>
    %143 = arith.mulf %127, %135 : vector<2x32xf32>
    %144 = arith.addf %142, %143 : vector<2x32xf32>
    %145 = math.tanh %144 : vector<2x32xf32>
    %146 = arith.mulf %141, %145 : vector<2x32xf32>
    %cst_47 = arith.constant dense<0.000000e+00> : vector<2x128xf32>
    %147 = tpu.matmul %146, %17, %cst_47 {dimension_numbers = #tpu.dot_dimension_numbers<[1], [0], [0], [1], [0, 0, 1, 1], [], []>} : vector<2x32xf32>, vector<32x128xf32>, vector<2x128xf32> -> vector<2x128xf32>
    %148 = arith.addf %30, %147 : vector<2x128xf32>
    %149 = vector.extract_strided_slice %148 {offsets = [0, 0], sizes = [2, 32], strides = [1, 1]} : vector<2x128xf32> to vector<2x32xf32>
    %150 = arith.negf %149 : vector<2x32xf32>
    %151 = math.exp %150 : vector<2x32xf32>
    %cst_48 = arith.constant 1.000000e+00 : f32
    %152 = vector.broadcast %cst_48 : f32 to vector<2x32xf32>
    %153 = arith.addf %152, %151 : vector<2x32xf32>
    %154 = arith.divf %152, %153 : vector<2x32xf32>
    %155 = vector.extract_strided_slice %148 {offsets = [0, 32], sizes = [2, 32], strides = [1, 1]} : vector<2x128xf32> to vector<2x32xf32>
    %156 = arith.negf %155 : vector<2x32xf32>
    %157 = math.exp %156 : vector<2x32xf32>
    %cst_49 = arith.constant 1.000000e+00 : f32
    %158 = vector.broadcast %cst_49 : f32 to vector<2x32xf32>
    %159 = arith.addf %158, %157 : vector<2x32xf32>
    %160 = arith.divf %158, %159 : vector<2x32xf32>
    %161 = vector.extract_strided_slice %148 {offsets = [0, 64], sizes = [2, 32], strides = [1, 1]} : vector<2x128xf32> to vector<2x32xf32>
    %162 = math.tanh %161 : vector<2x32xf32>
    %163 = vector.extract_strided_slice %148 {offsets = [0, 96], sizes = [2, 32], strides = [1, 1]} : vector<2x128xf32> to vector<2x32xf32>
    %164 = arith.negf %163 : vector<2x32xf32>
    %165 = math.exp %164 : vector<2x32xf32>
    %cst_50 = arith.constant 1.000000e+00 : f32
    %166 = vector.broadcast %cst_50 : f32 to vector<2x32xf32>
    %167 = arith.addf %166, %165 : vector<2x32xf32>
    %168 = arith.divf %166, %167 : vector<2x32xf32>
    %169 = arith.mulf %160, %144 : vector<2x32xf32>
    %170 = arith.mulf %154, %162 : vector<2x32xf32>
    %171 = arith.addf %169, %170 : vector<2x32xf32>
    %172 = math.tanh %171 : vector<2x32xf32>
    %173 = arith.mulf %168, %172 : vector<2x32xf32>
    %cst_51 = arith.constant dense<0.000000e+00> : vector<2x128xf32>
    %174 = tpu.matmul %173, %17, %cst_51 {dimension_numbers = #tpu.dot_dimension_numbers<[1], [0], [0], [1], [0, 0, 1, 1], [], []>} : vector<2x32xf32>, vector<32x128xf32>, vector<2x128xf32> -> vector<2x128xf32>
    %175 = arith.addf %32, %174 : vector<2x128xf32>
    %176 = vector.extract_strided_slice %175 {offsets = [0, 0], sizes = [2, 32], strides = [1, 1]} : vector<2x128xf32> to vector<2x32xf32>
    %177 = arith.negf %176 : vector<2x32xf32>
    %178 = math.exp %177 : vector<2x32xf32>
    %cst_52 = arith.constant 1.000000e+00 : f32
    %179 = vector.broadcast %cst_52 : f32 to vector<2x32xf32>
    %180 = arith.addf %179, %178 : vector<2x32xf32>
    %181 = arith.divf %179, %180 : vector<2x32xf32>
    %182 = vector.extract_strided_slice %175 {offsets = [0, 32], sizes = [2, 32], strides = [1, 1]} : vector<2x128xf32> to vector<2x32xf32>
    %183 = arith.negf %182 : vector<2x32xf32>
    %184 = math.exp %183 : vector<2x32xf32>
    %cst_53 = arith.constant 1.000000e+00 : f32
    %185 = vector.broadcast %cst_53 : f32 to vector<2x32xf32>
    %186 = arith.addf %185, %184 : vector<2x32xf32>
    %187 = arith.divf %185, %186 : vector<2x32xf32>
    %188 = vector.extract_strided_slice %175 {offsets = [0, 64], sizes = [2, 32], strides = [1, 1]} : vector<2x128xf32> to vector<2x32xf32>
    %189 = math.tanh %188 : vector<2x32xf32>
    %190 = vector.extract_strided_slice %175 {offsets = [0, 96], sizes = [2, 32], strides = [1, 1]} : vector<2x128xf32> to vector<2x32xf32>
    %191 = arith.negf %190 : vector<2x32xf32>
    %192 = math.exp %191 : vector<2x32xf32>
    %cst_54 = arith.constant 1.000000e+00 : f32
    %193 = vector.broadcast %cst_54 : f32 to vector<2x32xf32>
    %194 = arith.addf %193, %192 : vector<2x32xf32>
    %195 = arith.divf %193, %194 : vector<2x32xf32>
    %196 = arith.mulf %187, %171 : vector<2x32xf32>
    %197 = arith.mulf %181, %189 : vector<2x32xf32>
    %198 = arith.addf %196, %197 : vector<2x32xf32>
    %199 = math.tanh %198 : vector<2x32xf32>
    %200 = arith.mulf %195, %199 : vector<2x32xf32>
    %cst_55 = arith.constant dense<0.000000e+00> : vector<2x128xf32>
    %201 = tpu.matmul %200, %17, %cst_55 {dimension_numbers = #tpu.dot_dimension_numbers<[1], [0], [0], [1], [0, 0, 1, 1], [], []>} : vector<2x32xf32>, vector<32x128xf32>, vector<2x128xf32> -> vector<2x128xf32>
    %202 = arith.addf %34, %201 : vector<2x128xf32>
    %203 = vector.extract_strided_slice %202 {offsets = [0, 0], sizes = [2, 32], strides = [1, 1]} : vector<2x128xf32> to vector<2x32xf32>
    %204 = arith.negf %203 : vector<2x32xf32>
    %205 = math.exp %204 : vector<2x32xf32>
    %cst_56 = arith.constant 1.000000e+00 : f32
    %206 = vector.broadcast %cst_56 : f32 to vector<2x32xf32>
    %207 = arith.addf %206, %205 : vector<2x32xf32>
    %208 = arith.divf %206, %207 : vector<2x32xf32>
    %209 = vector.extract_strided_slice %202 {offsets = [0, 32], sizes = [2, 32], strides = [1, 1]} : vector<2x128xf32> to vector<2x32xf32>
    %210 = arith.negf %209 : vector<2x32xf32>
    %211 = math.exp %210 : vector<2x32xf32>
    %cst_57 = arith.constant 1.000000e+00 : f32
    %212 = vector.broadcast %cst_57 : f32 to vector<2x32xf32>
    %213 = arith.addf %212, %211 : vector<2x32xf32>
    %214 = arith.divf %212, %213 : vector<2x32xf32>
    %215 = vector.extract_strided_slice %202 {offsets = [0, 64], sizes = [2, 32], strides = [1, 1]} : vector<2x128xf32> to vector<2x32xf32>
    %216 = math.tanh %215 : vector<2x32xf32>
    %217 = vector.extract_strided_slice %202 {offsets = [0, 96], sizes = [2, 32], strides = [1, 1]} : vector<2x128xf32> to vector<2x32xf32>
    %218 = arith.negf %217 : vector<2x32xf32>
    %219 = math.exp %218 : vector<2x32xf32>
    %cst_58 = arith.constant 1.000000e+00 : f32
    %220 = vector.broadcast %cst_58 : f32 to vector<2x32xf32>
    %221 = arith.addf %220, %219 : vector<2x32xf32>
    %222 = arith.divf %220, %221 : vector<2x32xf32>
    %223 = arith.mulf %214, %198 : vector<2x32xf32>
    %224 = arith.mulf %208, %216 : vector<2x32xf32>
    %225 = arith.addf %223, %224 : vector<2x32xf32>
    %226 = math.tanh %225 : vector<2x32xf32>
    %227 = arith.mulf %222, %226 : vector<2x32xf32>
    %cst_59 = arith.constant dense<0.000000e+00> : vector<2x128xf32>
    %228 = tpu.matmul %227, %17, %cst_59 {dimension_numbers = #tpu.dot_dimension_numbers<[1], [0], [0], [1], [0, 0, 1, 1], [], []>} : vector<2x32xf32>, vector<32x128xf32>, vector<2x128xf32> -> vector<2x128xf32>
    %229 = arith.addf %36, %228 : vector<2x128xf32>
    %230 = vector.extract_strided_slice %229 {offsets = [0, 0], sizes = [2, 32], strides = [1, 1]} : vector<2x128xf32> to vector<2x32xf32>
    %231 = arith.negf %230 : vector<2x32xf32>
    %232 = math.exp %231 : vector<2x32xf32>
    %cst_60 = arith.constant 1.000000e+00 : f32
    %233 = vector.broadcast %cst_60 : f32 to vector<2x32xf32>
    %234 = arith.addf %233, %232 : vector<2x32xf32>
    %235 = arith.divf %233, %234 : vector<2x32xf32>
    %236 = vector.extract_strided_slice %229 {offsets = [0, 32], sizes = [2, 32], strides = [1, 1]} : vector<2x128xf32> to vector<2x32xf32>
    %237 = arith.negf %236 : vector<2x32xf32>
    %238 = math.exp %237 : vector<2x32xf32>
    %cst_61 = arith.constant 1.000000e+00 : f32
    %239 = vector.broadcast %cst_61 : f32 to vector<2x32xf32>
    %240 = arith.addf %239, %238 : vector<2x32xf32>
    %241 = arith.divf %239, %240 : vector<2x32xf32>
    %242 = vector.extract_strided_slice %229 {offsets = [0, 64], sizes = [2, 32], strides = [1, 1]} : vector<2x128xf32> to vector<2x32xf32>
    %243 = math.tanh %242 : vector<2x32xf32>
    %244 = vector.extract_strided_slice %229 {offsets = [0, 96], sizes = [2, 32], strides = [1, 1]} : vector<2x128xf32> to vector<2x32xf32>
    %245 = arith.negf %244 : vector<2x32xf32>
    %246 = math.exp %245 : vector<2x32xf32>
    %cst_62 = arith.constant 1.000000e+00 : f32
    %247 = vector.broadcast %cst_62 : f32 to vector<2x32xf32>
    %248 = arith.addf %247, %246 : vector<2x32xf32>
    %249 = arith.divf %247, %248 : vector<2x32xf32>
    %250 = arith.mulf %241, %225 : vector<2x32xf32>
    %251 = arith.mulf %235, %243 : vector<2x32xf32>
    %252 = arith.addf %250, %251 : vector<2x32xf32>
    %253 = math.tanh %252 : vector<2x32xf32>
    %254 = arith.mulf %249, %253 : vector<2x32xf32>
    %c0_63 = arith.constant 0 : index
    %c0_64 = arith.constant 0 : index
    %255 = vector.load %arg4[%c0_63, %c0_64] : memref<32x128xf32, #tpu.memory_space<vmem>>, vector<32x128xf32>
    %c0_65 = arith.constant 0 : index
    %c0_66 = arith.constant 0 : index
    %256 = vector.load %arg5[%c0_65, %c0_66] : memref<32x128xf32, #tpu.memory_space<vmem>>, vector<32x128xf32>
    %c0_67 = arith.constant 0 : index
    %c0_68 = arith.constant 0 : index
    %257 = vector.load %arg6[%c0_67, %c0_68] : memref<1x128xf32, #tpu.memory_space<vmem>>, vector<1x128xf32>
    %258 = vector.shape_cast %257 : vector<1x128xf32> to vector<1x128xf32>
    %259 = vector.broadcast %258 : vector<1x128xf32> to vector<2x128xf32>
    %cst_69 = arith.constant dense<0.000000e+00> : vector<2x128xf32>
    %260 = tpu.matmul %65, %255, %cst_69 {dimension_numbers = #tpu.dot_dimension_numbers<[1], [0], [0], [1], [0, 0, 1, 1], [], []>} : vector<2x32xf32>, vector<32x128xf32>, vector<2x128xf32> -> vector<2x128xf32>
    %261 = arith.addf %260, %259 : vector<2x128xf32>
    %cst_70 = arith.constant dense<0.000000e+00> : vector<2x128xf32>
    %262 = tpu.matmul %92, %255, %cst_70 {dimension_numbers = #tpu.dot_dimension_numbers<[1], [0], [0], [1], [0, 0, 1, 1], [], []>} : vector<2x32xf32>, vector<32x128xf32>, vector<2x128xf32> -> vector<2x128xf32>
    %263 = arith.addf %262, %259 : vector<2x128xf32>
    %cst_71 = arith.constant dense<0.000000e+00> : vector<2x128xf32>
    %264 = tpu.matmul %119, %255, %cst_71 {dimension_numbers = #tpu.dot_dimension_numbers<[1], [0], [0], [1], [0, 0, 1, 1], [], []>} : vector<2x32xf32>, vector<32x128xf32>, vector<2x128xf32> -> vector<2x128xf32>
    %265 = arith.addf %264, %259 : vector<2x128xf32>
    %cst_72 = arith.constant dense<0.000000e+00> : vector<2x128xf32>
    %266 = tpu.matmul %146, %255, %cst_72 {dimension_numbers = #tpu.dot_dimension_numbers<[1], [0], [0], [1], [0, 0, 1, 1], [], []>} : vector<2x32xf32>, vector<32x128xf32>, vector<2x128xf32> -> vector<2x128xf32>
    %267 = arith.addf %266, %259 : vector<2x128xf32>
    %cst_73 = arith.constant dense<0.000000e+00> : vector<2x128xf32>
    %268 = tpu.matmul %173, %255, %cst_73 {dimension_numbers = #tpu.dot_dimension_numbers<[1], [0], [0], [1], [0, 0, 1, 1], [], []>} : vector<2x32xf32>, vector<32x128xf32>, vector<2x128xf32> -> vector<2x128xf32>
    %269 = arith.addf %268, %259 : vector<2x128xf32>
    %cst_74 = arith.constant dense<0.000000e+00> : vector<2x128xf32>
    %270 = tpu.matmul %200, %255, %cst_74 {dimension_numbers = #tpu.dot_dimension_numbers<[1], [0], [0], [1], [0, 0, 1, 1], [], []>} : vector<2x32xf32>, vector<32x128xf32>, vector<2x128xf32> -> vector<2x128xf32>
    %271 = arith.addf %270, %259 : vector<2x128xf32>
    %cst_75 = arith.constant dense<0.000000e+00> : vector<2x128xf32>
    %272 = tpu.matmul %227, %255, %cst_75 {dimension_numbers = #tpu.dot_dimension_numbers<[1], [0], [0], [1], [0, 0, 1, 1], [], []>} : vector<2x32xf32>, vector<32x128xf32>, vector<2x128xf32> -> vector<2x128xf32>
    %273 = arith.addf %272, %259 : vector<2x128xf32>
    %cst_76 = arith.constant dense<0.000000e+00> : vector<2x128xf32>
    %274 = tpu.matmul %254, %255, %cst_76 {dimension_numbers = #tpu.dot_dimension_numbers<[1], [0], [0], [1], [0, 0, 1, 1], [], []>} : vector<2x32xf32>, vector<32x128xf32>, vector<2x128xf32> -> vector<2x128xf32>
    %275 = arith.addf %274, %259 : vector<2x128xf32>
    %cst_77 = arith.constant 0.000000e+00 : f32
    %276 = vector.broadcast %cst_77 : f32 to vector<2x32xf32>
    %cst_78 = arith.constant 0.000000e+00 : f32
    %277 = vector.broadcast %cst_78 : f32 to vector<2x32xf32>
    %cst_79 = arith.constant dense<0.000000e+00> : vector<2x128xf32>
    %278 = tpu.matmul %276, %256, %cst_79 {dimension_numbers = #tpu.dot_dimension_numbers<[1], [0], [0], [1], [0, 0, 1, 1], [], []>} : vector<2x32xf32>, vector<32x128xf32>, vector<2x128xf32> -> vector<2x128xf32>
    %279 = arith.addf %261, %278 : vector<2x128xf32>
    %280 = vector.extract_strided_slice %279 {offsets = [0, 0], sizes = [2, 32], strides = [1, 1]} : vector<2x128xf32> to vector<2x32xf32>
    %281 = arith.negf %280 : vector<2x32xf32>
    %282 = math.exp %281 : vector<2x32xf32>
    %cst_80 = arith.constant 1.000000e+00 : f32
    %283 = vector.broadcast %cst_80 : f32 to vector<2x32xf32>
    %284 = arith.addf %283, %282 : vector<2x32xf32>
    %285 = arith.divf %283, %284 : vector<2x32xf32>
    %286 = vector.extract_strided_slice %279 {offsets = [0, 32], sizes = [2, 32], strides = [1, 1]} : vector<2x128xf32> to vector<2x32xf32>
    %287 = arith.negf %286 : vector<2x32xf32>
    %288 = math.exp %287 : vector<2x32xf32>
    %cst_81 = arith.constant 1.000000e+00 : f32
    %289 = vector.broadcast %cst_81 : f32 to vector<2x32xf32>
    %290 = arith.addf %289, %288 : vector<2x32xf32>
    %291 = arith.divf %289, %290 : vector<2x32xf32>
    %292 = vector.extract_strided_slice %279 {offsets = [0, 64], sizes = [2, 32], strides = [1, 1]} : vector<2x128xf32> to vector<2x32xf32>
    %293 = math.tanh %292 : vector<2x32xf32>
    %294 = vector.extract_strided_slice %279 {offsets = [0, 96], sizes = [2, 32], strides = [1, 1]} : vector<2x128xf32> to vector<2x32xf32>
    %295 = arith.negf %294 : vector<2x32xf32>
    %296 = math.exp %295 : vector<2x32xf32>
    %cst_82 = arith.constant 1.000000e+00 : f32
    %297 = vector.broadcast %cst_82 : f32 to vector<2x32xf32>
    %298 = arith.addf %297, %296 : vector<2x32xf32>
    %299 = arith.divf %297, %298 : vector<2x32xf32>
    %300 = arith.mulf %291, %277 : vector<2x32xf32>
    %301 = arith.mulf %285, %293 : vector<2x32xf32>
    %302 = arith.addf %300, %301 : vector<2x32xf32>
    %303 = math.tanh %302 : vector<2x32xf32>
    %304 = arith.mulf %299, %303 : vector<2x32xf32>
    %cst_83 = arith.constant dense<0.000000e+00> : vector<2x128xf32>
    %305 = tpu.matmul %304, %256, %cst_83 {dimension_numbers = #tpu.dot_dimension_numbers<[1], [0], [0], [1], [0, 0, 1, 1], [], []>} : vector<2x32xf32>, vector<32x128xf32>, vector<2x128xf32> -> vector<2x128xf32>
    %306 = arith.addf %263, %305 : vector<2x128xf32>
    %307 = vector.extract_strided_slice %306 {offsets = [0, 0], sizes = [2, 32], strides = [1, 1]} : vector<2x128xf32> to vector<2x32xf32>
    %308 = arith.negf %307 : vector<2x32xf32>
    %309 = math.exp %308 : vector<2x32xf32>
    %cst_84 = arith.constant 1.000000e+00 : f32
    %310 = vector.broadcast %cst_84 : f32 to vector<2x32xf32>
    %311 = arith.addf %310, %309 : vector<2x32xf32>
    %312 = arith.divf %310, %311 : vector<2x32xf32>
    %313 = vector.extract_strided_slice %306 {offsets = [0, 32], sizes = [2, 32], strides = [1, 1]} : vector<2x128xf32> to vector<2x32xf32>
    %314 = arith.negf %313 : vector<2x32xf32>
    %315 = math.exp %314 : vector<2x32xf32>
    %cst_85 = arith.constant 1.000000e+00 : f32
    %316 = vector.broadcast %cst_85 : f32 to vector<2x32xf32>
    %317 = arith.addf %316, %315 : vector<2x32xf32>
    %318 = arith.divf %316, %317 : vector<2x32xf32>
    %319 = vector.extract_strided_slice %306 {offsets = [0, 64], sizes = [2, 32], strides = [1, 1]} : vector<2x128xf32> to vector<2x32xf32>
    %320 = math.tanh %319 : vector<2x32xf32>
    %321 = vector.extract_strided_slice %306 {offsets = [0, 96], sizes = [2, 32], strides = [1, 1]} : vector<2x128xf32> to vector<2x32xf32>
    %322 = arith.negf %321 : vector<2x32xf32>
    %323 = math.exp %322 : vector<2x32xf32>
    %cst_86 = arith.constant 1.000000e+00 : f32
    %324 = vector.broadcast %cst_86 : f32 to vector<2x32xf32>
    %325 = arith.addf %324, %323 : vector<2x32xf32>
    %326 = arith.divf %324, %325 : vector<2x32xf32>
    %327 = arith.mulf %318, %302 : vector<2x32xf32>
    %328 = arith.mulf %312, %320 : vector<2x32xf32>
    %329 = arith.addf %327, %328 : vector<2x32xf32>
    %330 = math.tanh %329 : vector<2x32xf32>
    %331 = arith.mulf %326, %330 : vector<2x32xf32>
    %cst_87 = arith.constant dense<0.000000e+00> : vector<2x128xf32>
    %332 = tpu.matmul %331, %256, %cst_87 {dimension_numbers = #tpu.dot_dimension_numbers<[1], [0], [0], [1], [0, 0, 1, 1], [], []>} : vector<2x32xf32>, vector<32x128xf32>, vector<2x128xf32> -> vector<2x128xf32>
    %333 = arith.addf %265, %332 : vector<2x128xf32>
    %334 = vector.extract_strided_slice %333 {offsets = [0, 0], sizes = [2, 32], strides = [1, 1]} : vector<2x128xf32> to vector<2x32xf32>
    %335 = arith.negf %334 : vector<2x32xf32>
    %336 = math.exp %335 : vector<2x32xf32>
    %cst_88 = arith.constant 1.000000e+00 : f32
    %337 = vector.broadcast %cst_88 : f32 to vector<2x32xf32>
    %338 = arith.addf %337, %336 : vector<2x32xf32>
    %339 = arith.divf %337, %338 : vector<2x32xf32>
    %340 = vector.extract_strided_slice %333 {offsets = [0, 32], sizes = [2, 32], strides = [1, 1]} : vector<2x128xf32> to vector<2x32xf32>
    %341 = arith.negf %340 : vector<2x32xf32>
    %342 = math.exp %341 : vector<2x32xf32>
    %cst_89 = arith.constant 1.000000e+00 : f32
    %343 = vector.broadcast %cst_89 : f32 to vector<2x32xf32>
    %344 = arith.addf %343, %342 : vector<2x32xf32>
    %345 = arith.divf %343, %344 : vector<2x32xf32>
    %346 = vector.extract_strided_slice %333 {offsets = [0, 64], sizes = [2, 32], strides = [1, 1]} : vector<2x128xf32> to vector<2x32xf32>
    %347 = math.tanh %346 : vector<2x32xf32>
    %348 = vector.extract_strided_slice %333 {offsets = [0, 96], sizes = [2, 32], strides = [1, 1]} : vector<2x128xf32> to vector<2x32xf32>
    %349 = arith.negf %348 : vector<2x32xf32>
    %350 = math.exp %349 : vector<2x32xf32>
    %cst_90 = arith.constant 1.000000e+00 : f32
    %351 = vector.broadcast %cst_90 : f32 to vector<2x32xf32>
    %352 = arith.addf %351, %350 : vector<2x32xf32>
    %353 = arith.divf %351, %352 : vector<2x32xf32>
    %354 = arith.mulf %345, %329 : vector<2x32xf32>
    %355 = arith.mulf %339, %347 : vector<2x32xf32>
    %356 = arith.addf %354, %355 : vector<2x32xf32>
    %357 = math.tanh %356 : vector<2x32xf32>
    %358 = arith.mulf %353, %357 : vector<2x32xf32>
    %cst_91 = arith.constant dense<0.000000e+00> : vector<2x128xf32>
    %359 = tpu.matmul %358, %256, %cst_91 {dimension_numbers = #tpu.dot_dimension_numbers<[1], [0], [0], [1], [0, 0, 1, 1], [], []>} : vector<2x32xf32>, vector<32x128xf32>, vector<2x128xf32> -> vector<2x128xf32>
    %360 = arith.addf %267, %359 : vector<2x128xf32>
    %361 = vector.extract_strided_slice %360 {offsets = [0, 0], sizes = [2, 32], strides = [1, 1]} : vector<2x128xf32> to vector<2x32xf32>
    %362 = arith.negf %361 : vector<2x32xf32>
    %363 = math.exp %362 : vector<2x32xf32>
    %cst_92 = arith.constant 1.000000e+00 : f32
    %364 = vector.broadcast %cst_92 : f32 to vector<2x32xf32>
    %365 = arith.addf %364, %363 : vector<2x32xf32>
    %366 = arith.divf %364, %365 : vector<2x32xf32>
    %367 = vector.extract_strided_slice %360 {offsets = [0, 32], sizes = [2, 32], strides = [1, 1]} : vector<2x128xf32> to vector<2x32xf32>
    %368 = arith.negf %367 : vector<2x32xf32>
    %369 = math.exp %368 : vector<2x32xf32>
    %cst_93 = arith.constant 1.000000e+00 : f32
    %370 = vector.broadcast %cst_93 : f32 to vector<2x32xf32>
    %371 = arith.addf %370, %369 : vector<2x32xf32>
    %372 = arith.divf %370, %371 : vector<2x32xf32>
    %373 = vector.extract_strided_slice %360 {offsets = [0, 64], sizes = [2, 32], strides = [1, 1]} : vector<2x128xf32> to vector<2x32xf32>
    %374 = math.tanh %373 : vector<2x32xf32>
    %375 = vector.extract_strided_slice %360 {offsets = [0, 96], sizes = [2, 32], strides = [1, 1]} : vector<2x128xf32> to vector<2x32xf32>
    %376 = arith.negf %375 : vector<2x32xf32>
    %377 = math.exp %376 : vector<2x32xf32>
    %cst_94 = arith.constant 1.000000e+00 : f32
    %378 = vector.broadcast %cst_94 : f32 to vector<2x32xf32>
    %379 = arith.addf %378, %377 : vector<2x32xf32>
    %380 = arith.divf %378, %379 : vector<2x32xf32>
    %381 = arith.mulf %372, %356 : vector<2x32xf32>
    %382 = arith.mulf %366, %374 : vector<2x32xf32>
    %383 = arith.addf %381, %382 : vector<2x32xf32>
    %384 = math.tanh %383 : vector<2x32xf32>
    %385 = arith.mulf %380, %384 : vector<2x32xf32>
    %cst_95 = arith.constant dense<0.000000e+00> : vector<2x128xf32>
    %386 = tpu.matmul %385, %256, %cst_95 {dimension_numbers = #tpu.dot_dimension_numbers<[1], [0], [0], [1], [0, 0, 1, 1], [], []>} : vector<2x32xf32>, vector<32x128xf32>, vector<2x128xf32> -> vector<2x128xf32>
    %387 = arith.addf %269, %386 : vector<2x128xf32>
    %388 = vector.extract_strided_slice %387 {offsets = [0, 0], sizes = [2, 32], strides = [1, 1]} : vector<2x128xf32> to vector<2x32xf32>
    %389 = arith.negf %388 : vector<2x32xf32>
    %390 = math.exp %389 : vector<2x32xf32>
    %cst_96 = arith.constant 1.000000e+00 : f32
    %391 = vector.broadcast %cst_96 : f32 to vector<2x32xf32>
    %392 = arith.addf %391, %390 : vector<2x32xf32>
    %393 = arith.divf %391, %392 : vector<2x32xf32>
    %394 = vector.extract_strided_slice %387 {offsets = [0, 32], sizes = [2, 32], strides = [1, 1]} : vector<2x128xf32> to vector<2x32xf32>
    %395 = arith.negf %394 : vector<2x32xf32>
    %396 = math.exp %395 : vector<2x32xf32>
    %cst_97 = arith.constant 1.000000e+00 : f32
    %397 = vector.broadcast %cst_97 : f32 to vector<2x32xf32>
    %398 = arith.addf %397, %396 : vector<2x32xf32>
    %399 = arith.divf %397, %398 : vector<2x32xf32>
    %400 = vector.extract_strided_slice %387 {offsets = [0, 64], sizes = [2, 32], strides = [1, 1]} : vector<2x128xf32> to vector<2x32xf32>
    %401 = math.tanh %400 : vector<2x32xf32>
    %402 = vector.extract_strided_slice %387 {offsets = [0, 96], sizes = [2, 32], strides = [1, 1]} : vector<2x128xf32> to vector<2x32xf32>
    %403 = arith.negf %402 : vector<2x32xf32>
    %404 = math.exp %403 : vector<2x32xf32>
    %cst_98 = arith.constant 1.000000e+00 : f32
    %405 = vector.broadcast %cst_98 : f32 to vector<2x32xf32>
    %406 = arith.addf %405, %404 : vector<2x32xf32>
    %407 = arith.divf %405, %406 : vector<2x32xf32>
    %408 = arith.mulf %399, %383 : vector<2x32xf32>
    %409 = arith.mulf %393, %401 : vector<2x32xf32>
    %410 = arith.addf %408, %409 : vector<2x32xf32>
    %411 = math.tanh %410 : vector<2x32xf32>
    %412 = arith.mulf %407, %411 : vector<2x32xf32>
    %cst_99 = arith.constant dense<0.000000e+00> : vector<2x128xf32>
    %413 = tpu.matmul %412, %256, %cst_99 {dimension_numbers = #tpu.dot_dimension_numbers<[1], [0], [0], [1], [0, 0, 1, 1], [], []>} : vector<2x32xf32>, vector<32x128xf32>, vector<2x128xf32> -> vector<2x128xf32>
    %414 = arith.addf %271, %413 : vector<2x128xf32>
    %415 = vector.extract_strided_slice %414 {offsets = [0, 0], sizes = [2, 32], strides = [1, 1]} : vector<2x128xf32> to vector<2x32xf32>
    %416 = arith.negf %415 : vector<2x32xf32>
    %417 = math.exp %416 : vector<2x32xf32>
    %cst_100 = arith.constant 1.000000e+00 : f32
    %418 = vector.broadcast %cst_100 : f32 to vector<2x32xf32>
    %419 = arith.addf %418, %417 : vector<2x32xf32>
    %420 = arith.divf %418, %419 : vector<2x32xf32>
    %421 = vector.extract_strided_slice %414 {offsets = [0, 32], sizes = [2, 32], strides = [1, 1]} : vector<2x128xf32> to vector<2x32xf32>
    %422 = arith.negf %421 : vector<2x32xf32>
    %423 = math.exp %422 : vector<2x32xf32>
    %cst_101 = arith.constant 1.000000e+00 : f32
    %424 = vector.broadcast %cst_101 : f32 to vector<2x32xf32>
    %425 = arith.addf %424, %423 : vector<2x32xf32>
    %426 = arith.divf %424, %425 : vector<2x32xf32>
    %427 = vector.extract_strided_slice %414 {offsets = [0, 64], sizes = [2, 32], strides = [1, 1]} : vector<2x128xf32> to vector<2x32xf32>
    %428 = math.tanh %427 : vector<2x32xf32>
    %429 = vector.extract_strided_slice %414 {offsets = [0, 96], sizes = [2, 32], strides = [1, 1]} : vector<2x128xf32> to vector<2x32xf32>
    %430 = arith.negf %429 : vector<2x32xf32>
    %431 = math.exp %430 : vector<2x32xf32>
    %cst_102 = arith.constant 1.000000e+00 : f32
    %432 = vector.broadcast %cst_102 : f32 to vector<2x32xf32>
    %433 = arith.addf %432, %431 : vector<2x32xf32>
    %434 = arith.divf %432, %433 : vector<2x32xf32>
    %435 = arith.mulf %426, %410 : vector<2x32xf32>
    %436 = arith.mulf %420, %428 : vector<2x32xf32>
    %437 = arith.addf %435, %436 : vector<2x32xf32>
    %438 = math.tanh %437 : vector<2x32xf32>
    %439 = arith.mulf %434, %438 : vector<2x32xf32>
    %cst_103 = arith.constant dense<0.000000e+00> : vector<2x128xf32>
    %440 = tpu.matmul %439, %256, %cst_103 {dimension_numbers = #tpu.dot_dimension_numbers<[1], [0], [0], [1], [0, 0, 1, 1], [], []>} : vector<2x32xf32>, vector<32x128xf32>, vector<2x128xf32> -> vector<2x128xf32>
    %441 = arith.addf %273, %440 : vector<2x128xf32>
    %442 = vector.extract_strided_slice %441 {offsets = [0, 0], sizes = [2, 32], strides = [1, 1]} : vector<2x128xf32> to vector<2x32xf32>
    %443 = arith.negf %442 : vector<2x32xf32>
    %444 = math.exp %443 : vector<2x32xf32>
    %cst_104 = arith.constant 1.000000e+00 : f32
    %445 = vector.broadcast %cst_104 : f32 to vector<2x32xf32>
    %446 = arith.addf %445, %444 : vector<2x32xf32>
    %447 = arith.divf %445, %446 : vector<2x32xf32>
    %448 = vector.extract_strided_slice %441 {offsets = [0, 32], sizes = [2, 32], strides = [1, 1]} : vector<2x128xf32> to vector<2x32xf32>
    %449 = arith.negf %448 : vector<2x32xf32>
    %450 = math.exp %449 : vector<2x32xf32>
    %cst_105 = arith.constant 1.000000e+00 : f32
    %451 = vector.broadcast %cst_105 : f32 to vector<2x32xf32>
    %452 = arith.addf %451, %450 : vector<2x32xf32>
    %453 = arith.divf %451, %452 : vector<2x32xf32>
    %454 = vector.extract_strided_slice %441 {offsets = [0, 64], sizes = [2, 32], strides = [1, 1]} : vector<2x128xf32> to vector<2x32xf32>
    %455 = math.tanh %454 : vector<2x32xf32>
    %456 = vector.extract_strided_slice %441 {offsets = [0, 96], sizes = [2, 32], strides = [1, 1]} : vector<2x128xf32> to vector<2x32xf32>
    %457 = arith.negf %456 : vector<2x32xf32>
    %458 = math.exp %457 : vector<2x32xf32>
    %cst_106 = arith.constant 1.000000e+00 : f32
    %459 = vector.broadcast %cst_106 : f32 to vector<2x32xf32>
    %460 = arith.addf %459, %458 : vector<2x32xf32>
    %461 = arith.divf %459, %460 : vector<2x32xf32>
    %462 = arith.mulf %453, %437 : vector<2x32xf32>
    %463 = arith.mulf %447, %455 : vector<2x32xf32>
    %464 = arith.addf %462, %463 : vector<2x32xf32>
    %465 = math.tanh %464 : vector<2x32xf32>
    %466 = arith.mulf %461, %465 : vector<2x32xf32>
    %cst_107 = arith.constant dense<0.000000e+00> : vector<2x128xf32>
    %467 = tpu.matmul %466, %256, %cst_107 {dimension_numbers = #tpu.dot_dimension_numbers<[1], [0], [0], [1], [0, 0, 1, 1], [], []>} : vector<2x32xf32>, vector<32x128xf32>, vector<2x128xf32> -> vector<2x128xf32>
    %468 = arith.addf %275, %467 : vector<2x128xf32>
    %469 = vector.extract_strided_slice %468 {offsets = [0, 0], sizes = [2, 32], strides = [1, 1]} : vector<2x128xf32> to vector<2x32xf32>
    %470 = arith.negf %469 : vector<2x32xf32>
    %471 = math.exp %470 : vector<2x32xf32>
    %cst_108 = arith.constant 1.000000e+00 : f32
    %472 = vector.broadcast %cst_108 : f32 to vector<2x32xf32>
    %473 = arith.addf %472, %471 : vector<2x32xf32>
    %474 = arith.divf %472, %473 : vector<2x32xf32>
    %475 = vector.extract_strided_slice %468 {offsets = [0, 32], sizes = [2, 32], strides = [1, 1]} : vector<2x128xf32> to vector<2x32xf32>
    %476 = arith.negf %475 : vector<2x32xf32>
    %477 = math.exp %476 : vector<2x32xf32>
    %cst_109 = arith.constant 1.000000e+00 : f32
    %478 = vector.broadcast %cst_109 : f32 to vector<2x32xf32>
    %479 = arith.addf %478, %477 : vector<2x32xf32>
    %480 = arith.divf %478, %479 : vector<2x32xf32>
    %481 = vector.extract_strided_slice %468 {offsets = [0, 64], sizes = [2, 32], strides = [1, 1]} : vector<2x128xf32> to vector<2x32xf32>
    %482 = math.tanh %481 : vector<2x32xf32>
    %483 = vector.extract_strided_slice %468 {offsets = [0, 96], sizes = [2, 32], strides = [1, 1]} : vector<2x128xf32> to vector<2x32xf32>
    %484 = arith.negf %483 : vector<2x32xf32>
    %485 = math.exp %484 : vector<2x32xf32>
    %cst_110 = arith.constant 1.000000e+00 : f32
    %486 = vector.broadcast %cst_110 : f32 to vector<2x32xf32>
    %487 = arith.addf %486, %485 : vector<2x32xf32>
    %488 = arith.divf %486, %487 : vector<2x32xf32>
    %489 = arith.mulf %480, %464 : vector<2x32xf32>
    %490 = arith.mulf %474, %482 : vector<2x32xf32>
    %491 = arith.addf %489, %490 : vector<2x32xf32>
    %492 = math.tanh %491 : vector<2x32xf32>
    %493 = arith.mulf %488, %492 : vector<2x32xf32>
    %c0_111 = arith.constant 0 : index
    %c0_112 = arith.constant 0 : index
    %494 = vector.load %arg7[%c0_111, %c0_112] : memref<32x10xf32, #tpu.memory_space<vmem>>, vector<32x10xf32>
    %cst_113 = arith.constant dense<0.000000e+00> : vector<2x10xf32>
    %495 = tpu.matmul %493, %494, %cst_113 {dimension_numbers = #tpu.dot_dimension_numbers<[1], [0], [0], [1], [0, 0, 1, 1], [], []>} : vector<2x32xf32>, vector<32x10xf32>, vector<2x10xf32> -> vector<2x10xf32>
    %c0_114 = arith.constant 0 : index
    %c0_115 = arith.constant 0 : index
    %496 = vector.load %arg8[%c0_114, %c0_115] : memref<1x10xf32, #tpu.memory_space<vmem>>, vector<1x10xf32>
    %497 = vector.broadcast %496 : vector<1x10xf32> to vector<2x10xf32>
    %498 = arith.addf %495, %497 : vector<2x10xf32>
    %c0_116 = arith.constant 0 : index
    %c0_117 = arith.constant 0 : index
    %499 = vector.load %arg9[%c0_116, %c0_117] : memref<2x10xf32, #tpu.memory_space<vmem>>, vector<2x10xf32>
    tpu.vector_store %arg9[%c0_116, %c0_117], %498 {strides = array<i32>} : memref<2x10xf32, #tpu.memory_space<vmem>>, vector<2x10xf32>,
    return
  }
}

</mosaic_0001>

<llo_original>
// kernel: model_forward.1
$region0: #{model_forward.1}
  #allocation0 [shape = 'u32[]', space=smem, size = 0x4, offset = 0x4, fixed_abs, tag = 'smem constant byte address 0x4 - core index']
  #allocation1 [shape = 'u32[144,128]{1,0:T(1,128)}', space=vmem, size = 0x12000, scoped, tag = 'internal scratch']
  %s0 = inlined_call_operand.vmem [shape: f32[8,2,16], index: 0, kind: input, shape index: {}]
  %s1 = inlined_call_operand.hbm [shape: f32[16,128], index: 1, kind: input, shape index: {}]
  %s2 = inlined_call_operand.vmem [shape: f32[32,128], index: 2, kind: input, shape index: {}]
  %s3 = inlined_call_operand.vmem [shape: f32[1,128], index: 3, kind: input, shape index: {}]
  %s4 = inlined_call_operand.vmem [shape: f32[32,128], index: 4, kind: input, shape index: {}]
  %s5 = inlined_call_operand.hbm [shape: f32[32,128], index: 5, kind: input, shape index: {}]
  %s6 = inlined_call_operand.vmem [shape: f32[1,128], index: 6, kind: input, shape index: {}]
  %s7 = inlined_call_operand.vmem [shape: f32[32,10], index: 7, kind: input, shape index: {}]
  %s8 = inlined_call_operand.vmem [shape: f32[1,10], index: 8, kind: input, shape index: {}]
  %s9 = inlined_call_operand.hbm [shape: f32[2,10], index: 9, kind: output, shape index: {}]
  %s10 = sld [smem:[#allocation0]]
  $region54: #{model_forward.1} parent=0
    _
  %s12 = ssub.s32 1, %s10
  %s13 = scalar_select 0, %s12, %s10
  $region1: #{model_forward.1} parent=0
    #allocation2 [shape = 'u8[8192]{0}', space=vmem, size = 0x2000, scoped, tag = 'input window, operand 1, single buffered']
    #allocation3 [shape = 's32[1]{0}', space=sflag, size = 0x4, scoped, tag = 'scoped memory for model_forward.1']
    #allocation4 [shape = 's32[1]{0}', space=sflag, size = 0x4, scoped, tag = 'scoped memory for model_forward.1']
    #allocation5 [shape = 'u8[16384]{0}', space=vmem, size = 0x4000, scoped, tag = 'input window, operand 5, single buffered']
    #allocation6 [shape = 's32[1]{0}', space=sflag, size = 0x4, scoped, tag = 'scoped memory for model_forward.1']
    #allocation7 [shape = 'u8[1024]{0}', space=vmem, size = 0x400, scoped, tag = 'output window, operand 0, single buffered']
    %14 = vsyncpa [#allocation3], 0
    %15 = vsyncpa [#allocation6], 0
    %16 = vsyncpa [#allocation4], 0
    // Predicated region
    $region2: #{model_forward.1} parent=1 // pred_check
      _
    $region3: #{model_forward.1} parent=1 // pred_check_branch
      %18 = sbr.rel (0) target = $region5
    $region4: #{model_forward.1} parent=1 // pred_region
      _
    $region5: #{model_forward.1} parent=1 // pred_fallthru
      _
    // Predicated region
    $region6: #{model_forward.1} parent=1 // pred_check
      _
    $region7: #{model_forward.1} parent=1 // pred_check_branch
      %20 = sbr.rel (0) target = $region9
    $region8: #{model_forward.1} parent=1 // pred_region
      %s22 = ssub.s32 256, 256
      %23 = vsyncadd [#allocation3], %s22
      %s24 = sshll.u32 [#allocation2], 4
      %s25 = int_to_ptr.vmem [resolvable:$true] %s24
      %30 = dma.hbm_to_vmem [thread:$0]  %s1, 256, %s25, [#allocation3], 128, 128, 8
    $region9: #{model_forward.1} parent=1 // pred_fallthru
      _
    // Predicated region
    $region10: #{model_forward.1} parent=1 // pred_check
      _
    $region11: #{model_forward.1} parent=1 // pred_check_branch
      %32 = sbr.rel (0) target = $region13
    $region12: #{model_forward.1} parent=1 // pred_region
      _
    $region13: #{model_forward.1} parent=1 // pred_fallthru
      _
    // Predicated region
    $region14: #{model_forward.1} parent=1 // pred_check
      _
    $region15: #{model_forward.1} parent=1 // pred_check_branch
      %34 = sbr.rel (0) target = $region17
    $region16: #{model_forward.1} parent=1 // pred_region
      _
    $region17: #{model_forward.1} parent=1 // pred_fallthru
      _
    // Predicated region
    $region18: #{model_forward.1} parent=1 // pred_check
      _
    $region19: #{model_forward.1} parent=1 // pred_check_branch
      %36 = sbr.rel (0) target = $region21
    $region20: #{model_forward.1} parent=1 // pred_region
      _
    $region21: #{model_forward.1} parent=1 // pred_fallthru
      _
    // Predicated region
    $region22: #{model_forward.1} parent=1 // pred_check
      _
    $region23: #{model_forward.1} parent=1 // pred_check_branch
      %38 = sbr.rel (0) target = $region25
    $region24: #{model_forward.1} parent=1 // pred_region
      %s40 = ssub.s32 512, 512
      %41 = vsyncadd [#allocation6], %s40
      %s42 = sshll.u32 [#allocation5], 4
      %s43 = int_to_ptr.vmem [resolvable:$true] %s42
      %48 = dma.hbm_to_vmem [thread:$0]  %s5, 512, %s43, [#allocation6], 128, 128, 8
    $region25: #{model_forward.1} parent=1 // pred_fallthru
      _
    // Predicated region
    $region26: #{model_forward.1} parent=1 // pred_check
      _
    $region27: #{model_forward.1} parent=1 // pred_check_branch
      %50 = sbr.rel (0) target = $region29
    $region28: #{model_forward.1} parent=1 // pred_region
      _
    $region29: #{model_forward.1} parent=1 // pred_fallthru
      _
    // Predicated region
    $region30: #{model_forward.1} parent=1 // pred_check
      _
    $region31: #{model_forward.1} parent=1 // pred_check_branch
      %52 = sbr.rel (0) target = $region33
    $region32: #{model_forward.1} parent=1 // pred_region
      _
    $region33: #{model_forward.1} parent=1 // pred_fallthru
      _
    // Predicated region
    $region34: #{model_forward.1} parent=1 // pred_check
      _
    $region35: #{model_forward.1} parent=1 // pred_check_branch
      %54 = sbr.rel (0) target = $region37
    $region36: #{model_forward.1} parent=1 // pred_region
      _
    $region37: #{model_forward.1} parent=1 // pred_fallthru
      _
    // Predicated region
    $region38: #{model_forward.1} parent=1 // pred_check
      _
    $region39: #{model_forward.1} parent=1 // pred_check_branch
      %56 = sbr.rel (0) target = $region41
    $region40: #{model_forward.1} parent=1 // pred_region
      %57 = dma.done [#allocation3], 256
    $region41: #{model_forward.1} parent=1 // pred_fallthru
      _
    // Predicated region
    $region42: #{model_forward.1} parent=1 // pred_check
      _
    $region43: #{model_forward.1} parent=1 // pred_check_branch
      %59 = sbr.rel (0) target = $region45
    $region44: #{model_forward.1} parent=1 // pred_region
      %60 = dma.done [#allocation6], 512
    $region45: #{model_forward.1} parent=1 // pred_fallthru
      _
    %v61 = vld [vmem:[%s0] sm:$0x3]
    %s62 = scalar_lea.vmem %s0, 2
    %v63 = vld [vmem:[%s62] sm:$0x3]
    %s64 = scalar_lea.vmem %s0, 4
    %v65 = vld [vmem:[%s64] sm:$0x3]
    %s66 = scalar_lea.vmem %s0, 6
    %v67 = vld [vmem:[%s66] sm:$0x3]
    %s68 = scalar_lea.vmem %s0, 8
    %v69 = vld [vmem:[%s68] sm:$0x3]
    %s70 = scalar_lea.vmem %s0, 10
    %v71 = vld [vmem:[%s70] sm:$0x3]
    %s72 = scalar_lea.vmem %s0, 12
    %v73 = vld [vmem:[%s72] sm:$0x3]
    %s74 = scalar_lea.vmem %s0, 14
    %v75 = vld [vmem:[%s74] sm:$0x3]
    %v76 = vld [vmem:[#allocation2] sm:$0xff]
    %v77 = vld [vmem:[#allocation2 + $0x8] sm:$0xff]
    %v78 = vld [vmem:[%s2] sm:$0xff]
    %v79 = vld [vmem:[%s2 + $0x8] sm:$0xff]
    %v80 = vld [vmem:[%s2 + $0x10] sm:$0xff]
    %v81 = vld [vmem:[%s2 + $0x18] sm:$0xff]
    %v82 = vld [vmem:[%s3] sm:$0x1]
    %v84 = vlaneseq
    %v85 = vshrl.u32 %v84, 7
    %v86 = vsub.s32 0, %v85
    %v87 = vrot.slane %v82, %v86
    %vm89 = vcmask 130048
    %v91 = vsel %vm89, %v61, 0
    %93 = vmatprep.subr.mxu0 0.0
    %94 = vmatpush1.msra.mxu0 %v76
    %95 = vmatprep.subr.mxu0 0.0
    %96 = vmatpush1.msra.mxu0 %v77
    %97 = vmatprep.subr.mxu0 0.0
    %98 = vmatpush1.msra.mxu0 0.0
    %99 = vmatprep.subr.mxu0 0.0
    %100 = vmatpush1.msra.mxu0 0.0
    %101 = vmatprep.subr.mxu0 0.0
    %102 = vmatpush1.msra.mxu0 0.0
    %103 = vmatprep.subr.mxu0 0.0
    %104 = vmatpush1.msra.mxu0 0.0
    %105 = vmatprep.subr.mxu0 0.0
    %106 = vmatpush1.msra.mxu0 0.0
    %107 = vmatprep.subr.mxu0 0.0
    %108 = vmatpush1.msra.mxu0 0.0
    %109 = vmatprep.subr.mxu0 0.0
    %110 = vmatpush1.msra.mxu0 0.0
    %111 = vmatprep.subr.mxu0 0.0
    %112 = vmatpush1.msra.mxu0 0.0
    %113 = vmatprep.subr.mxu0 0.0
    %114 = vmatpush1.msra.mxu0 0.0
    %115 = vmatprep.subr.mxu0 0.0
    %116 = vmatpush1.msra.mxu0 0.0
    %117 = vmatprep.subr.mxu0 0.0
    %118 = vmatpush1.msra.mxu0 0.0
    %119 = vmatprep.subr.mxu0 0.0
    %120 = vmatpush1.msra.mxu0 0.0
    %121 = vmatprep.subr.mxu0 0.0
    %122 = vmatpush1.msra.mxu0 0.0
    %123 = vmatprep.subr.mxu0 0.0
    %124 = vmatpush1.msra.mxu0 0.0
    %125 = vmatprep.subr.mxu0 0.0
    %126 = vmatpush1.msra.mxu0 0.0
    %127 = vmatprep.subr.mxu0 0.0
    %128 = vmatpush1.msra.mxu0 0.0
    %129 = vmatprep.subr.mxu0 0.0
    %130 = vmatpush1.msra.mxu0 0.0
    %131 = vmatprep.subr.mxu0 0.0
    %132 = vmatpush1.msra.mxu0 0.0
    %133 = vmatprep.subr.mxu0 0.0
    %134 = vmatpush1.msra.mxu0 0.0
    %135 = vmatprep.subr.mxu0 0.0
    %136 = vmatpush1.msra.mxu0 0.0
    %137 = vmatprep.subr.mxu0 0.0
    %138 = vmatpush1.msra.mxu0 0.0
    %139 = vmatprep.subr.mxu0 0.0
    %140 = vmatpush1.msra.mxu0 0.0
    %141 = vmatprep.subr.mxu0 0.0
    %142 = vmatpush1.msra.mxu0 0.0
    %143 = vmatprep.subr.mxu0 0.0
    %144 = vmatpush1.msra.mxu0 0.0
    %145 = vmatprep.subr.mxu0 0.0
    %146 = vmatpush1.msra.mxu0 0.0
    %147 = vmatprep.subr.mxu0 0.0
    %148 = vmatpush1.msra.mxu0 0.0
    %149 = vmatprep.subr.mxu0 0.0
    %150 = vmatpush1.msra.mxu0 0.0
    %151 = vmatprep.subr.mxu0 0.0
    %152 = vmatpush1.msra.mxu0 0.0
    %153 = vmatprep.subr.mxu0 0.0
    %154 = vmatpush1.msra.mxu0 0.0
    %155 = vmatprep.subr.mxu0 0.0
    %156 = vmatpush1.msra.mxu0 0.0
    %157 = vmatprep.mubr.f32.mxu0 0.0
    %158 = vmatmul.mubr.f32.gmra.mrb[0].mxu0 %v91
    %v159 = vpop.f32.mrb[0].mxu0
    %v160 = vadd.f32 %v87, %v159
    %v161 = vpop.f32.mrb[0].mxu0
    %162 = vdwg.mxu0
    %v164 = vsel %vm89, %v63, 0
    %166 = vmatprep.subr.mxu0 0.0
    %167 = vmatpush1.msra.mxu0 %v76
    %168 = vmatprep.subr.mxu0 0.0
    %169 = vmatpush1.msra.mxu0 %v77
    %170 = vmatprep.subr.mxu0 0.0
    %171 = vmatpush1.msra.mxu0 0.0
    %172 = vmatprep.subr.mxu0 0.0
    %173 = vmatpush1.msra.mxu0 0.0
    %174 = vmatprep.subr.mxu0 0.0
    %175 = vmatpush1.msra.mxu0 0.0
    %176 = vmatprep.subr.mxu0 0.0
    %177 = vmatpush1.msra.mxu0 0.0
    %178 = vmatprep.subr.mxu0 0.0
    %179 = vmatpush1.msra.mxu0 0.0
    %180 = vmatprep.subr.mxu0 0.0
    %181 = vmatpush1.msra.mxu0 0.0
    %182 = vmatprep.subr.mxu0 0.0
    %183 = vmatpush1.msra.mxu0 0.0
    %184 = vmatprep.subr.mxu0 0.0
    %185 = vmatpush1.msra.mxu0 0.0
    %186 = vmatprep.subr.mxu0 0.0
    %187 = vmatpush1.msra.mxu0 0.0
    %188 = vmatprep.subr.mxu0 0.0
    %189 = vmatpush1.msra.mxu0 0.0
    %190 = vmatprep.subr.mxu0 0.0
    %191 = vmatpush1.msra.mxu0 0.0
    %192 = vmatprep.subr.mxu0 0.0
    %193 = vmatpush1.msra.mxu0 0.0
    %194 = vmatprep.subr.mxu0 0.0
    %195 = vmatpush1.msra.mxu0 0.0
    %196 = vmatprep.subr.mxu0 0.0
    %197 = vmatpush1.msra.mxu0 0.0
    %198 = vmatprep.subr.mxu0 0.0
    %199 = vmatpush1.msra.mxu0 0.0
    %200 = vmatprep.subr.mxu0 0.0
    %201 = vmatpush1.msra.mxu0 0.0
    %202 = vmatprep.subr.mxu0 0.0
    %203 = vmatpush1.msra.mxu0 0.0
    %204 = vmatprep.subr.mxu0 0.0
    %205 = vmatpush1.msra.mxu0 0.0
    %206 = vmatprep.subr.mxu0 0.0
    %207 = vmatpush1.msra.mxu0 0.0
    %208 = vmatprep.subr.mxu0 0.0
    %209 = vmatpush1.msra.mxu0 0.0
    %210 = vmatprep.subr.mxu0 0.0
    %211 = vmatpush1.msra.mxu0 0.0
    %212 = vmatprep.subr.mxu0 0.0
    %213 = vmatpush1.msra.mxu0 0.0
    %214 = vmatprep.subr.mxu0 0.0
    %215 = vmatpush1.msra.mxu0 0.0
    %216 = vmatprep.subr.mxu0 0.0
    %217 = vmatpush1.msra.mxu0 0.0
    %218 = vmatprep.subr.mxu0 0.0
    %219 = vmatpush1.msra.mxu0 0.0
    %220 = vmatprep.subr.mxu0 0.0
    %221 = vmatpush1.msra.mxu0 0.0
    %222 = vmatprep.subr.mxu0 0.0
    %223 = vmatpush1.msra.mxu0 0.0
    %224 = vmatprep.subr.mxu0 0.0
    %225 = vmatpush1.msra.mxu0 0.0
    %226 = vmatprep.subr.mxu0 0.0
    %227 = vmatpush1.msra.mxu0 0.0
    %228 = vmatprep.subr.mxu0 0.0
    %229 = vmatpush1.msra.mxu0 0.0
    %230 = vmatprep.mubr.f32.mxu0 0.0
    %231 = vmatmul.mubr.f32.gmra.mrb[0].mxu0 %v164
    %v232 = vpop.f32.mrb[0].mxu0
    %v233 = vadd.f32 %v87, %v232
    %v234 = vpop.f32.mrb[0].mxu0
    %235 = vdwg.mxu0
    %v237 = vsel %vm89, %v65, 0
    %239 = vmatprep.subr.mxu0 0.0
    %240 = vmatpush1.msra.mxu0 %v76
    %241 = vmatprep.subr.mxu0 0.0
    %242 = vmatpush1.msra.mxu0 %v77
    %243 = vmatprep.subr.mxu0 0.0
    %244 = vmatpush1.msra.mxu0 0.0
    %245 = vmatprep.subr.mxu0 0.0
    %246 = vmatpush1.msra.mxu0 0.0
    %247 = vmatprep.subr.mxu0 0.0
    %248 = vmatpush1.msra.mxu0 0.0
    %249 = vmatprep.subr.mxu0 0.0
    %250 = vmatpush1.msra.mxu0 0.0
    %251 = vmatprep.subr.mxu0 0.0
    %252 = vmatpush1.msra.mxu0 0.0
    %253 = vmatprep.subr.mxu0 0.0
    %254 = vmatpush1.msra.mxu0 0.0
    %255 = vmatprep.subr.mxu0 0.0
    %256 = vmatpush1.msra.mxu0 0.0
    %257 = vmatprep.subr.mxu0 0.0
    %258 = vmatpush1.msra.mxu0 0.0
    %259 = vmatprep.subr.mxu0 0.0
    %260 = vmatpush1.msra.mxu0 0.0
    %261 = vmatprep.subr.mxu0 0.0
    %262 = vmatpush1.msra.mxu0 0.0
    %263 = vmatprep.subr.mxu0 0.0
    %264 = vmatpush1.msra.mxu0 0.0
    %265 = vmatprep.subr.mxu0 0.0
    %266 = vmatpush1.msra.mxu0 0.0
    %267 = vmatprep.subr.mxu0 0.0
    %268 = vmatpush1.msra.mxu0 0.0
    %269 = vmatprep.subr.mxu0 0.0
    %270 = vmatpush1.msra.mxu0 0.0
    %271 = vmatprep.subr.mxu0 0.0
    %272 = vmatpush1.msra.mxu0 0.0
    %273 = vmatprep.subr.mxu0 0.0
    %274 = vmatpush1.msra.mxu0 0.0
    %275 = vmatprep.subr.mxu0 0.0
    %276 = vmatpush1.msra.mxu0 0.0
    %277 = vmatprep.subr.mxu0 0.0
    %278 = vmatpush1.msra.mxu0 0.0
    %279 = vmatprep.subr.mxu0 0.0
    %280 = vmatpush1.msra.mxu0 0.0
    %281 = vmatprep.subr.mxu0 0.0
    %282 = vmatpush1.msra.mxu0 0.0
    %283 = vmatprep.subr.mxu0 0.0
    %284 = vmatpush1.msra.mxu0 0.0
    %285 = vmatprep.subr.mxu0 0.0
    %286 = vmatpush1.msra.mxu0 0.0
    %287 = vmatprep.subr.mxu0 0.0
    %288 = vmatpush1.msra.mxu0 0.0
    %289 = vmatprep.subr.mxu0 0.0
    %290 = vmatpush1.msra.mxu0 0.0
    %291 = vmatprep.subr.mxu0 0.0
    %292 = vmatpush1.msra.mxu0 0.0
    %293 = vmatprep.subr.mxu0 0.0
    %294 = vmatpush1.msra.mxu0 0.0
    %295 = vmatprep.subr.mxu0 0.0
    %296 = vmatpush1.msra.mxu0 0.0
    %297 = vmatprep.subr.mxu0 0.0
    %298 = vmatpush1.msra.mxu0 0.0
    %299 = vmatprep.subr.mxu0 0.0
    %300 = vmatpush1.msra.mxu0 0.0
    %301 = vmatprep.subr.mxu0 0.0
    %302 = vmatpush1.msra.mxu0 0.0
    %303 = vmatprep.mubr.f32.mxu0 0.0
    %304 = vmatmul.mubr.f32.gmra.mrb[0].mxu0 %v237
    %v305 = vpop.f32.mrb[0].mxu0
    %v306 = vadd.f32 %v87, %v305
    %v307 = vpop.f32.mrb[0].mxu0
    %308 = vdwg.mxu0
    %v310 = vsel %vm89, %v67, 0
    %312 = vmatprep.subr.mxu0 0.0
    %313 = vmatpush1.msra.mxu0 %v76
    %314 = vmatprep.subr.mxu0 0.0
    %315 = vmatpush1.msra.mxu0 %v77
    %316 = vmatprep.subr.mxu0 0.0
    %317 = vmatpush1.msra.mxu0 0.0
    %318 = vmatprep.subr.mxu0 0.0
    %319 = vmatpush1.msra.mxu0 0.0
    %320 = vmatprep.subr.mxu0 0.0
    %321 = vmatpush1.msra.mxu0 0.0
    %322 = vmatprep.subr.mxu0 0.0
    %323 = vmatpush1.msra.mxu0 0.0
    %324 = vmatprep.subr.mxu0 0.0
    %325 = vmatpush1.msra.mxu0 0.0
    %326 = vmatprep.subr.mxu0 0.0
    %327 = vmatpush1.msra.mxu0 0.0
    %328 = vmatprep.subr.mxu0 0.0
    %329 = vmatpush1.msra.mxu0 0.0
    %330 = vmatprep.subr.mxu0 0.0
    %331 = vmatpush1.msra.mxu0 0.0
    %332 = vmatprep.subr.mxu0 0.0
    %333 = vmatpush1.msra.mxu0 0.0
    %334 = vmatprep.subr.mxu0 0.0
    %335 = vmatpush1.msra.mxu0 0.0
    %336 = vmatprep.subr.mxu0 0.0
    %337 = vmatpush1.msra.mxu0 0.0
    %338 = vmatprep.subr.mxu0 0.0
    %339 = vmatpush1.msra.mxu0 0.0
    %340 = vmatprep.subr.mxu0 0.0
    %341 = vmatpush1.msra.mxu0 0.0
    %342 = vmatprep.subr.mxu0 0.0
    %343 = vmatpush1.msra.mxu0 0.0
    %344 = vmatprep.subr.mxu0 0.0
    %345 = vmatpush1.msra.mxu0 0.0
    %346 = vmatprep.subr.mxu0 0.0
    %347 = vmatpush1.msra.mxu0 0.0
    %348 = vmatprep.subr.mxu0 0.0
    %349 = vmatpush1.msra.mxu0 0.0
    %350 = vmatprep.subr.mxu0 0.0
    %351 = vmatpush1.msra.mxu0 0.0
    %352 = vmatprep.subr.mxu0 0.0
    %353 = vmatpush1.msra.mxu0 0.0
    %354 = vmatprep.subr.mxu0 0.0
    %355 = vmatpush1.msra.mxu0 0.0
    %356 = vmatprep.subr.mxu0 0.0
    %357 = vmatpush1.msra.mxu0 0.0
    %358 = vmatprep.subr.mxu0 0.0
    %359 = vmatpush1.msra.mxu0 0.0
    %360 = vmatprep.subr.mxu0 0.0
    %361 = vmatpush1.msra.mxu0 0.0
    %362 = vmatprep.subr.mxu0 0.0
    %363 = vmatpush1.msra.mxu0 0.0
    %364 = vmatprep.subr.mxu0 0.0
    %365 = vmatpush1.msra.mxu0 0.0
    %366 = vmatprep.subr.mxu0 0.0
    %367 = vmatpush1.msra.mxu0 0.0
    %368 = vmatprep.subr.mxu0 0.0
    %369 = vmatpush1.msra.mxu0 0.0
    %370 = vmatprep.subr.mxu0 0.0
    %371 = vmatpush1.msra.mxu0 0.0
    %372 = vmatprep.subr.mxu0 0.0
    %373 = vmatpush1.msra.mxu0 0.0
    %374 = vmatprep.subr.mxu0 0.0
    %375 = vmatpush1.msra.mxu0 0.0
    %376 = vmatprep.mubr.f32.mxu0 0.0
    %377 = vmatmul.mubr.f32.gmra.mrb[0].mxu0 %v310
    %v378 = vpop.f32.mrb[0].mxu0
    %v379 = vadd.f32 %v87, %v378
    %v380 = vpop.f32.mrb[0].mxu0
    %381 = vdwg.mxu0
    %v383 = vsel %vm89, %v69, 0
    %385 = vmatprep.subr.mxu0 0.0
    %386 = vmatpush1.msra.mxu0 %v76
    %387 = vmatprep.subr.mxu0 0.0
    %388 = vmatpush1.msra.mxu0 %v77
    %389 = vmatprep.subr.mxu0 0.0
    %390 = vmatpush1.msra.mxu0 0.0
    %391 = vmatprep.subr.mxu0 0.0
    %392 = vmatpush1.msra.mxu0 0.0
    %393 = vmatprep.subr.mxu0 0.0
    %394 = vmatpush1.msra.mxu0 0.0
    %395 = vmatprep.subr.mxu0 0.0
    %396 = vmatpush1.msra.mxu0 0.0
    %397 = vmatprep.subr.mxu0 0.0
    %398 = vmatpush1.msra.mxu0 0.0
    %399 = vmatprep.subr.mxu0 0.0
    %400 = vmatpush1.msra.mxu0 0.0
    %401 = vmatprep.subr.mxu0 0.0
    %402 = vmatpush1.msra.mxu0 0.0
    %403 = vmatprep.subr.mxu0 0.0
    %404 = vmatpush1.msra.mxu0 0.0
    %405 = vmatprep.subr.mxu0 0.0
    %406 = vmatpush1.msra.mxu0 0.0
    %407 = vmatprep.subr.mxu0 0.0
    %408 = vmatpush1.msra.mxu0 0.0
    %409 = vmatprep.subr.mxu0 0.0
    %410 = vmatpush1.msra.mxu0 0.0
    %411 = vmatprep.subr.mxu0 0.0
    %412 = vmatpush1.msra.mxu0 0.0
    %413 = vmatprep.subr.mxu0 0.0
    %414 = vmatpush1.msra.mxu0 0.0
    %415 = vmatprep.subr.mxu0 0.0
    %416 = vmatpush1.msra.mxu0 0.0
    %417 = vmatprep.subr.mxu0 0.0
    %418 = vmatpush1.msra.mxu0 0.0
    %419 = vmatprep.subr.mxu0 0.0
    %420 = vmatpush1.msra.mxu0 0.0
    %421 = vmatprep.subr.mxu0 0.0
    %422 = vmatpush1.msra.mxu0 0.0
    %423 = vmatprep.subr.mxu0 0.0
    %424 = vmatpush1.msra.mxu0 0.0
    %425 = vmatprep.subr.mxu0 0.0
    %426 = vmatpush1.msra.mxu0 0.0
    %427 = vmatprep.subr.mxu0 0.0
    %428 = vmatpush1.msra.mxu0 0.0
    %429 = vmatprep.subr.mxu0 0.0
    %430 = vmatpush1.msra.mxu0 0.0
    %431 = vmatprep.subr.mxu0 0.0
    %432 = vmatpush1.msra.mxu0 0.0
    %433 = vmatprep.subr.mxu0 0.0
    %434 = vmatpush1.msra.mxu0 0.0
    %435 = vmatprep.subr.mxu0 0.0
    %436 = vmatpush1.msra.mxu0 0.0
    %437 = vmatprep.subr.mxu0 0.0
    %438 = vmatpush1.msra.mxu0 0.0
    %439 = vmatprep.subr.mxu0 0.0
    %440 = vmatpush1.msra.mxu0 0.0
    %441 = vmatprep.subr.mxu0 0.0
    %442 = vmatpush1.msra.mxu0 0.0
    %443 = vmatprep.subr.mxu0 0.0
    %444 = vmatpush1.msra.mxu0 0.0
    %445 = vmatprep.subr.mxu0 0.0
    %446 = vmatpush1.msra.mxu0 0.0
    %447 = vmatprep.subr.mxu0 0.0
    %448 = vmatpush1.msra.mxu0 0.0
    %449 = vmatprep.mubr.f32.mxu0 0.0
    %450 = vmatmul.mubr.f32.gmra.mrb[0].mxu0 %v383
    %v451 = vpop.f32.mrb[0].mxu0
    %v452 = vadd.f32 %v87, %v451
    %v453 = vpop.f32.mrb[0].mxu0
    %454 = vdwg.mxu0
    %v456 = vsel %vm89, %v71, 0
    %458 = vmatprep.subr.mxu0 0.0
    %459 = vmatpush1.msra.mxu0 %v76
    %460 = vmatprep.subr.mxu0 0.0
    %461 = vmatpush1.msra.mxu0 %v77
    %462 = vmatprep.subr.mxu0 0.0
    %463 = vmatpush1.msra.mxu0 0.0
    %464 = vmatprep.subr.mxu0 0.0
    %465 = vmatpush1.msra.mxu0 0.0
    %466 = vmatprep.subr.mxu0 0.0
    %467 = vmatpush1.msra.mxu0 0.0
    %468 = vmatprep.subr.mxu0 0.0
    %469 = vmatpush1.msra.mxu0 0.0
    %470 = vmatprep.subr.mxu0 0.0
    %471 = vmatpush1.msra.mxu0 0.0
    %472 = vmatprep.subr.mxu0 0.0
    %473 = vmatpush1.msra.mxu0 0.0
    %474 = vmatprep.subr.mxu0 0.0
    %475 = vmatpush1.msra.mxu0 0.0
    %476 = vmatprep.subr.mxu0 0.0
    %477 = vmatpush1.msra.mxu0 0.0
    %478 = vmatprep.subr.mxu0 0.0
    %479 = vmatpush1.msra.mxu0 0.0
    %480 = vmatprep.subr.mxu0 0.0
    %481 = vmatpush1.msra.mxu0 0.0
    %482 = vmatprep.subr.mxu0 0.0
    %483 = vmatpush1.msra.mxu0 0.0
    %484 = vmatprep.subr.mxu0 0.0
    %485 = vmatpush1.msra.mxu0 0.0
    %486 = vmatprep.subr.mxu0 0.0
    %487 = vmatpush1.msra.mxu0 0.0
    %488 = vmatprep.subr.mxu0 0.0
    %489 = vmatpush1.msra.mxu0 0.0
    %490 = vmatprep.subr.mxu0 0.0
    %491 = vmatpush1.msra.mxu0 0.0
    %492 = vmatprep.subr.mxu0 0.0
    %493 = vmatpush1.msra.mxu0 0.0
    %494 = vmatprep.subr.mxu0 0.0
    %495 = vmatpush1.msra.mxu0 0.0
    %496 = vmatprep.subr.mxu0 0.0
    %497 = vmatpush1.msra.mxu0 0.0
    %498 = vmatprep.subr.mxu0 0.0
    %499 = vmatpush1.msra.mxu0 0.0
    %500 = vmatprep.subr.mxu0 0.0
    %501 = vmatpush1.msra.mxu0 0.0
    %502 = vmatprep.subr.mxu0 0.0
    %503 = vmatpush1.msra.mxu0 0.0
    %504 = vmatprep.subr.mxu0 0.0
    %505 = vmatpush1.msra.mxu0 0.0
    %506 = vmatprep.subr.mxu0 0.0
    %507 = vmatpush1.msra.mxu0 0.0
    %508 = vmatprep.subr.mxu0 0.0
    %509 = vmatpush1.msra.mxu0 0.0
    %510 = vmatprep.subr.mxu0 0.0
    %511 = vmatpush1.msra.mxu0 0.0
    %512 = vmatprep.subr.mxu0 0.0
    %513 = vmatpush1.msra.mxu0 0.0
    %514 = vmatprep.subr.mxu0 0.0
    %515 = vmatpush1.msra.mxu0 0.0
    %516 = vmatprep.subr.mxu0 0.0
    %517 = vmatpush1.msra.mxu0 0.0
    %518 = vmatprep.subr.mxu0 0.0
    %519 = vmatpush1.msra.mxu0 0.0
    %520 = vmatprep.subr.mxu0 0.0
    %521 = vmatpush1.msra.mxu0 0.0
    %522 = vmatprep.mubr.f32.mxu0 0.0
    %523 = vmatmul.mubr.f32.gmra.mrb[0].mxu0 %v456
    %v524 = vpop.f32.mrb[0].mxu0
    %v525 = vadd.f32 %v87, %v524
    %v526 = vpop.f32.mrb[0].mxu0
    %527 = vdwg.mxu0
    %v529 = vsel %vm89, %v73, 0
    %531 = vmatprep.subr.mxu0 0.0
    %532 = vmatpush1.msra.mxu0 %v76
    %533 = vmatprep.subr.mxu0 0.0
    %534 = vmatpush1.msra.mxu0 %v77
    %535 = vmatprep.subr.mxu0 0.0
    %536 = vmatpush1.msra.mxu0 0.0
    %537 = vmatprep.subr.mxu0 0.0
    %538 = vmatpush1.msra.mxu0 0.0
    %539 = vmatprep.subr.mxu0 0.0
    %540 = vmatpush1.msra.mxu0 0.0
    %541 = vmatprep.subr.mxu0 0.0
    %542 = vmatpush1.msra.mxu0 0.0
    %543 = vmatprep.subr.mxu0 0.0
    %544 = vmatpush1.msra.mxu0 0.0
    %545 = vmatprep.subr.mxu0 0.0
    %546 = vmatpush1.msra.mxu0 0.0
    %547 = vmatprep.subr.mxu0 0.0
    %548 = vmatpush1.msra.mxu0 0.0
    %549 = vmatprep.subr.mxu0 0.0
    %550 = vmatpush1.msra.mxu0 0.0
    %551 = vmatprep.subr.mxu0 0.0
    %552 = vmatpush1.msra.mxu0 0.0
    %553 = vmatprep.subr.mxu0 0.0
    %554 = vmatpush1.msra.mxu0 0.0
    %555 = vmatprep.subr.mxu0 0.0
    %556 = vmatpush1.msra.mxu0 0.0
    %557 = vmatprep.subr.mxu0 0.0
    %558 = vmatpush1.msra.mxu0 0.0
    %559 = vmatprep.subr.mxu0 0.0
    %560 = vmatpush1.msra.mxu0 0.0
    %561 = vmatprep.subr.mxu0 0.0
    %562 = vmatpush1.msra.mxu0 0.0
    %563 = vmatprep.subr.mxu0 0.0
    %564 = vmatpush1.msra.mxu0 0.0
    %565 = vmatprep.subr.mxu0 0.0
    %566 = vmatpush1.msra.mxu0 0.0
    %567 = vmatprep.subr.mxu0 0.0
    %568 = vmatpush1.msra.mxu0 0.0
    %569 = vmatprep.subr.mxu0 0.0
    %570 = vmatpush1.msra.mxu0 0.0
    %571 = vmatprep.subr.mxu0 0.0
    %572 = vmatpush1.msra.mxu0 0.0
    %573 = vmatprep.subr.mxu0 0.0
    %574 = vmatpush1.msra.mxu0 0.0
    %575 = vmatprep.subr.mxu0 0.0
    %576 = vmatpush1.msra.mxu0 0.0
    %577 = vmatprep.subr.mxu0 0.0
    %578 = vmatpush1.msra.mxu0 0.0
    %579 = vmatprep.subr.mxu0 0.0
    %580 = vmatpush1.msra.mxu0 0.0
    %581 = vmatprep.subr.mxu0 0.0
    %582 = vmatpush1.msra.mxu0 0.0
    %583 = vmatprep.subr.mxu0 0.0
    %584 = vmatpush1.msra.mxu0 0.0
    %585 = vmatprep.subr.mxu0 0.0
    %586 = vmatpush1.msra.mxu0 0.0
    %587 = vmatprep.subr.mxu0 0.0
    %588 = vmatpush1.msra.mxu0 0.0
    %589 = vmatprep.subr.mxu0 0.0
    %590 = vmatpush1.msra.mxu0 0.0
    %591 = vmatprep.subr.mxu0 0.0
    %592 = vmatpush1.msra.mxu0 0.0
    %593 = vmatprep.subr.mxu0 0.0
    %594 = vmatpush1.msra.mxu0 0.0
    %595 = vmatprep.mubr.f32.mxu0 0.0
    %596 = vmatmul.mubr.f32.gmra.mrb[0].mxu0 %v529
    %v597 = vpop.f32.mrb[0].mxu0
    %v598 = vadd.f32 %v87, %v597
    %v599 = vpop.f32.mrb[0].mxu0
    %600 = vdwg.mxu0
    %v602 = vsel %vm89, %v75, 0
    %604 = vmatprep.subr.mxu0 0.0
    %605 = vmatpush1.msra.mxu0 %v76
    %606 = vmatprep.subr.mxu0 0.0
    %607 = vmatpush1.msra.mxu0 %v77
    %608 = vmatprep.subr.mxu0 0.0
    %609 = vmatpush1.msra.mxu0 0.0
    %610 = vmatprep.subr.mxu0 0.0
    %611 = vmatpush1.msra.mxu0 0.0
    %612 = vmatprep.subr.mxu0 0.0
    %613 = vmatpush1.msra.mxu0 0.0
    %614 = vmatprep.subr.mxu0 0.0
    %615 = vmatpush1.msra.mxu0 0.0
    %616 = vmatprep.subr.mxu0 0.0
    %617 = vmatpush1.msra.mxu0 0.0
    %618 = vmatprep.subr.mxu0 0.0
    %619 = vmatpush1.msra.mxu0 0.0
    %620 = vmatprep.subr.mxu0 0.0
    %621 = vmatpush1.msra.mxu0 0.0
    %622 = vmatprep.subr.mxu0 0.0
    %623 = vmatpush1.msra.mxu0 0.0
    %624 = vmatprep.subr.mxu0 0.0
    %625 = vmatpush1.msra.mxu0 0.0
    %626 = vmatprep.subr.mxu0 0.0
    %627 = vmatpush1.msra.mxu0 0.0
    %628 = vmatprep.subr.mxu0 0.0
    %629 = vmatpush1.msra.mxu0 0.0
    %630 = vmatprep.subr.mxu0 0.0
    %631 = vmatpush1.msra.mxu0 0.0
    %632 = vmatprep.subr.mxu0 0.0
    %633 = vmatpush1.msra.mxu0 0.0
    %634 = vmatprep.subr.mxu0 0.0
    %635 = vmatpush1.msra.mxu0 0.0
    %636 = vmatprep.subr.mxu0 0.0
    %637 = vmatpush1.msra.mxu0 0.0
    %638 = vmatprep.subr.mxu0 0.0
    %639 = vmatpush1.msra.mxu0 0.0
    %640 = vmatprep.subr.mxu0 0.0
    %641 = vmatpush1.msra.mxu0 0.0
    %642 = vmatprep.subr.mxu0 0.0
    %643 = vmatpush1.msra.mxu0 0.0
    %644 = vmatprep.subr.mxu0 0.0
    %645 = vmatpush1.msra.mxu0 0.0
    %646 = vmatprep.subr.mxu0 0.0
    %647 = vmatpush1.msra.mxu0 0.0
    %648 = vmatprep.subr.mxu0 0.0
    %649 = vmatpush1.msra.mxu0 0.0
    %650 = vmatprep.subr.mxu0 0.0
    %651 = vmatpush1.msra.mxu0 0.0
    %652 = vmatprep.subr.mxu0 0.0
    %653 = vmatpush1.msra.mxu0 0.0
    %654 = vmatprep.subr.mxu0 0.0
    %655 = vmatpush1.msra.mxu0 0.0
    %656 = vmatprep.subr.mxu0 0.0
    %657 = vmatpush1.msra.mxu0 0.0
    %658 = vmatprep.subr.mxu0 0.0
    %659 = vmatpush1.msra.mxu0 0.0
    %660 = vmatprep.subr.mxu0 0.0
    %661 = vmatpush1.msra.mxu0 0.0
    %662 = vmatprep.subr.mxu0 0.0
    %663 = vmatpush1.msra.mxu0 0.0
    %664 = vmatprep.subr.mxu0 0.0
    %665 = vmatpush1.msra.mxu0 0.0
    %666 = vmatprep.subr.mxu0 0.0
    %667 = vmatpush1.msra.mxu0 0.0
    %668 = vmatprep.mubr.f32.mxu0 0.0
    %669 = vmatmul.mubr.f32.gmra.mrb[0].mxu0 %v602
    %v670 = vpop.f32.mrb[0].mxu0
    %v671 = vadd.f32 %v87, %v670
    %v672 = vpop.f32.mrb[0].mxu0
    %673 = vdwg.mxu0
    %vm674 = vcmask 261120
    %v676 = vsel %vm674, 0.0, 0
    %678 = vmatprep.subr.mxu0 0.0
    %679 = vmatpush1.msra.mxu0 %v78
    %680 = vmatprep.subr.mxu0 0.0
    %681 = vmatpush1.msra.mxu0 %v79
    %682 = vmatprep.subr.mxu0 0.0
    %683 = vmatpush1.msra.mxu0 %v80
    %684 = vmatprep.subr.mxu0 0.0
    %685 = vmatpush1.msra.mxu0 %v81
    %686 = vmatprep.subr.mxu0 0.0
    %687 = vmatpush1.msra.mxu0 0.0
    %688 = vmatprep.subr.mxu0 0.0
    %689 = vmatpush1.msra.mxu0 0.0
    %690 = vmatprep.subr.mxu0 0.0
    %691 = vmatpush1.msra.mxu0 0.0
    %692 = vmatprep.subr.mxu0 0.0
    %693 = vmatpush1.msra.mxu0 0.0
    %694 = vmatprep.subr.mxu0 0.0
    %695 = vmatpush1.msra.mxu0 0.0
    %696 = vmatprep.subr.mxu0 0.0
    %697 = vmatpush1.msra.mxu0 0.0
    %698 = vmatprep.subr.mxu0 0.0
    %699 = vmatpush1.msra.mxu0 0.0
    %700 = vmatprep.subr.mxu0 0.0
    %701 = vmatpush1.msra.mxu0 0.0
    %702 = vmatprep.subr.mxu0 0.0
    %703 = vmatpush1.msra.mxu0 0.0
    %704 = vmatprep.subr.mxu0 0.0
    %705 = vmatpush1.msra.mxu0 0.0
    %706 = vmatprep.subr.mxu0 0.0
    %707 = vmatpush1.msra.mxu0 0.0
    %708 = vmatprep.subr.mxu0 0.0
    %709 = vmatpush1.msra.mxu0 0.0
    %710 = vmatprep.subr.mxu0 0.0
    %711 = vmatpush1.msra.mxu0 0.0
    %712 = vmatprep.subr.mxu0 0.0
    %713 = vmatpush1.msra.mxu0 0.0
    %714 = vmatprep.subr.mxu0 0.0
    %715 = vmatpush1.msra.mxu0 0.0
    %716 = vmatprep.subr.mxu0 0.0
    %717 = vmatpush1.msra.mxu0 0.0
    %718 = vmatprep.subr.mxu0 0.0
    %719 = vmatpush1.msra.mxu0 0.0
    %720 = vmatprep.subr.mxu0 0.0
    %721 = vmatpush1.msra.mxu0 0.0
    %722 = vmatprep.subr.mxu0 0.0
    %723 = vmatpush1.msra.mxu0 0.0
    %724 = vmatprep.subr.mxu0 0.0
    %725 = vmatpush1.msra.mxu0 0.0
    %726 = vmatprep.subr.mxu0 0.0
    %727 = vmatpush1.msra.mxu0 0.0
    %728 = vmatprep.subr.mxu0 0.0
    %729 = vmatpush1.msra.mxu0 0.0
    %730 = vmatprep.subr.mxu0 0.0
    %731 = vmatpush1.msra.mxu0 0.0
    %732 = vmatprep.subr.mxu0 0.0
    %733 = vmatpush1.msra.mxu0 0.0
    %734 = vmatprep.subr.mxu0 0.0
    %735 = vmatpush1.msra.mxu0 0.0
    %736 = vmatprep.subr.mxu0 0.0
    %737 = vmatpush1.msra.mxu0 0.0
    %738 = vmatprep.subr.mxu0 0.0
    %739 = vmatpush1.msra.mxu0 0.0
    %740 = vmatprep.subr.mxu0 0.0
    %741 = vmatpush1.msra.mxu0 0.0
    %742 = vmatprep.mubr.f32.mxu0 0.0
    %743 = vmatmul.mubr.f32.gmra.mrb[0].mxu0 %v676
    %v744 = vpop.f32.mrb[0].mxu0
    %v745 = vadd.f32 0.0, %v744
    %v746 = vpop.f32.mrb[0].mxu0
    %747 = vdwg.mxu0
    %v748 = vadd.f32 %v160, %v745
    %v749 = vxor.u32 %v748, 2147483648
    %v750 = vmul.f32 %v749, 1.442695
    %v751 = vpow.pop %v750
    %v752 = vadd.f32 %v751, 1.0
    %v753 = vrcp.pop %v752
    %v754 = vmul.f32 1.0, %v753
    %v755 = vtanh.pop %v748
    %v756 = vmul.f32 %v754, 0.0
    %758 = vrot.lane.b32.xlu0 %v755, 64
    %v759 = vpop.permute.xlu0 %758
    %v761 = vmul.f32 %v754, %v759
    %763 = vrot.lane.b32.xlu0 %v761, 32
    %v764 = vpop.permute.xlu0 %763
    %v766 = vadd.f32 %v756, %v764
    %v767 = vtanh.pop %v766
    %769 = vrot.lane.b32.xlu0 %v767, 64
    %v770 = vpop.permute.xlu0 %769
    %v772 = vmul.f32 %v754, %v770
    %774 = vrot.lane.b32.xlu0 %v772, 32
    %v775 = vpop.permute.xlu0 %774
    %v776 = vsel %vm674, %v775, 0
    %778 = vmatprep.subr.mxu0 0.0
    %779 = vmatpush1.msra.mxu0 %v78
    %780 = vmatprep.subr.mxu0 0.0
    %781 = vmatpush1.msra.mxu0 %v79
    %782 = vmatprep.subr.mxu0 0.0
    %783 = vmatpush1.msra.mxu0 %v80
    %784 = vmatprep.subr.mxu0 0.0
    %785 = vmatpush1.msra.mxu0 %v81
    %786 = vmatprep.subr.mxu0 0.0
    %787 = vmatpush1.msra.mxu0 0.0
    %788 = vmatprep.subr.mxu0 0.0
    %789 = vmatpush1.msra.mxu0 0.0
    %790 = vmatprep.subr.mxu0 0.0
    %791 = vmatpush1.msra.mxu0 0.0
    %792 = vmatprep.subr.mxu0 0.0
    %793 = vmatpush1.msra.mxu0 0.0
    %794 = vmatprep.subr.mxu0 0.0
    %795 = vmatpush1.msra.mxu0 0.0
    %796 = vmatprep.subr.mxu0 0.0
    %797 = vmatpush1.msra.mxu0 0.0
    %798 = vmatprep.subr.mxu0 0.0
    %799 = vmatpush1.msra.mxu0 0.0
    %800 = vmatprep.subr.mxu0 0.0
    %801 = vmatpush1.msra.mxu0 0.0
    %802 = vmatprep.subr.mxu0 0.0
    %803 = vmatpush1.msra.mxu0 0.0
    %804 = vmatprep.subr.mxu0 0.0
    %805 = vmatpush1.msra.mxu0 0.0
    %806 = vmatprep.subr.mxu0 0.0
    %807 = vmatpush1.msra.mxu0 0.0
    %808 = vmatprep.subr.mxu0 0.0
    %809 = vmatpush1.msra.mxu0 0.0
    %810 = vmatprep.subr.mxu0 0.0
    %811 = vmatpush1.msra.mxu0 0.0
    %812 = vmatprep.subr.mxu0 0.0
    %813 = vmatpush1.msra.mxu0 0.0
    %814 = vmatprep.subr.mxu0 0.0
    %815 = vmatpush1.msra.mxu0 0.0
    %816 = vmatprep.subr.mxu0 0.0
    %817 = vmatpush1.msra.mxu0 0.0
    %818 = vmatprep.subr.mxu0 0.0
    %819 = vmatpush1.msra.mxu0 0.0
    %820 = vmatprep.subr.mxu0 0.0
    %821 = vmatpush1.msra.mxu0 0.0
    %822 = vmatprep.subr.mxu0 0.0
    %823 = vmatpush1.msra.mxu0 0.0
    %824 = vmatprep.subr.mxu0 0.0
    %825 = vmatpush1.msra.mxu0 0.0
    %826 = vmatprep.subr.mxu0 0.0
    %827 = vmatpush1.msra.mxu0 0.0
    %828 = vmatprep.subr.mxu0 0.0
    %829 = vmatpush1.msra.mxu0 0.0
    %830 = vmatprep.subr.mxu0 0.0
    %831 = vmatpush1.msra.mxu0 0.0
    %832 = vmatprep.subr.mxu0 0.0
    %833 = vmatpush1.msra.mxu0 0.0
    %834 = vmatprep.subr.mxu0 0.0
    %835 = vmatpush1.msra.mxu0 0.0
    %836 = vmatprep.subr.mxu0 0.0
    %837 = vmatpush1.msra.mxu0 0.0
    %838 = vmatprep.subr.mxu0 0.0
    %839 = vmatpush1.msra.mxu0 0.0
    %840 = vmatprep.subr.mxu0 0.0
    %841 = vmatpush1.msra.mxu0 0.0
    %842 = vmatprep.mubr.f32.mxu0 0.0
    %843 = vmatmul.mubr.f32.gmra.mrb[0].mxu0 %v776
    %v844 = vpop.f32.mrb[0].mxu0
    %v845 = vadd.f32 0.0, %v844
    %v846 = vpop.f32.mrb[0].mxu0
    %847 = vdwg.mxu0
    %v848 = vadd.f32 %v233, %v845
    %v849 = vxor.u32 %v848, 2147483648
    %v850 = vmul.f32 %v849, 1.442695
    %v851 = vpow.pop %v850
    %v852 = vadd.f32 %v851, 1.0
    %v853 = vrcp.pop %v852
    %v854 = vmul.f32 1.0, %v853
    %v855 = vtanh.pop %v848
    %v856 = vmul.f32 %v854, %v766
    %858 = vrot.lane.b32.xlu0 %v855, 64
    %v859 = vpop.permute.xlu0 %858
    %v861 = vmul.f32 %v854, %v859
    %863 = vrot.lane.b32.xlu0 %v861, 32
    %v864 = vpop.permute.xlu0 %863
    %v866 = vadd.f32 %v856, %v864
    %v867 = vtanh.pop %v866
    %869 = vrot.lane.b32.xlu0 %v867, 64
    %v870 = vpop.permute.xlu0 %869
    %v872 = vmul.f32 %v854, %v870
    %874 = vrot.lane.b32.xlu0 %v872, 32
    %v875 = vpop.permute.xlu0 %874
    %v876 = vsel %vm674, %v875, 0
    %878 = vmatprep.subr.mxu0 0.0
    %879 = vmatpush1.msra.mxu0 %v78
    %880 = vmatprep.subr.mxu0 0.0
    %881 = vmatpush1.msra.mxu0 %v79
    %882 = vmatprep.subr.mxu0 0.0
    %883 = vmatpush1.msra.mxu0 %v80
    %884 = vmatprep.subr.mxu0 0.0
    %885 = vmatpush1.msra.mxu0 %v81
    %886 = vmatprep.subr.mxu0 0.0
    %887 = vmatpush1.msra.mxu0 0.0
    %888 = vmatprep.subr.mxu0 0.0
    %889 = vmatpush1.msra.mxu0 0.0
    %890 = vmatprep.subr.mxu0 0.0
    %891 = vmatpush1.msra.mxu0 0.0
    %892 = vmatprep.subr.mxu0 0.0
    %893 = vmatpush1.msra.mxu0 0.0
    %894 = vmatprep.subr.mxu0 0.0
    %895 = vmatpush1.msra.mxu0 0.0
    %896 = vmatprep.subr.mxu0 0.0
    %897 = vmatpush1.msra.mxu0 0.0
    %898 = vmatprep.subr.mxu0 0.0
    %899 = vmatpush1.msra.mxu0 0.0
    %900 = vmatprep.subr.mxu0 0.0
    %901 = vmatpush1.msra.mxu0 0.0
    %902 = vmatprep.subr.mxu0 0.0
    %903 = vmatpush1.msra.mxu0 0.0
    %904 = vmatprep.subr.mxu0 0.0
    %905 = vmatpush1.msra.mxu0 0.0
    %906 = vmatprep.subr.mxu0 0.0
    %907 = vmatpush1.msra.mxu0 0.0
    %908 = vmatprep.subr.mxu0 0.0
    %909 = vmatpush1.msra.mxu0 0.0
    %910 = vmatprep.subr.mxu0 0.0
    %911 = vmatpush1.msra.mxu0 0.0
    %912 = vmatprep.subr.mxu0 0.0
    %913 = vmatpush1.msra.mxu0 0.0
    %914 = vmatprep.subr.mxu0 0.0
    %915 = vmatpush1.msra.mxu0 0.0
    %916 = vmatprep.subr.mxu0 0.0
    %917 = vmatpush1.msra.mxu0 0.0
    %918 = vmatprep.subr.mxu0 0.0
    %919 = vmatpush1.msra.mxu0 0.0
    %920 = vmatprep.subr.mxu0 0.0
    %921 = vmatpush1.msra.mxu0 0.0
    %922 = vmatprep.subr.mxu0 0.0
    %923 = vmatpush1.msra.mxu0 0.0
    %924 = vmatprep.subr.mxu0 0.0
    %925 = vmatpush1.msra.mxu0 0.0
    %926 = vmatprep.subr.mxu0 0.0
    %927 = vmatpush1.msra.mxu0 0.0
    %928 = vmatprep.subr.mxu0 0.0
    %929 = vmatpush1.msra.mxu0 0.0
    %930 = vmatprep.subr.mxu0 0.0
    %931 = vmatpush1.msra.mxu0 0.0
    %932 = vmatprep.subr.mxu0 0.0
    %933 = vmatpush1.msra.mxu0 0.0
    %934 = vmatprep.subr.mxu0 0.0
    %935 = vmatpush1.msra.mxu0 0.0
    %936 = vmatprep.subr.mxu0 0.0
    %937 = vmatpush1.msra.mxu0 0.0
    %938 = vmatprep.subr.mxu0 0.0
    %939 = vmatpush1.msra.mxu0 0.0
    %940 = vmatprep.subr.mxu0 0.0
    %941 = vmatpush1.msra.mxu0 0.0
    %942 = vmatprep.mubr.f32.mxu0 0.0
    %943 = vmatmul.mubr.f32.gmra.mrb[0].mxu0 %v876
    %v944 = vpop.f32.mrb[0].mxu0
    %v945 = vadd.f32 0.0, %v944
    %v946 = vpop.f32.mrb[0].mxu0
    %947 = vdwg.mxu0
    %v948 = vadd.f32 %v306, %v945
    %v949 = vxor.u32 %v948, 2147483648
    %v950 = vmul.f32 %v949, 1.442695
    %v951 = vpow.pop %v950
    %v952 = vadd.f32 %v951, 1.0
    %v953 = vrcp.pop %v952
    %v954 = vmul.f32 1.0, %v953
    %v955 = vtanh.pop %v948
    %v956 = vmul.f32 %v954, %v866
    %958 = vrot.lane.b32.xlu0 %v955, 64
    %v959 = vpop.permute.xlu0 %958
    %v961 = vmul.f32 %v954, %v959
    %963 = vrot.lane.b32.xlu0 %v961, 32
    %v964 = vpop.permute.xlu0 %963
    %v966 = vadd.f32 %v956, %v964
    %v967 = vtanh.pop %v966
    %969 = vrot.lane.b32.xlu0 %v967, 64
    %v970 = vpop.permute.xlu0 %969
    %v972 = vmul.f32 %v954, %v970
    %974 = vrot.lane.b32.xlu0 %v972, 32
    %v975 = vpop.permute.xlu0 %974
    %v976 = vsel %vm674, %v975, 0
    %978 = vmatprep.subr.mxu0 0.0
    %979 = vmatpush1.msra.mxu0 %v78
    %980 = vmatprep.subr.mxu0 0.0
    %981 = vmatpush1.msra.mxu0 %v79
    %982 = vmatprep.subr.mxu0 0.0
    %983 = vmatpush1.msra.mxu0 %v80
    %984 = vmatprep.subr.mxu0 0.0
    %985 = vmatpush1.msra.mxu0 %v81
    %986 = vmatprep.subr.mxu0 0.0
    %987 = vmatpush1.msra.mxu0 0.0
    %988 = vmatprep.subr.mxu0 0.0
    %989 = vmatpush1.msra.mxu0 0.0
    %990 = vmatprep.subr.mxu0 0.0
    %991 = vmatpush1.msra.mxu0 0.0
    %992 = vmatprep.subr.mxu0 0.0
    %993 = vmatpush1.msra.mxu0 0.0
    %994 = vmatprep.subr.mxu0 0.0
    %995 = vmatpush1.msra.mxu0 0.0
    %996 = vmatprep.subr.mxu0 0.0
    %997 = vmatpush1.msra.mxu0 0.0
    %998 = vmatprep.subr.mxu0 0.0
    %999 = vmatpush1.msra.mxu0 0.0
    %1000 = vmatprep.subr.mxu0 0.0
    %1001 = vmatpush1.msra.mxu0 0.0
    %1002 = vmatprep.subr.mxu0 0.0
    %1003 = vmatpush1.msra.mxu0 0.0
    %1004 = vmatprep.subr.mxu0 0.0
    %1005 = vmatpush1.msra.mxu0 0.0
    %1006 = vmatprep.subr.mxu0 0.0
    %1007 = vmatpush1.msra.mxu0 0.0
    %1008 = vmatprep.subr.mxu0 0.0
    %1009 = vmatpush1.msra.mxu0 0.0
    %1010 = vmatprep.subr.mxu0 0.0
    %1011 = vmatpush1.msra.mxu0 0.0
    %1012 = vmatprep.subr.mxu0 0.0
    %1013 = vmatpush1.msra.mxu0 0.0
    %1014 = vmatprep.subr.mxu0 0.0
    %1015 = vmatpush1.msra.mxu0 0.0
    %1016 = vmatprep.subr.mxu0 0.0
    %1017 = vmatpush1.msra.mxu0 0.0
    %1018 = vmatprep.subr.mxu0 0.0
    %1019 = vmatpush1.msra.mxu0 0.0
    %1020 = vmatprep.subr.mxu0 0.0
    %1021 = vmatpush1.msra.mxu0 0.0
    %1022 = vmatprep.subr.mxu0 0.0
    %1023 = vmatpush1.msra.mxu0 0.0
    %1024 = vmatprep.subr.mxu0 0.0
    %1025 = vmatpush1.msra.mxu0 0.0
    %1026 = vmatprep.subr.mxu0 0.0
    %1027 = vmatpush1.msra.mxu0 0.0
    %1028 = vmatprep.subr.mxu0 0.0
    %1029 = vmatpush1.msra.mxu0 0.0
    %1030 = vmatprep.subr.mxu0 0.0
    %1031 = vmatpush1.msra.mxu0 0.0
    %1032 = vmatprep.subr.mxu0 0.0
    %1033 = vmatpush1.msra.mxu0 0.0
    %1034 = vmatprep.subr.mxu0 0.0
    %1035 = vmatpush1.msra.mxu0 0.0
    %1036 = vmatprep.subr.mxu0 0.0
    %1037 = vmatpush1.msra.mxu0 0.0
    %1038 = vmatprep.subr.mxu0 0.0
    %1039 = vmatpush1.msra.mxu0 0.0
    %1040 = vmatprep.subr.mxu0 0.0
    %1041 = vmatpush1.msra.mxu0 0.0
    %1042 = vmatprep.mubr.f32.mxu0 0.0
    %1043 = vmatmul.mubr.f32.gmra.mrb[0].mxu0 %v976
    %v1044 = vpop.f32.mrb[0].mxu0
    %v1045 = vadd.f32 0.0, %v1044
    %v1046 = vpop.f32.mrb[0].mxu0
    %1047 = vdwg.mxu0
    %v1048 = vadd.f32 %v379, %v1045
    %v1049 = vxor.u32 %v1048, 2147483648
    %v1050 = vmul.f32 %v1049, 1.442695
    %v1051 = vpow.pop %v1050
    %v1052 = vadd.f32 %v1051, 1.0
    %v1053 = vrcp.pop %v1052
    %v1054 = vmul.f32 1.0, %v1053
    %v1055 = vtanh.pop %v1048
    %v1056 = vmul.f32 %v1054, %v966
    %1058 = vrot.lane.b32.xlu0 %v1055, 64
    %v1059 = vpop.permute.xlu0 %1058
    %v1061 = vmul.f32 %v1054, %v1059
    %1063 = vrot.lane.b32.xlu0 %v1061, 32
    %v1064 = vpop.permute.xlu0 %1063
    %v1066 = vadd.f32 %v1056, %v1064
    %v1067 = vtanh.pop %v1066
    %1069 = vrot.lane.b32.xlu0 %v1067, 64
    %v1070 = vpop.permute.xlu0 %1069
    %v1072 = vmul.f32 %v1054, %v1070
    %1074 = vrot.lane.b32.xlu0 %v1072, 32
    %v1075 = vpop.permute.xlu0 %1074
    %v1076 = vsel %vm674, %v1075, 0
    %1078 = vmatprep.subr.mxu0 0.0
    %1079 = vmatpush1.msra.mxu0 %v78
    %1080 = vmatprep.subr.mxu0 0.0
    %1081 = vmatpush1.msra.mxu0 %v79
    %1082 = vmatprep.subr.mxu0 0.0
    %1083 = vmatpush1.msra.mxu0 %v80
    %1084 = vmatprep.subr.mxu0 0.0
    %1085 = vmatpush1.msra.mxu0 %v81
    %1086 = vmatprep.subr.mxu0 0.0
    %1087 = vmatpush1.msra.mxu0 0.0
    %1088 = vmatprep.subr.mxu0 0.0
    %1089 = vmatpush1.msra.mxu0 0.0
    %1090 = vmatprep.subr.mxu0 0.0
    %1091 = vmatpush1.msra.mxu0 0.0
    %1092 = vmatprep.subr.mxu0 0.0
    %1093 = vmatpush1.msra.mxu0 0.0
    %1094 = vmatprep.subr.mxu0 0.0
    %1095 = vmatpush1.msra.mxu0 0.0
    %1096 = vmatprep.subr.mxu0 0.0
    %1097 = vmatpush1.msra.mxu0 0.0
    %1098 = vmatprep.subr.mxu0 0.0
    %1099 = vmatpush1.msra.mxu0 0.0
    %1100 = vmatprep.subr.mxu0 0.0
    %1101 = vmatpush1.msra.mxu0 0.0
    %1102 = vmatprep.subr.mxu0 0.0
    %1103 = vmatpush1.msra.mxu0 0.0
    %1104 = vmatprep.subr.mxu0 0.0
    %1105 = vmatpush1.msra.mxu0 0.0
    %1106 = vmatprep.subr.mxu0 0.0
    %1107 = vmatpush1.msra.mxu0 0.0
    %1108 = vmatprep.subr.mxu0 0.0
    %1109 = vmatpush1.msra.mxu0 0.0
    %1110 = vmatprep.subr.mxu0 0.0
    %1111 = vmatpush1.msra.mxu0 0.0
    %1112 = vmatprep.subr.mxu0 0.0
    %1113 = vmatpush1.msra.mxu0 0.0
    %1114 = vmatprep.subr.mxu0 0.0
    %1115 = vmatpush1.msra.mxu0 0.0
    %1116 = vmatprep.subr.mxu0 0.0
    %1117 = vmatpush1.msra.mxu0 0.0
    %1118 = vmatprep.subr.mxu0 0.0
    %1119 = vmatpush1.msra.mxu0 0.0
    %1120 = vmatprep.subr.mxu0 0.0
    %1121 = vmatpush1.msra.mxu0 0.0
    %1122 = vmatprep.subr.mxu0 0.0
    %1123 = vmatpush1.msra.mxu0 0.0
    %1124 = vmatprep.subr.mxu0 0.0
    %1125 = vmatpush1.msra.mxu0 0.0
    %1126 = vmatprep.subr.mxu0 0.0
    %1127 = vmatpush1.msra.mxu0 0.0
    %1128 = vmatprep.subr.mxu0 0.0
    %1129 = vmatpush1.msra.mxu0 0.0
    %1130 = vmatprep.subr.mxu0 0.0
    %1131 = vmatpush1.msra.mxu0 0.0
    %1132 = vmatprep.subr.mxu0 0.0
    %1133 = vmatpush1.msra.mxu0 0.0
    %1134 = vmatprep.subr.mxu0 0.0
    %1135 = vmatpush1.msra.mxu0 0.0
    %1136 = vmatprep.subr.mxu0 0.0
    %1137 = vmatpush1.msra.mxu0 0.0
    %1138 = vmatprep.subr.mxu0 0.0
    %1139 = vmatpush1.msra.mxu0 0.0
    %1140 = vmatprep.subr.mxu0 0.0
    %1141 = vmatpush1.msra.mxu0 0.0
    %1142 = vmatprep.mubr.f32.mxu0 0.0
    %1143 = vmatmul.mubr.f32.gmra.mrb[0].mxu0 %v1076
    %v1144 = vpop.f32.mrb[0].mxu0
    %v1145 = vadd.f32 0.0, %v1144
    %v1146 = vpop.f32.mrb[0].mxu0
    %1147 = vdwg.mxu0
    %v1148 = vadd.f32 %v452, %v1145
    %v1149 = vxor.u32 %v1148, 2147483648
    %v1150 = vmul.f32 %v1149, 1.442695
    %v1151 = vpow.pop %v1150
    %v1152 = vadd.f32 %v1151, 1.0
    %v1153 = vrcp.pop %v1152
    %v1154 = vmul.f32 1.0, %v1153
    %v1155 = vtanh.pop %v1148
    %v1156 = vmul.f32 %v1154, %v1066
    %1158 = vrot.lane.b32.xlu0 %v1155, 64
    %v1159 = vpop.permute.xlu0 %1158
    %v1161 = vmul.f32 %v1154, %v1159
    %1163 = vrot.lane.b32.xlu0 %v1161, 32
    %v1164 = vpop.permute.xlu0 %1163
    %v1166 = vadd.f32 %v1156, %v1164
    %v1167 = vtanh.pop %v1166
    %1169 = vrot.lane.b32.xlu0 %v1167, 64
    %v1170 = vpop.permute.xlu0 %1169
    %v1172 = vmul.f32 %v1154, %v1170
    %1174 = vrot.lane.b32.xlu0 %v1172, 32
    %v1175 = vpop.permute.xlu0 %1174
    %v1176 = vsel %vm674, %v1175, 0
    %1178 = vmatprep.subr.mxu0 0.0
    %1179 = vmatpush1.msra.mxu0 %v78
    %1180 = vmatprep.subr.mxu0 0.0
    %1181 = vmatpush1.msra.mxu0 %v79
    %1182 = vmatprep.subr.mxu0 0.0
    %1183 = vmatpush1.msra.mxu0 %v80
    %1184 = vmatprep.subr.mxu0 0.0
    %1185 = vmatpush1.msra.mxu0 %v81
    %1186 = vmatprep.subr.mxu0 0.0
    %1187 = vmatpush1.msra.mxu0 0.0
    %1188 = vmatprep.subr.mxu0 0.0
    %1189 = vmatpush1.msra.mxu0 0.0
    %1190 = vmatprep.subr.mxu0 0.0
    %1191 = vmatpush1.msra.mxu0 0.0
    %1192 = vmatprep.subr.mxu0 0.0
    %1193 = vmatpush1.msra.mxu0 0.0
    %1194 = vmatprep.subr.mxu0 0.0
    %1195 = vmatpush1.msra.mxu0 0.0
    %1196 = vmatprep.subr.mxu0 0.0
    %1197 = vmatpush1.msra.mxu0 0.0
    %1198 = vmatprep.subr.mxu0 0.0
    %1199 = vmatpush1.msra.mxu0 0.0
    %1200 = vmatprep.subr.mxu0 0.0
    %1201 = vmatpush1.msra.mxu0 0.0
    %1202 = vmatprep.subr.mxu0 0.0
    %1203 = vmatpush1.msra.mxu0 0.0
    %1204 = vmatprep.subr.mxu0 0.0
    %1205 = vmatpush1.msra.mxu0 0.0
    %1206 = vmatprep.subr.mxu0 0.0
    %1207 = vmatpush1.msra.mxu0 0.0
    %1208 = vmatprep.subr.mxu0 0.0
    %1209 = vmatpush1.msra.mxu0 0.0
    %1210 = vmatprep.subr.mxu0 0.0
    %1211 = vmatpush1.msra.mxu0 0.0
    %1212 = vmatprep.subr.mxu0 0.0
    %1213 = vmatpush1.msra.mxu0 0.0
    %1214 = vmatprep.subr.mxu0 0.0
    %1215 = vmatpush1.msra.mxu0 0.0
    %1216 = vmatprep.subr.mxu0 0.0
    %1217 = vmatpush1.msra.mxu0 0.0
    %1218 = vmatprep.subr.mxu0 0.0
    %1219 = vmatpush1.msra.mxu0 0.0
    %1220 = vmatprep.subr.mxu0 0.0
    %1221 = vmatpush1.msra.mxu0 0.0
    %1222 = vmatprep.subr.mxu0 0.0
    %1223 = vmatpush1.msra.mxu0 0.0
    %1224 = vmatprep.subr.mxu0 0.0
    %1225 = vmatpush1.msra.mxu0 0.0
    %1226 = vmatprep.subr.mxu0 0.0
    %1227 = vmatpush1.msra.mxu0 0.0
    %1228 = vmatprep.subr.mxu0 0.0
    %1229 = vmatpush1.msra.mxu0 0.0
    %1230 = vmatprep.subr.mxu0 0.0
    %1231 = vmatpush1.msra.mxu0 0.0
    %1232 = vmatprep.subr.mxu0 0.0
    %1233 = vmatpush1.msra.mxu0 0.0
    %1234 = vmatprep.subr.mxu0 0.0
    %1235 = vmatpush1.msra.mxu0 0.0
    %1236 = vmatprep.subr.mxu0 0.0
    %1237 = vmatpush1.msra.mxu0 0.0
    %1238 = vmatprep.subr.mxu0 0.0
    %1239 = vmatpush1.msra.mxu0 0.0
    %1240 = vmatprep.subr.mxu0 0.0
    %1241 = vmatpush1.msra.mxu0 0.0
    %1242 = vmatprep.mubr.f32.mxu0 0.0
    %1243 = vmatmul.mubr.f32.gmra.mrb[0].mxu0 %v1176
    %v1244 = vpop.f32.mrb[0].mxu0
    %v1245 = vadd.f32 0.0, %v1244
    %v1246 = vpop.f32.mrb[0].mxu0
    %1247 = vdwg.mxu0
    %v1248 = vadd.f32 %v525, %v1245
    %v1249 = vxor.u32 %v1248, 2147483648
    %v1250 = vmul.f32 %v1249, 1.442695
    %v1251 = vpow.pop %v1250
    %v1252 = vadd.f32 %v1251, 1.0
    %v1253 = vrcp.pop %v1252
    %v1254 = vmul.f32 1.0, %v1253
    %v1255 = vtanh.pop %v1248
    %v1256 = vmul.f32 %v1254, %v1166
    %1258 = vrot.lane.b32.xlu0 %v1255, 64
    %v1259 = vpop.permute.xlu0 %1258
    %v1261 = vmul.f32 %v1254, %v1259
    %1263 = vrot.lane.b32.xlu0 %v1261, 32
    %v1264 = vpop.permute.xlu0 %1263
    %v1266 = vadd.f32 %v1256, %v1264
    %v1267 = vtanh.pop %v1266
    %1269 = vrot.lane.b32.xlu0 %v1267, 64
    %v1270 = vpop.permute.xlu0 %1269
    %v1272 = vmul.f32 %v1254, %v1270
    %1274 = vrot.lane.b32.xlu0 %v1272, 32
    %v1275 = vpop.permute.xlu0 %1274
    %v1276 = vsel %vm674, %v1275, 0
    %1278 = vmatprep.subr.mxu0 0.0
    %1279 = vmatpush1.msra.mxu0 %v78
    %1280 = vmatprep.subr.mxu0 0.0
    %1281 = vmatpush1.msra.mxu0 %v79
    %1282 = vmatprep.subr.mxu0 0.0
    %1283 = vmatpush1.msra.mxu0 %v80
    %1284 = vmatprep.subr.mxu0 0.0
    %1285 = vmatpush1.msra.mxu0 %v81
    %1286 = vmatprep.subr.mxu0 0.0
    %1287 = vmatpush1.msra.mxu0 0.0
    %1288 = vmatprep.subr.mxu0 0.0
    %1289 = vmatpush1.msra.mxu0 0.0
    %1290 = vmatprep.subr.mxu0 0.0
    %1291 = vmatpush1.msra.mxu0 0.0
    %1292 = vmatprep.subr.mxu0 0.0
    %1293 = vmatpush1.msra.mxu0 0.0
    %1294 = vmatprep.subr.mxu0 0.0
    %1295 = vmatpush1.msra.mxu0 0.0
    %1296 = vmatprep.subr.mxu0 0.0
    %1297 = vmatpush1.msra.mxu0 0.0
    %1298 = vmatprep.subr.mxu0 0.0
    %1299 = vmatpush1.msra.mxu0 0.0
    %1300 = vmatprep.subr.mxu0 0.0
    %1301 = vmatpush1.msra.mxu0 0.0
    %1302 = vmatprep.subr.mxu0 0.0
    %1303 = vmatpush1.msra.mxu0 0.0
    %1304 = vmatprep.subr.mxu0 0.0
    %1305 = vmatpush1.msra.mxu0 0.0
    %1306 = vmatprep.subr.mxu0 0.0
    %1307 = vmatpush1.msra.mxu0 0.0
    %1308 = vmatprep.subr.mxu0 0.0
    %1309 = vmatpush1.msra.mxu0 0.0
    %1310 = vmatprep.subr.mxu0 0.0
    %1311 = vmatpush1.msra.mxu0 0.0
    %1312 = vmatprep.subr.mxu0 0.0
    %1313 = vmatpush1.msra.mxu0 0.0
    %1314 = vmatprep.subr.mxu0 0.0
    %1315 = vmatpush1.msra.mxu0 0.0
    %1316 = vmatprep.subr.mxu0 0.0
    %1317 = vmatpush1.msra.mxu0 0.0
    %1318 = vmatprep.subr.mxu0 0.0
    %1319 = vmatpush1.msra.mxu0 0.0
    %1320 = vmatprep.subr.mxu0 0.0
    %1321 = vmatpush1.msra.mxu0 0.0
    %1322 = vmatprep.subr.mxu0 0.0
    %1323 = vmatpush1.msra.mxu0 0.0
    %1324 = vmatprep.subr.mxu0 0.0
    %1325 = vmatpush1.msra.mxu0 0.0
    %1326 = vmatprep.subr.mxu0 0.0
    %1327 = vmatpush1.msra.mxu0 0.0
    %1328 = vmatprep.subr.mxu0 0.0
    %1329 = vmatpush1.msra.mxu0 0.0
    %1330 = vmatprep.subr.mxu0 0.0
    %1331 = vmatpush1.msra.mxu0 0.0
    %1332 = vmatprep.subr.mxu0 0.0
    %1333 = vmatpush1.msra.mxu0 0.0
    %1334 = vmatprep.subr.mxu0 0.0
    %1335 = vmatpush1.msra.mxu0 0.0
    %1336 = vmatprep.subr.mxu0 0.0
    %1337 = vmatpush1.msra.mxu0 0.0
    %1338 = vmatprep.subr.mxu0 0.0
    %1339 = vmatpush1.msra.mxu0 0.0
    %1340 = vmatprep.subr.mxu0 0.0
    %1341 = vmatpush1.msra.mxu0 0.0
    %1342 = vmatprep.mubr.f32.mxu0 0.0
    %1343 = vmatmul.mubr.f32.gmra.mrb[0].mxu0 %v1276
    %v1344 = vpop.f32.mrb[0].mxu0
    %v1345 = vadd.f32 0.0, %v1344
    %v1346 = vpop.f32.mrb[0].mxu0
    %1347 = vdwg.mxu0
    %v1348 = vadd.f32 %v598, %v1345
    %v1349 = vxor.u32 %v1348, 2147483648
    %v1350 = vmul.f32 %v1349, 1.442695
    %v1351 = vpow.pop %v1350
    %v1352 = vadd.f32 %v1351, 1.0
    %v1353 = vrcp.pop %v1352
    %v1354 = vmul.f32 1.0, %v1353
    %v1355 = vtanh.pop %v1348
    %v1356 = vmul.f32 %v1354, %v1266
    %1358 = vrot.lane.b32.xlu0 %v1355, 64
    %v1359 = vpop.permute.xlu0 %1358
    %v1361 = vmul.f32 %v1354, %v1359
    %1363 = vrot.lane.b32.xlu0 %v1361, 32
    %v1364 = vpop.permute.xlu0 %1363
    %v1366 = vadd.f32 %v1356, %v1364
    %v1367 = vtanh.pop %v1366
    %1369 = vrot.lane.b32.xlu0 %v1367, 64
    %v1370 = vpop.permute.xlu0 %1369
    %v1372 = vmul.f32 %v1354, %v1370
    %1374 = vrot.lane.b32.xlu0 %v1372, 32
    %v1375 = vpop.permute.xlu0 %1374
    %v1376 = vsel %vm674, %v1375, 0
    %1378 = vmatprep.subr.mxu0 0.0
    %1379 = vmatpush1.msra.mxu0 %v78
    %1380 = vmatprep.subr.mxu0 0.0
    %1381 = vmatpush1.msra.mxu0 %v79
    %1382 = vmatprep.subr.mxu0 0.0
    %1383 = vmatpush1.msra.mxu0 %v80
    %1384 = vmatprep.subr.mxu0 0.0
    %1385 = vmatpush1.msra.mxu0 %v81
    %1386 = vmatprep.subr.mxu0 0.0
    %1387 = vmatpush1.msra.mxu0 0.0
    %1388 = vmatprep.subr.mxu0 0.0
    %1389 = vmatpush1.msra.mxu0 0.0
    %1390 = vmatprep.subr.mxu0 0.0
    %1391 = vmatpush1.msra.mxu0 0.0
    %1392 = vmatprep.subr.mxu0 0.0
    %1393 = vmatpush1.msra.mxu0 0.0
    %1394 = vmatprep.subr.mxu0 0.0
    %1395 = vmatpush1.msra.mxu0 0.0
    %1396 = vmatprep.subr.mxu0 0.0
    %1397 = vmatpush1.msra.mxu0 0.0
    %1398 = vmatprep.subr.mxu0 0.0
    %1399 = vmatpush1.msra.mxu0 0.0
    %1400 = vmatprep.subr.mxu0 0.0
    %1401 = vmatpush1.msra.mxu0 0.0
    %1402 = vmatprep.subr.mxu0 0.0
    %1403 = vmatpush1.msra.mxu0 0.0
    %1404 = vmatprep.subr.mxu0 0.0
    %1405 = vmatpush1.msra.mxu0 0.0
    %1406 = vmatprep.subr.mxu0 0.0
    %1407 = vmatpush1.msra.mxu0 0.0
    %1408 = vmatprep.subr.mxu0 0.0
    %1409 = vmatpush1.msra.mxu0 0.0
    %1410 = vmatprep.subr.mxu0 0.0
    %1411 = vmatpush1.msra.mxu0 0.0
    %1412 = vmatprep.subr.mxu0 0.0
    %1413 = vmatpush1.msra.mxu0 0.0
    %1414 = vmatprep.subr.mxu0 0.0
    %1415 = vmatpush1.msra.mxu0 0.0
    %1416 = vmatprep.subr.mxu0 0.0
    %1417 = vmatpush1.msra.mxu0 0.0
    %1418 = vmatprep.subr.mxu0 0.0
    %1419 = vmatpush1.msra.mxu0 0.0
    %1420 = vmatprep.subr.mxu0 0.0
    %1421 = vmatpush1.msra.mxu0 0.0
    %1422 = vmatprep.subr.mxu0 0.0
    %1423 = vmatpush1.msra.mxu0 0.0
    %1424 = vmatprep.subr.mxu0 0.0
    %1425 = vmatpush1.msra.mxu0 0.0
    %1426 = vmatprep.subr.mxu0 0.0
    %1427 = vmatpush1.msra.mxu0 0.0
    %1428 = vmatprep.subr.mxu0 0.0
    %1429 = vmatpush1.msra.mxu0 0.0
    %1430 = vmatprep.subr.mxu0 0.0
    %1431 = vmatpush1.msra.mxu0 0.0
    %1432 = vmatprep.subr.mxu0 0.0
    %1433 = vmatpush1.msra.mxu0 0.0
    %1434 = vmatprep.subr.mxu0 0.0
    %1435 = vmatpush1.msra.mxu0 0.0
    %1436 = vmatprep.subr.mxu0 0.0
    %1437 = vmatpush1.msra.mxu0 0.0
    %1438 = vmatprep.subr.mxu0 0.0
    %1439 = vmatpush1.msra.mxu0 0.0
    %1440 = vmatprep.subr.mxu0 0.0
    %1441 = vmatpush1.msra.mxu0 0.0
    %1442 = vmatprep.mubr.f32.mxu0 0.0
    %1443 = vmatmul.mubr.f32.gmra.mrb[0].mxu0 %v1376
    %v1444 = vpop.f32.mrb[0].mxu0
    %v1445 = vadd.f32 0.0, %v1444
    %v1446 = vpop.f32.mrb[0].mxu0
    %1447 = vdwg.mxu0
    %v1448 = vadd.f32 %v671, %v1445
    %v1449 = vxor.u32 %v1448, 2147483648
    %v1450 = vmul.f32 %v1449, 1.442695
    %v1451 = vpow.pop %v1450
    %v1452 = vadd.f32 %v1451, 1.0
    %v1453 = vrcp.pop %v1452
    %v1454 = vmul.f32 1.0, %v1453
    %v1455 = vtanh.pop %v1448
    %v1456 = vmul.f32 %v1454, %v1366
    %1458 = vrot.lane.b32.xlu0 %v1455, 64
    %v1459 = vpop.permute.xlu0 %1458
    %v1461 = vmul.f32 %v1454, %v1459
    %1463 = vrot.lane.b32.xlu0 %v1461, 32
    %v1464 = vpop.permute.xlu0 %1463
    %v1466 = vadd.f32 %v1456, %v1464
    %v1467 = vtanh.pop %v1466
    %1469 = vrot.lane.b32.xlu0 %v1467, 64
    %v1470 = vpop.permute.xlu0 %1469
    %v1472 = vmul.f32 %v1454, %v1470
    %v1473 = vld [vmem:[%s4] sm:$0xff]
    %v1474 = vld [vmem:[%s4 + $0x8] sm:$0xff]
    %v1475 = vld [vmem:[%s4 + $0x10] sm:$0xff]
    %v1476 = vld [vmem:[%s4 + $0x18] sm:$0xff]
    %v1477 = vld [vmem:[#allocation5] sm:$0xff]
    %v1478 = vld [vmem:[#allocation5 + $0x8] sm:$0xff]
    %v1479 = vld [vmem:[#allocation5 + $0x10] sm:$0xff]
    %v1480 = vld [vmem:[#allocation5 + $0x18] sm:$0xff]
    %v1481 = vld [vmem:[%s6] sm:$0x1]
    %v1483 = vlaneseq
    %v1484 = vshrl.u32 %v1483, 7
    %v1485 = vsub.s32 0, %v1484
    %v1486 = vrot.slane %v1481, %v1485
    %1488 = vmatprep.subr.mxu0 0.0
    %1489 = vmatpush1.msra.mxu0 %v1473
    %1490 = vmatprep.subr.mxu0 0.0
    %1491 = vmatpush1.msra.mxu0 %v1474
    %1492 = vmatprep.subr.mxu0 0.0
    %1493 = vmatpush1.msra.mxu0 %v1475
    %1494 = vmatprep.subr.mxu0 0.0
    %1495 = vmatpush1.msra.mxu0 %v1476
    %1496 = vmatprep.subr.mxu0 0.0
    %1497 = vmatpush1.msra.mxu0 0.0
    %1498 = vmatprep.subr.mxu0 0.0
    %1499 = vmatpush1.msra.mxu0 0.0
    %1500 = vmatprep.subr.mxu0 0.0
    %1501 = vmatpush1.msra.mxu0 0.0
    %1502 = vmatprep.subr.mxu0 0.0
    %1503 = vmatpush1.msra.mxu0 0.0
    %1504 = vmatprep.subr.mxu0 0.0
    %1505 = vmatpush1.msra.mxu0 0.0
    %1506 = vmatprep.subr.mxu0 0.0
    %1507 = vmatpush1.msra.mxu0 0.0
    %1508 = vmatprep.subr.mxu0 0.0
    %1509 = vmatpush1.msra.mxu0 0.0
    %1510 = vmatprep.subr.mxu0 0.0
    %1511 = vmatpush1.msra.mxu0 0.0
    %1512 = vmatprep.subr.mxu0 0.0
    %1513 = vmatpush1.msra.mxu0 0.0
    %1514 = vmatprep.subr.mxu0 0.0
    %1515 = vmatpush1.msra.mxu0 0.0
    %1516 = vmatprep.subr.mxu0 0.0
    %1517 = vmatpush1.msra.mxu0 0.0
    %1518 = vmatprep.subr.mxu0 0.0
    %1519 = vmatpush1.msra.mxu0 0.0
    %1520 = vmatprep.subr.mxu0 0.0
    %1521 = vmatpush1.msra.mxu0 0.0
    %1522 = vmatprep.subr.mxu0 0.0
    %1523 = vmatpush1.msra.mxu0 0.0
    %1524 = vmatprep.subr.mxu0 0.0
    %1525 = vmatpush1.msra.mxu0 0.0
    %1526 = vmatprep.subr.mxu0 0.0
    %1527 = vmatpush1.msra.mxu0 0.0
    %1528 = vmatprep.subr.mxu0 0.0
    %1529 = vmatpush1.msra.mxu0 0.0
    %1530 = vmatprep.subr.mxu0 0.0
    %1531 = vmatpush1.msra.mxu0 0.0
    %1532 = vmatprep.subr.mxu0 0.0
    %1533 = vmatpush1.msra.mxu0 0.0
    %1534 = vmatprep.subr.mxu0 0.0
    %1535 = vmatpush1.msra.mxu0 0.0
    %1536 = vmatprep.subr.mxu0 0.0
    %1537 = vmatpush1.msra.mxu0 0.0
    %1538 = vmatprep.subr.mxu0 0.0
    %1539 = vmatpush1.msra.mxu0 0.0
    %1540 = vmatprep.subr.mxu0 0.0
    %1541 = vmatpush1.msra.mxu0 0.0
    %1542 = vmatprep.subr.mxu0 0.0
    %1543 = vmatpush1.msra.mxu0 0.0
    %1544 = vmatprep.subr.mxu0 0.0
    %1545 = vmatpush1.msra.mxu0 0.0
    %1546 = vmatprep.subr.mxu0 0.0
    %1547 = vmatpush1.msra.mxu0 0.0
    %1548 = vmatprep.subr.mxu0 0.0
    %1549 = vmatpush1.msra.mxu0 0.0
    %1550 = vmatprep.subr.mxu0 0.0
    %1551 = vmatpush1.msra.mxu0 0.0
    %1552 = vmatprep.mubr.f32.mxu0 0.0
    %1553 = vmatmul.mubr.f32.gmra.mrb[0].mxu0 %v776
    %v1554 = vpop.f32.mrb[0].mxu0
    %v1555 = vadd.f32 %v1486, %v1554
    %v1556 = vpop.f32.mrb[0].mxu0
    %1557 = vdwg.mxu0
    %1558 = vmatprep.subr.mxu0 0.0
    %1559 = vmatpush1.msra.mxu0 %v1473
    %1560 = vmatprep.subr.mxu0 0.0
    %1561 = vmatpush1.msra.mxu0 %v1474
    %1562 = vmatprep.subr.mxu0 0.0
    %1563 = vmatpush1.msra.mxu0 %v1475
    %1564 = vmatprep.subr.mxu0 0.0
    %1565 = vmatpush1.msra.mxu0 %v1476
    %1566 = vmatprep.subr.mxu0 0.0
    %1567 = vmatpush1.msra.mxu0 0.0
    %1568 = vmatprep.subr.mxu0 0.0
    %1569 = vmatpush1.msra.mxu0 0.0
    %1570 = vmatprep.subr.mxu0 0.0
    %1571 = vmatpush1.msra.mxu0 0.0
    %1572 = vmatprep.subr.mxu0 0.0
    %1573 = vmatpush1.msra.mxu0 0.0
    %1574 = vmatprep.subr.mxu0 0.0
    %1575 = vmatpush1.msra.mxu0 0.0
    %1576 = vmatprep.subr.mxu0 0.0
    %1577 = vmatpush1.msra.mxu0 0.0
    %1578 = vmatprep.subr.mxu0 0.0
    %1579 = vmatpush1.msra.mxu0 0.0
    %1580 = vmatprep.subr.mxu0 0.0
    %1581 = vmatpush1.msra.mxu0 0.0
    %1582 = vmatprep.subr.mxu0 0.0
    %1583 = vmatpush1.msra.mxu0 0.0
    %1584 = vmatprep.subr.mxu0 0.0
    %1585 = vmatpush1.msra.mxu0 0.0
    %1586 = vmatprep.subr.mxu0 0.0
    %1587 = vmatpush1.msra.mxu0 0.0
    %1588 = vmatprep.subr.mxu0 0.0
    %1589 = vmatpush1.msra.mxu0 0.0
    %1590 = vmatprep.subr.mxu0 0.0
    %1591 = vmatpush1.msra.mxu0 0.0
    %1592 = vmatprep.subr.mxu0 0.0
    %1593 = vmatpush1.msra.mxu0 0.0
    %1594 = vmatprep.subr.mxu0 0.0
    %1595 = vmatpush1.msra.mxu0 0.0
    %1596 = vmatprep.subr.mxu0 0.0
    %1597 = vmatpush1.msra.mxu0 0.0
    %1598 = vmatprep.subr.mxu0 0.0
    %1599 = vmatpush1.msra.mxu0 0.0
    %1600 = vmatprep.subr.mxu0 0.0
    %1601 = vmatpush1.msra.mxu0 0.0
    %1602 = vmatprep.subr.mxu0 0.0
    %1603 = vmatpush1.msra.mxu0 0.0
    %1604 = vmatprep.subr.mxu0 0.0
    %1605 = vmatpush1.msra.mxu0 0.0
    %1606 = vmatprep.subr.mxu0 0.0
    %1607 = vmatpush1.msra.mxu0 0.0
    %1608 = vmatprep.subr.mxu0 0.0
    %1609 = vmatpush1.msra.mxu0 0.0
    %1610 = vmatprep.subr.mxu0 0.0
    %1611 = vmatpush1.msra.mxu0 0.0
    %1612 = vmatprep.subr.mxu0 0.0
    %1613 = vmatpush1.msra.mxu0 0.0
    %1614 = vmatprep.subr.mxu0 0.0
    %1615 = vmatpush1.msra.mxu0 0.0
    %1616 = vmatprep.subr.mxu0 0.0
    %1617 = vmatpush1.msra.mxu0 0.0
    %1618 = vmatprep.subr.mxu0 0.0
    %1619 = vmatpush1.msra.mxu0 0.0
    %1620 = vmatprep.subr.mxu0 0.0
    %1621 = vmatpush1.msra.mxu0 0.0
    %1622 = vmatprep.mubr.f32.mxu0 0.0
    %1623 = vmatmul.mubr.f32.gmra.mrb[0].mxu0 %v876
    %v1624 = vpop.f32.mrb[0].mxu0
    %v1625 = vadd.f32 %v1486, %v1624
    %v1626 = vpop.f32.mrb[0].mxu0
    %1627 = vdwg.mxu0
    %1628 = vmatprep.subr.mxu0 0.0
    %1629 = vmatpush1.msra.mxu0 %v1473
    %1630 = vmatprep.subr.mxu0 0.0
    %1631 = vmatpush1.msra.mxu0 %v1474
    %1632 = vmatprep.subr.mxu0 0.0
    %1633 = vmatpush1.msra.mxu0 %v1475
    %1634 = vmatprep.subr.mxu0 0.0
    %1635 = vmatpush1.msra.mxu0 %v1476
    %1636 = vmatprep.subr.mxu0 0.0
    %1637 = vmatpush1.msra.mxu0 0.0
    %1638 = vmatprep.subr.mxu0 0.0
    %1639 = vmatpush1.msra.mxu0 0.0
    %1640 = vmatprep.subr.mxu0 0.0
    %1641 = vmatpush1.msra.mxu0 0.0
    %1642 = vmatprep.subr.mxu0 0.0
    %1643 = vmatpush1.msra.mxu0 0.0
    %1644 = vmatprep.subr.mxu0 0.0
    %1645 = vmatpush1.msra.mxu0 0.0
    %1646 = vmatprep.subr.mxu0 0.0
    %1647 = vmatpush1.msra.mxu0 0.0
    %1648 = vmatprep.subr.mxu0 0.0
    %1649 = vmatpush1.msra.mxu0 0.0
    %1650 = vmatprep.subr.mxu0 0.0
    %1651 = vmatpush1.msra.mxu0 0.0
    %1652 = vmatprep.subr.mxu0 0.0
    %1653 = vmatpush1.msra.mxu0 0.0
    %1654 = vmatprep.subr.mxu0 0.0
    %1655 = vmatpush1.msra.mxu0 0.0
    %1656 = vmatprep.subr.mxu0 0.0
    %1657 = vmatpush1.msra.mxu0 0.0
    %1658 = vmatprep.subr.mxu0 0.0
    %1659 = vmatpush1.msra.mxu0 0.0
    %1660 = vmatprep.subr.mxu0 0.0
    %1661 = vmatpush1.msra.mxu0 0.0
    %1662 = vmatprep.subr.mxu0 0.0
    %1663 = vmatpush1.msra.mxu0 0.0
    %1664 = vmatprep.subr.mxu0 0.0
    %1665 = vmatpush1.msra.mxu0 0.0
    %1666 = vmatprep.subr.mxu0 0.0
    %1667 = vmatpush1.msra.mxu0 0.0
    %1668 = vmatprep.subr.mxu0 0.0
    %1669 = vmatpush1.msra.mxu0 0.0
    %1670 = vmatprep.subr.mxu0 0.0
    %1671 = vmatpush1.msra.mxu0 0.0
    %1672 = vmatprep.subr.mxu0 0.0
    %1673 = vmatpush1.msra.mxu0 0.0
    %1674 = vmatprep.subr.mxu0 0.0
    %1675 = vmatpush1.msra.mxu0 0.0
    %1676 = vmatprep.subr.mxu0 0.0
    %1677 = vmatpush1.msra.mxu0 0.0
    %1678 = vmatprep.subr.mxu0 0.0
    %1679 = vmatpush1.msra.mxu0 0.0
    %1680 = vmatprep.subr.mxu0 0.0
    %1681 = vmatpush1.msra.mxu0 0.0
    %1682 = vmatprep.subr.mxu0 0.0
    %1683 = vmatpush1.msra.mxu0 0.0
    %1684 = vmatprep.subr.mxu0 0.0
    %1685 = vmatpush1.msra.mxu0 0.0
    %1686 = vmatprep.subr.mxu0 0.0
    %1687 = vmatpush1.msra.mxu0 0.0
    %1688 = vmatprep.subr.mxu0 0.0
    %1689 = vmatpush1.msra.mxu0 0.0
    %1690 = vmatprep.subr.mxu0 0.0
    %1691 = vmatpush1.msra.mxu0 0.0
    %1692 = vmatprep.mubr.f32.mxu0 0.0
    %1693 = vmatmul.mubr.f32.gmra.mrb[0].mxu0 %v976
    %v1694 = vpop.f32.mrb[0].mxu0
    %v1695 = vadd.f32 %v1486, %v1694
    %v1696 = vpop.f32.mrb[0].mxu0
    %1697 = vdwg.mxu0
    %1698 = vmatprep.subr.mxu0 0.0
    %1699 = vmatpush1.msra.mxu0 %v1473
    %1700 = vmatprep.subr.mxu0 0.0
    %1701 = vmatpush1.msra.mxu0 %v1474
    %1702 = vmatprep.subr.mxu0 0.0
    %1703 = vmatpush1.msra.mxu0 %v1475
    %1704 = vmatprep.subr.mxu0 0.0
    %1705 = vmatpush1.msra.mxu0 %v1476
    %1706 = vmatprep.subr.mxu0 0.0
    %1707 = vmatpush1.msra.mxu0 0.0
    %1708 = vmatprep.subr.mxu0 0.0
    %1709 = vmatpush1.msra.mxu0 0.0
    %1710 = vmatprep.subr.mxu0 0.0
    %1711 = vmatpush1.msra.mxu0 0.0
    %1712 = vmatprep.subr.mxu0 0.0
    %1713 = vmatpush1.msra.mxu0 0.0
    %1714 = vmatprep.subr.mxu0 0.0
    %1715 = vmatpush1.msra.mxu0 0.0
    %1716 = vmatprep.subr.mxu0 0.0
    %1717 = vmatpush1.msra.mxu0 0.0
    %1718 = vmatprep.subr.mxu0 0.0
    %1719 = vmatpush1.msra.mxu0 0.0
    %1720 = vmatprep.subr.mxu0 0.0
    %1721 = vmatpush1.msra.mxu0 0.0
    %1722 = vmatprep.subr.mxu0 0.0
    %1723 = vmatpush1.msra.mxu0 0.0
    %1724 = vmatprep.subr.mxu0 0.0
    %1725 = vmatpush1.msra.mxu0 0.0
    %1726 = vmatprep.subr.mxu0 0.0
    %1727 = vmatpush1.msra.mxu0 0.0
    %1728 = vmatprep.subr.mxu0 0.0
    %1729 = vmatpush1.msra.mxu0 0.0
    %1730 = vmatprep.subr.mxu0 0.0
    %1731 = vmatpush1.msra.mxu0 0.0
    %1732 = vmatprep.subr.mxu0 0.0
    %1733 = vmatpush1.msra.mxu0 0.0
    %1734 = vmatprep.subr.mxu0 0.0
    %1735 = vmatpush1.msra.mxu0 0.0
    %1736 = vmatprep.subr.mxu0 0.0
    %1737 = vmatpush1.msra.mxu0 0.0
    %1738 = vmatprep.subr.mxu0 0.0
    %1739 = vmatpush1.msra.mxu0 0.0
    %1740 = vmatprep.subr.mxu0 0.0
    %1741 = vmatpush1.msra.mxu0 0.0
    %1742 = vmatprep.subr.mxu0 0.0
    %1743 = vmatpush1.msra.mxu0 0.0
    %1744 = vmatprep.subr.mxu0 0.0
    %1745 = vmatpush1.msra.mxu0 0.0
    %1746 = vmatprep.subr.mxu0 0.0
    %1747 = vmatpush1.msra.mxu0 0.0
    %1748 = vmatprep.subr.mxu0 0.0
    %1749 = vmatpush1.msra.mxu0 0.0
    %1750 = vmatprep.subr.mxu0 0.0
    %1751 = vmatpush1.msra.mxu0 0.0
    %1752 = vmatprep.subr.mxu0 0.0
    %1753 = vmatpush1.msra.mxu0 0.0
    %1754 = vmatprep.subr.mxu0 0.0
    %1755 = vmatpush1.msra.mxu0 0.0
    %1756 = vmatprep.subr.mxu0 0.0
    %1757 = vmatpush1.msra.mxu0 0.0
    %1758 = vmatprep.subr.mxu0 0.0
    %1759 = vmatpush1.msra.mxu0 0.0
    %1760 = vmatprep.subr.mxu0 0.0
    %1761 = vmatpush1.msra.mxu0 0.0
    %1762 = vmatprep.mubr.f32.mxu0 0.0
    %1763 = vmatmul.mubr.f32.gmra.mrb[0].mxu0 %v1076
    %v1764 = vpop.f32.mrb[0].mxu0
    %v1765 = vadd.f32 %v1486, %v1764
    %v1766 = vpop.f32.mrb[0].mxu0
    %1767 = vdwg.mxu0
    %1768 = vmatprep.subr.mxu0 0.0
    %1769 = vmatpush1.msra.mxu0 %v1473
    %1770 = vmatprep.subr.mxu0 0.0
    %1771 = vmatpush1.msra.mxu0 %v1474
    %1772 = vmatprep.subr.mxu0 0.0
    %1773 = vmatpush1.msra.mxu0 %v1475
    %1774 = vmatprep.subr.mxu0 0.0
    %1775 = vmatpush1.msra.mxu0 %v1476
    %1776 = vmatprep.subr.mxu0 0.0
    %1777 = vmatpush1.msra.mxu0 0.0
    %1778 = vmatprep.subr.mxu0 0.0
    %1779 = vmatpush1.msra.mxu0 0.0
    %1780 = vmatprep.subr.mxu0 0.0
    %1781 = vmatpush1.msra.mxu0 0.0
    %1782 = vmatprep.subr.mxu0 0.0
    %1783 = vmatpush1.msra.mxu0 0.0
    %1784 = vmatprep.subr.mxu0 0.0
    %1785 = vmatpush1.msra.mxu0 0.0
    %1786 = vmatprep.subr.mxu0 0.0
    %1787 = vmatpush1.msra.mxu0 0.0
    %1788 = vmatprep.subr.mxu0 0.0
    %1789 = vmatpush1.msra.mxu0 0.0
    %1790 = vmatprep.subr.mxu0 0.0
    %1791 = vmatpush1.msra.mxu0 0.0
    %1792 = vmatprep.subr.mxu0 0.0
    %1793 = vmatpush1.msra.mxu0 0.0
    %1794 = vmatprep.subr.mxu0 0.0
    %1795 = vmatpush1.msra.mxu0 0.0
    %1796 = vmatprep.subr.mxu0 0.0
    %1797 = vmatpush1.msra.mxu0 0.0
    %1798 = vmatprep.subr.mxu0 0.0
    %1799 = vmatpush1.msra.mxu0 0.0
    %1800 = vmatprep.subr.mxu0 0.0
    %1801 = vmatpush1.msra.mxu0 0.0
    %1802 = vmatprep.subr.mxu0 0.0
    %1803 = vmatpush1.msra.mxu0 0.0
    %1804 = vmatprep.subr.mxu0 0.0
    %1805 = vmatpush1.msra.mxu0 0.0
    %1806 = vmatprep.subr.mxu0 0.0
    %1807 = vmatpush1.msra.mxu0 0.0
    %1808 = vmatprep.subr.mxu0 0.0
    %1809 = vmatpush1.msra.mxu0 0.0
    %1810 = vmatprep.subr.mxu0 0.0
    %1811 = vmatpush1.msra.mxu0 0.0
    %1812 = vmatprep.subr.mxu0 0.0
    %1813 = vmatpush1.msra.mxu0 0.0
    %1814 = vmatprep.subr.mxu0 0.0
    %1815 = vmatpush1.msra.mxu0 0.0
    %1816 = vmatprep.subr.mxu0 0.0
    %1817 = vmatpush1.msra.mxu0 0.0
    %1818 = vmatprep.subr.mxu0 0.0
    %1819 = vmatpush1.msra.mxu0 0.0
    %1820 = vmatprep.subr.mxu0 0.0
    %1821 = vmatpush1.msra.mxu0 0.0
    %1822 = vmatprep.subr.mxu0 0.0
    %1823 = vmatpush1.msra.mxu0 0.0
    %1824 = vmatprep.subr.mxu0 0.0
    %1825 = vmatpush1.msra.mxu0 0.0
    %1826 = vmatprep.subr.mxu0 0.0
    %1827 = vmatpush1.msra.mxu0 0.0
    %1828 = vmatprep.subr.mxu0 0.0
    %1829 = vmatpush1.msra.mxu0 0.0
    %1830 = vmatprep.subr.mxu0 0.0
    %1831 = vmatpush1.msra.mxu0 0.0
    %1832 = vmatprep.mubr.f32.mxu0 0.0
    %1833 = vmatmul.mubr.f32.gmra.mrb[0].mxu0 %v1176
    %v1834 = vpop.f32.mrb[0].mxu0
    %v1835 = vadd.f32 %v1486, %v1834
    %v1836 = vpop.f32.mrb[0].mxu0
    %1837 = vdwg.mxu0
    %1838 = vmatprep.subr.mxu0 0.0
    %1839 = vmatpush1.msra.mxu0 %v1473
    %1840 = vmatprep.subr.mxu0 0.0
    %1841 = vmatpush1.msra.mxu0 %v1474
    %1842 = vmatprep.subr.mxu0 0.0
    %1843 = vmatpush1.msra.mxu0 %v1475
    %1844 = vmatprep.subr.mxu0 0.0
    %1845 = vmatpush1.msra.mxu0 %v1476
    %1846 = vmatprep.subr.mxu0 0.0
    %1847 = vmatpush1.msra.mxu0 0.0
    %1848 = vmatprep.subr.mxu0 0.0
    %1849 = vmatpush1.msra.mxu0 0.0
    %1850 = vmatprep.subr.mxu0 0.0
    %1851 = vmatpush1.msra.mxu0 0.0
    %1852 = vmatprep.subr.mxu0 0.0
    %1853 = vmatpush1.msra.mxu0 0.0
    %1854 = vmatprep.subr.mxu0 0.0
    %1855 = vmatpush1.msra.mxu0 0.0
    %1856 = vmatprep.subr.mxu0 0.0
    %1857 = vmatpush1.msra.mxu0 0.0
    %1858 = vmatprep.subr.mxu0 0.0
    %1859 = vmatpush1.msra.mxu0 0.0
    %1860 = vmatprep.subr.mxu0 0.0
    %1861 = vmatpush1.msra.mxu0 0.0
    %1862 = vmatprep.subr.mxu0 0.0
    %1863 = vmatpush1.msra.mxu0 0.0
    %1864 = vmatprep.subr.mxu0 0.0
    %1865 = vmatpush1.msra.mxu0 0.0
    %1866 = vmatprep.subr.mxu0 0.0
    %1867 = vmatpush1.msra.mxu0 0.0
    %1868 = vmatprep.subr.mxu0 0.0
    %1869 = vmatpush1.msra.mxu0 0.0
    %1870 = vmatprep.subr.mxu0 0.0
    %1871 = vmatpush1.msra.mxu0 0.0
    %1872 = vmatprep.subr.mxu0 0.0
    %1873 = vmatpush1.msra.mxu0 0.0
    %1874 = vmatprep.subr.mxu0 0.0
    %1875 = vmatpush1.msra.mxu0 0.0
    %1876 = vmatprep.subr.mxu0 0.0
    %1877 = vmatpush1.msra.mxu0 0.0
    %1878 = vmatprep.subr.mxu0 0.0
    %1879 = vmatpush1.msra.mxu0 0.0
    %1880 = vmatprep.subr.mxu0 0.0
    %1881 = vmatpush1.msra.mxu0 0.0
    %1882 = vmatprep.subr.mxu0 0.0
    %1883 = vmatpush1.msra.mxu0 0.0
    %1884 = vmatprep.subr.mxu0 0.0
    %1885 = vmatpush1.msra.mxu0 0.0
    %1886 = vmatprep.subr.mxu0 0.0
    %1887 = vmatpush1.msra.mxu0 0.0
    %1888 = vmatprep.subr.mxu0 0.0
    %1889 = vmatpush1.msra.mxu0 0.0
    %1890 = vmatprep.subr.mxu0 0.0
    %1891 = vmatpush1.msra.mxu0 0.0
    %1892 = vmatprep.subr.mxu0 0.0
    %1893 = vmatpush1.msra.mxu0 0.0
    %1894 = vmatprep.subr.mxu0 0.0
    %1895 = vmatpush1.msra.mxu0 0.0
    %1896 = vmatprep.subr.mxu0 0.0
    %1897 = vmatpush1.msra.mxu0 0.0
    %1898 = vmatprep.subr.mxu0 0.0
    %1899 = vmatpush1.msra.mxu0 0.0
    %1900 = vmatprep.subr.mxu0 0.0
    %1901 = vmatpush1.msra.mxu0 0.0
    %1902 = vmatprep.mubr.f32.mxu0 0.0
    %1903 = vmatmul.mubr.f32.gmra.mrb[0].mxu0 %v1276
    %v1904 = vpop.f32.mrb[0].mxu0
    %v1905 = vadd.f32 %v1486, %v1904
    %v1906 = vpop.f32.mrb[0].mxu0
    %1907 = vdwg.mxu0
    %1908 = vmatprep.subr.mxu0 0.0
    %1909 = vmatpush1.msra.mxu0 %v1473
    %1910 = vmatprep.subr.mxu0 0.0
    %1911 = vmatpush1.msra.mxu0 %v1474
    %1912 = vmatprep.subr.mxu0 0.0
    %1913 = vmatpush1.msra.mxu0 %v1475
    %1914 = vmatprep.subr.mxu0 0.0
    %1915 = vmatpush1.msra.mxu0 %v1476
    %1916 = vmatprep.subr.mxu0 0.0
    %1917 = vmatpush1.msra.mxu0 0.0
    %1918 = vmatprep.subr.mxu0 0.0
    %1919 = vmatpush1.msra.mxu0 0.0
    %1920 = vmatprep.subr.mxu0 0.0
    %1921 = vmatpush1.msra.mxu0 0.0
    %1922 = vmatprep.subr.mxu0 0.0
    %1923 = vmatpush1.msra.mxu0 0.0
    %1924 = vmatprep.subr.mxu0 0.0
    %1925 = vmatpush1.msra.mxu0 0.0
    %1926 = vmatprep.subr.mxu0 0.0
    %1927 = vmatpush1.msra.mxu0 0.0
    %1928 = vmatprep.subr.mxu0 0.0
    %1929 = vmatpush1.msra.mxu0 0.0
    %1930 = vmatprep.subr.mxu0 0.0
    %1931 = vmatpush1.msra.mxu0 0.0
    %1932 = vmatprep.subr.mxu0 0.0
    %1933 = vmatpush1.msra.mxu0 0.0
    %1934 = vmatprep.subr.mxu0 0.0
    %1935 = vmatpush1.msra.mxu0 0.0
    %1936 = vmatprep.subr.mxu0 0.0
    %1937 = vmatpush1.msra.mxu0 0.0
    %1938 = vmatprep.subr.mxu0 0.0
    %1939 = vmatpush1.msra.mxu0 0.0
    %1940 = vmatprep.subr.mxu0 0.0
    %1941 = vmatpush1.msra.mxu0 0.0
    %1942 = vmatprep.subr.mxu0 0.0
    %1943 = vmatpush1.msra.mxu0 0.0
    %1944 = vmatprep.subr.mxu0 0.0
    %1945 = vmatpush1.msra.mxu0 0.0
    %1946 = vmatprep.subr.mxu0 0.0
    %1947 = vmatpush1.msra.mxu0 0.0
    %1948 = vmatprep.subr.mxu0 0.0
    %1949 = vmatpush1.msra.mxu0 0.0
    %1950 = vmatprep.subr.mxu0 0.0
    %1951 = vmatpush1.msra.mxu0 0.0
    %1952 = vmatprep.subr.mxu0 0.0
    %1953 = vmatpush1.msra.mxu0 0.0
    %1954 = vmatprep.subr.mxu0 0.0
    %1955 = vmatpush1.msra.mxu0 0.0
    %1956 = vmatprep.subr.mxu0 0.0
    %1957 = vmatpush1.msra.mxu0 0.0
    %1958 = vmatprep.subr.mxu0 0.0
    %1959 = vmatpush1.msra.mxu0 0.0
    %1960 = vmatprep.subr.mxu0 0.0
    %1961 = vmatpush1.msra.mxu0 0.0
    %1962 = vmatprep.subr.mxu0 0.0
    %1963 = vmatpush1.msra.mxu0 0.0
    %1964 = vmatprep.subr.mxu0 0.0
    %1965 = vmatpush1.msra.mxu0 0.0
    %1966 = vmatprep.subr.mxu0 0.0
    %1967 = vmatpush1.msra.mxu0 0.0
    %1968 = vmatprep.subr.mxu0 0.0
    %1969 = vmatpush1.msra.mxu0 0.0
    %1970 = vmatprep.subr.mxu0 0.0
    %1971 = vmatpush1.msra.mxu0 0.0
    %1972 = vmatprep.mubr.f32.mxu0 0.0
    %1973 = vmatmul.mubr.f32.gmra.mrb[0].mxu0 %v1376
    %v1974 = vpop.f32.mrb[0].mxu0
    %v1975 = vadd.f32 %v1486, %v1974
    %v1976 = vpop.f32.mrb[0].mxu0
    %1977 = vdwg.mxu0
    %1979 = vrot.lane.b32.xlu0 %v1472, 32
    %v1980 = vpop.permute.xlu0 %1979
    %v1981 = vsel %vm674, %v1980, 0
    %1983 = vmatprep.subr.mxu0 0.0
    %1984 = vmatpush1.msra.mxu0 %v1473
    %1985 = vmatprep.subr.mxu0 0.0
    %1986 = vmatpush1.msra.mxu0 %v1474
    %1987 = vmatprep.subr.mxu0 0.0
    %1988 = vmatpush1.msra.mxu0 %v1475
    %1989 = vmatprep.subr.mxu0 0.0
    %1990 = vmatpush1.msra.mxu0 %v1476
    %1991 = vmatprep.subr.mxu0 0.0
    %1992 = vmatpush1.msra.mxu0 0.0
    %1993 = vmatprep.subr.mxu0 0.0
    %1994 = vmatpush1.msra.mxu0 0.0
    %1995 = vmatprep.subr.mxu0 0.0
    %1996 = vmatpush1.msra.mxu0 0.0
    %1997 = vmatprep.subr.mxu0 0.0
    %1998 = vmatpush1.msra.mxu0 0.0
    %1999 = vmatprep.subr.mxu0 0.0
    %2000 = vmatpush1.msra.mxu0 0.0
    %2001 = vmatprep.subr.mxu0 0.0
    %2002 = vmatpush1.msra.mxu0 0.0
    %2003 = vmatprep.subr.mxu0 0.0
    %2004 = vmatpush1.msra.mxu0 0.0
    %2005 = vmatprep.subr.mxu0 0.0
    %2006 = vmatpush1.msra.mxu0 0.0
    %2007 = vmatprep.subr.mxu0 0.0
    %2008 = vmatpush1.msra.mxu0 0.0
    %2009 = vmatprep.subr.mxu0 0.0
    %2010 = vmatpush1.msra.mxu0 0.0
    %2011 = vmatprep.subr.mxu0 0.0
    %2012 = vmatpush1.msra.mxu0 0.0
    %2013 = vmatprep.subr.mxu0 0.0
    %2014 = vmatpush1.msra.mxu0 0.0
    %2015 = vmatprep.subr.mxu0 0.0
    %2016 = vmatpush1.msra.mxu0 0.0
    %2017 = vmatprep.subr.mxu0 0.0
    %2018 = vmatpush1.msra.mxu0 0.0
    %2019 = vmatprep.subr.mxu0 0.0
    %2020 = vmatpush1.msra.mxu0 0.0
    %2021 = vmatprep.subr.mxu0 0.0
    %2022 = vmatpush1.msra.mxu0 0.0
    %2023 = vmatprep.subr.mxu0 0.0
    %2024 = vmatpush1.msra.mxu0 0.0
    %2025 = vmatprep.subr.mxu0 0.0
    %2026 = vmatpush1.msra.mxu0 0.0
    %2027 = vmatprep.subr.mxu0 0.0
    %2028 = vmatpush1.msra.mxu0 0.0
    %2029 = vmatprep.subr.mxu0 0.0
    %2030 = vmatpush1.msra.mxu0 0.0
    %2031 = vmatprep.subr.mxu0 0.0
    %2032 = vmatpush1.msra.mxu0 0.0
    %2033 = vmatprep.subr.mxu0 0.0
    %2034 = vmatpush1.msra.mxu0 0.0
    %2035 = vmatprep.subr.mxu0 0.0
    %2036 = vmatpush1.msra.mxu0 0.0
    %2037 = vmatprep.subr.mxu0 0.0
    %2038 = vmatpush1.msra.mxu0 0.0
    %2039 = vmatprep.subr.mxu0 0.0
    %2040 = vmatpush1.msra.mxu0 0.0
    %2041 = vmatprep.subr.mxu0 0.0
    %2042 = vmatpush1.msra.mxu0 0.0
    %2043 = vmatprep.subr.mxu0 0.0
    %2044 = vmatpush1.msra.mxu0 0.0
    %2045 = vmatprep.subr.mxu0 0.0
    %2046 = vmatpush1.msra.mxu0 0.0
    %2047 = vmatprep.mubr.f32.mxu0 0.0
    %2048 = vmatmul.mubr.f32.gmra.mrb[0].mxu0 %v1981
    %v2049 = vpop.f32.mrb[0].mxu0
    %v2050 = vadd.f32 %v1486, %v2049
    %v2051 = vpop.f32.mrb[0].mxu0
    %2052 = vdwg.mxu0
    %2053 = vmatprep.subr.mxu0 0.0
    %2054 = vmatpush1.msra.mxu0 %v1477
    %2055 = vmatprep.subr.mxu0 0.0
    %2056 = vmatpush1.msra.mxu0 %v1478
    %2057 = vmatprep.subr.mxu0 0.0
    %2058 = vmatpush1.msra.mxu0 %v1479
    %2059 = vmatprep.subr.mxu0 0.0
    %2060 = vmatpush1.msra.mxu0 %v1480
    %2061 = vmatprep.subr.mxu0 0.0
    %2062 = vmatpush1.msra.mxu0 0.0
    %2063 = vmatprep.subr.mxu0 0.0
    %2064 = vmatpush1.msra.mxu0 0.0
    %2065 = vmatprep.subr.mxu0 0.0
    %2066 = vmatpush1.msra.mxu0 0.0
    %2067 = vmatprep.subr.mxu0 0.0
    %2068 = vmatpush1.msra.mxu0 0.0
    %2069 = vmatprep.subr.mxu0 0.0
    %2070 = vmatpush1.msra.mxu0 0.0
    %2071 = vmatprep.subr.mxu0 0.0
    %2072 = vmatpush1.msra.mxu0 0.0
    %2073 = vmatprep.subr.mxu0 0.0
    %2074 = vmatpush1.msra.mxu0 0.0
    %2075 = vmatprep.subr.mxu0 0.0
    %2076 = vmatpush1.msra.mxu0 0.0
    %2077 = vmatprep.subr.mxu0 0.0
    %2078 = vmatpush1.msra.mxu0 0.0
    %2079 = vmatprep.subr.mxu0 0.0
    %2080 = vmatpush1.msra.mxu0 0.0
    %2081 = vmatprep.subr.mxu0 0.0
    %2082 = vmatpush1.msra.mxu0 0.0
    %2083 = vmatprep.subr.mxu0 0.0
    %2084 = vmatpush1.msra.mxu0 0.0
    %2085 = vmatprep.subr.mxu0 0.0
    %2086 = vmatpush1.msra.mxu0 0.0
    %2087 = vmatprep.subr.mxu0 0.0
    %2088 = vmatpush1.msra.mxu0 0.0
    %2089 = vmatprep.subr.mxu0 0.0
    %2090 = vmatpush1.msra.mxu0 0.0
    %2091 = vmatprep.subr.mxu0 0.0
    %2092 = vmatpush1.msra.mxu0 0.0
    %2093 = vmatprep.subr.mxu0 0.0
    %2094 = vmatpush1.msra.mxu0 0.0
    %2095 = vmatprep.subr.mxu0 0.0
    %2096 = vmatpush1.msra.mxu0 0.0
    %2097 = vmatprep.subr.mxu0 0.0
    %2098 = vmatpush1.msra.mxu0 0.0
    %2099 = vmatprep.subr.mxu0 0.0
    %2100 = vmatpush1.msra.mxu0 0.0
    %2101 = vmatprep.subr.mxu0 0.0
    %2102 = vmatpush1.msra.mxu0 0.0
    %2103 = vmatprep.subr.mxu0 0.0
    %2104 = vmatpush1.msra.mxu0 0.0
    %2105 = vmatprep.subr.mxu0 0.0
    %2106 = vmatpush1.msra.mxu0 0.0
    %2107 = vmatprep.subr.mxu0 0.0
    %2108 = vmatpush1.msra.mxu0 0.0
    %2109 = vmatprep.subr.mxu0 0.0
    %2110 = vmatpush1.msra.mxu0 0.0
    %2111 = vmatprep.subr.mxu0 0.0
    %2112 = vmatpush1.msra.mxu0 0.0
    %2113 = vmatprep.subr.mxu0 0.0
    %2114 = vmatpush1.msra.mxu0 0.0
    %2115 = vmatprep.subr.mxu0 0.0
    %2116 = vmatpush1.msra.mxu0 0.0
    %2117 = vmatprep.mubr.f32.mxu0 0.0
    %2118 = vmatmul.mubr.f32.gmra.mrb[0].mxu0 %v676
    %v2119 = vpop.f32.mrb[0].mxu0
    %v2120 = vadd.f32 0.0, %v2119
    %v2121 = vpop.f32.mrb[0].mxu0
    %2122 = vdwg.mxu0
    %v2123 = vadd.f32 %v1555, %v2120
    %v2124 = vxor.u32 %v2123, 2147483648
    %v2125 = vmul.f32 %v2124, 1.442695
    %v2126 = vpow.pop %v2125
    %v2127 = vadd.f32 %v2126, 1.0
    %v2128 = vrcp.pop %v2127
    %v2129 = vmul.f32 1.0, %v2128
    %v2130 = vtanh.pop %v2123
    %v2131 = vmul.f32 %v2129, 0.0
    %2133 = vrot.lane.b32.xlu0 %v2130, 64
    %v2134 = vpop.permute.xlu0 %2133
    %v2136 = vmul.f32 %v2129, %v2134
    %2138 = vrot.lane.b32.xlu0 %v2136, 32
    %v2139 = vpop.permute.xlu0 %2138
    %v2141 = vadd.f32 %v2131, %v2139
    %v2142 = vtanh.pop %v2141
    %2144 = vrot.lane.b32.xlu0 %v2142, 64
    %v2145 = vpop.permute.xlu0 %2144
    %v2147 = vmul.f32 %v2129, %v2145
    %2149 = vrot.lane.b32.xlu0 %v2147, 32
    %v2150 = vpop.permute.xlu0 %2149
    %v2151 = vsel %vm674, %v2150, 0
    %2153 = vmatprep.subr.mxu0 0.0
    %2154 = vmatpush1.msra.mxu0 %v1477
    %2155 = vmatprep.subr.mxu0 0.0
    %2156 = vmatpush1.msra.mxu0 %v1478
    %2157 = vmatprep.subr.mxu0 0.0
    %2158 = vmatpush1.msra.mxu0 %v1479
    %2159 = vmatprep.subr.mxu0 0.0
    %2160 = vmatpush1.msra.mxu0 %v1480
    %2161 = vmatprep.subr.mxu0 0.0
    %2162 = vmatpush1.msra.mxu0 0.0
    %2163 = vmatprep.subr.mxu0 0.0
    %2164 = vmatpush1.msra.mxu0 0.0
    %2165 = vmatprep.subr.mxu0 0.0
    %2166 = vmatpush1.msra.mxu0 0.0
    %2167 = vmatprep.subr.mxu0 0.0
    %2168 = vmatpush1.msra.mxu0 0.0
    %2169 = vmatprep.subr.mxu0 0.0
    %2170 = vmatpush1.msra.mxu0 0.0
    %2171 = vmatprep.subr.mxu0 0.0
    %2172 = vmatpush1.msra.mxu0 0.0
    %2173 = vmatprep.subr.mxu0 0.0
    %2174 = vmatpush1.msra.mxu0 0.0
    %2175 = vmatprep.subr.mxu0 0.0
    %2176 = vmatpush1.msra.mxu0 0.0
    %2177 = vmatprep.subr.mxu0 0.0
    %2178 = vmatpush1.msra.mxu0 0.0
    %2179 = vmatprep.subr.mxu0 0.0
    %2180 = vmatpush1.msra.mxu0 0.0
    %2181 = vmatprep.subr.mxu0 0.0
    %2182 = vmatpush1.msra.mxu0 0.0
    %2183 = vmatprep.subr.mxu0 0.0
    %2184 = vmatpush1.msra.mxu0 0.0
    %2185 = vmatprep.subr.mxu0 0.0
    %2186 = vmatpush1.msra.mxu0 0.0
    %2187 = vmatprep.subr.mxu0 0.0
    %2188 = vmatpush1.msra.mxu0 0.0
    %2189 = vmatprep.subr.mxu0 0.0
    %2190 = vmatpush1.msra.mxu0 0.0
    %2191 = vmatprep.subr.mxu0 0.0
    %2192 = vmatpush1.msra.mxu0 0.0
    %2193 = vmatprep.subr.mxu0 0.0
    %2194 = vmatpush1.msra.mxu0 0.0
    %2195 = vmatprep.subr.mxu0 0.0
    %2196 = vmatpush1.msra.mxu0 0.0
    %2197 = vmatprep.subr.mxu0 0.0
    %2198 = vmatpush1.msra.mxu0 0.0
    %2199 = vmatprep.subr.mxu0 0.0
    %2200 = vmatpush1.msra.mxu0 0.0
    %2201 = vmatprep.subr.mxu0 0.0
    %2202 = vmatpush1.msra.mxu0 0.0
    %2203 = vmatprep.subr.mxu0 0.0
    %2204 = vmatpush1.msra.mxu0 0.0
    %2205 = vmatprep.subr.mxu0 0.0
    %2206 = vmatpush1.msra.mxu0 0.0
    %2207 = vmatprep.subr.mxu0 0.0
    %2208 = vmatpush1.msra.mxu0 0.0
    %2209 = vmatprep.subr.mxu0 0.0
    %2210 = vmatpush1.msra.mxu0 0.0
    %2211 = vmatprep.subr.mxu0 0.0
    %2212 = vmatpush1.msra.mxu0 0.0
    %2213 = vmatprep.subr.mxu0 0.0
    %2214 = vmatpush1.msra.mxu0 0.0
    %2215 = vmatprep.subr.mxu0 0.0
    %2216 = vmatpush1.msra.mxu0 0.0
    %2217 = vmatprep.mubr.f32.mxu0 0.0
    %2218 = vmatmul.mubr.f32.gmra.mrb[0].mxu0 %v2151
    %v2219 = vpop.f32.mrb[0].mxu0
    %v2220 = vadd.f32 0.0, %v2219
    %v2221 = vpop.f32.mrb[0].mxu0
    %2222 = vdwg.mxu0
    %v2223 = vadd.f32 %v1625, %v2220
    %v2224 = vxor.u32 %v2223, 2147483648
    %v2225 = vmul.f32 %v2224, 1.442695
    %v2226 = vpow.pop %v2225
    %v2227 = vadd.f32 %v2226, 1.0
    %v2228 = vrcp.pop %v2227
    %v2229 = vmul.f32 1.0, %v2228
    %v2230 = vtanh.pop %v2223
    %v2231 = vmul.f32 %v2229, %v2141
    %2233 = vrot.lane.b32.xlu0 %v2230, 64
    %v2234 = vpop.permute.xlu0 %2233
    %v2236 = vmul.f32 %v2229, %v2234
    %2238 = vrot.lane.b32.xlu0 %v2236, 32
    %v2239 = vpop.permute.xlu0 %2238
    %v2241 = vadd.f32 %v2231, %v2239
    %v2242 = vtanh.pop %v2241
    %2244 = vrot.lane.b32.xlu0 %v2242, 64
    %v2245 = vpop.permute.xlu0 %2244
    %v2247 = vmul.f32 %v2229, %v2245
    %2249 = vrot.lane.b32.xlu0 %v2247, 32
    %v2250 = vpop.permute.xlu0 %2249
    %v2251 = vsel %vm674, %v2250, 0
    %2253 = vmatprep.subr.mxu0 0.0
    %2254 = vmatpush1.msra.mxu0 %v1477
    %2255 = vmatprep.subr.mxu0 0.0
    %2256 = vmatpush1.msra.mxu0 %v1478
    %2257 = vmatprep.subr.mxu0 0.0
    %2258 = vmatpush1.msra.mxu0 %v1479
    %2259 = vmatprep.subr.mxu0 0.0
    %2260 = vmatpush1.msra.mxu0 %v1480
    %2261 = vmatprep.subr.mxu0 0.0
    %2262 = vmatpush1.msra.mxu0 0.0
    %2263 = vmatprep.subr.mxu0 0.0
    %2264 = vmatpush1.msra.mxu0 0.0
    %2265 = vmatprep.subr.mxu0 0.0
    %2266 = vmatpush1.msra.mxu0 0.0
    %2267 = vmatprep.subr.mxu0 0.0
    %2268 = vmatpush1.msra.mxu0 0.0
    %2269 = vmatprep.subr.mxu0 0.0
    %2270 = vmatpush1.msra.mxu0 0.0
    %2271 = vmatprep.subr.mxu0 0.0
    %2272 = vmatpush1.msra.mxu0 0.0
    %2273 = vmatprep.subr.mxu0 0.0
    %2274 = vmatpush1.msra.mxu0 0.0
    %2275 = vmatprep.subr.mxu0 0.0
    %2276 = vmatpush1.msra.mxu0 0.0
    %2277 = vmatprep.subr.mxu0 0.0
    %2278 = vmatpush1.msra.mxu0 0.0
    %2279 = vmatprep.subr.mxu0 0.0
    %2280 = vmatpush1.msra.mxu0 0.0
    %2281 = vmatprep.subr.mxu0 0.0
    %2282 = vmatpush1.msra.mxu0 0.0
    %2283 = vmatprep.subr.mxu0 0.0
    %2284 = vmatpush1.msra.mxu0 0.0
    %2285 = vmatprep.subr.mxu0 0.0
    %2286 = vmatpush1.msra.mxu0 0.0
    %2287 = vmatprep.subr.mxu0 0.0
    %2288 = vmatpush1.msra.mxu0 0.0
    %2289 = vmatprep.subr.mxu0 0.0
    %2290 = vmatpush1.msra.mxu0 0.0
    %2291 = vmatprep.subr.mxu0 0.0
    %2292 = vmatpush1.msra.mxu0 0.0
    %2293 = vmatprep.subr.mxu0 0.0
    %2294 = vmatpush1.msra.mxu0 0.0
    %2295 = vmatprep.subr.mxu0 0.0
    %2296 = vmatpush1.msra.mxu0 0.0
    %2297 = vmatprep.subr.mxu0 0.0
    %2298 = vmatpush1.msra.mxu0 0.0
    %2299 = vmatprep.subr.mxu0 0.0
    %2300 = vmatpush1.msra.mxu0 0.0
    %2301 = vmatprep.subr.mxu0 0.0
    %2302 = vmatpush1.msra.mxu0 0.0
    %2303 = vmatprep.subr.mxu0 0.0
    %2304 = vmatpush1.msra.mxu0 0.0
    %2305 = vmatprep.subr.mxu0 0.0
    %2306 = vmatpush1.msra.mxu0 0.0
    %2307 = vmatprep.subr.mxu0 0.0
    %2308 = vmatpush1.msra.mxu0 0.0
    %2309 = vmatprep.subr.mxu0 0.0
    %2310 = vmatpush1.msra.mxu0 0.0
    %2311 = vmatprep.subr.mxu0 0.0
    %2312 = vmatpush1.msra.mxu0 0.0
    %2313 = vmatprep.subr.mxu0 0.0
    %2314 = vmatpush1.msra.mxu0 0.0
    %2315 = vmatprep.subr.mxu0 0.0
    %2316 = vmatpush1.msra.mxu0 0.0
    %2317 = vmatprep.mubr.f32.mxu0 0.0
    %2318 = vmatmul.mubr.f32.gmra.mrb[0].mxu0 %v2251
    %v2319 = vpop.f32.mrb[0].mxu0
    %v2320 = vadd.f32 0.0, %v2319
    %v2321 = vpop.f32.mrb[0].mxu0
    %2322 = vdwg.mxu0
    %v2323 = vadd.f32 %v1695, %v2320
    %v2324 = vxor.u32 %v2323, 2147483648
    %v2325 = vmul.f32 %v2324, 1.442695
    %v2326 = vpow.pop %v2325
    %v2327 = vadd.f32 %v2326, 1.0
    %v2328 = vrcp.pop %v2327
    %v2329 = vmul.f32 1.0, %v2328
    %v2330 = vtanh.pop %v2323
    %v2331 = vmul.f32 %v2329, %v2241
    %2333 = vrot.lane.b32.xlu0 %v2330, 64
    %v2334 = vpop.permute.xlu0 %2333
    %v2336 = vmul.f32 %v2329, %v2334
    %2338 = vrot.lane.b32.xlu0 %v2336, 32
    %v2339 = vpop.permute.xlu0 %2338
    %v2341 = vadd.f32 %v2331, %v2339
    %v2342 = vtanh.pop %v2341
    %2344 = vrot.lane.b32.xlu0 %v2342, 64
    %v2345 = vpop.permute.xlu0 %2344
    %v2347 = vmul.f32 %v2329, %v2345
    %2349 = vrot.lane.b32.xlu0 %v2347, 32
    %v2350 = vpop.permute.xlu0 %2349
    %v2351 = vsel %vm674, %v2350, 0
    %2353 = vmatprep.subr.mxu0 0.0
    %2354 = vmatpush1.msra.mxu0 %v1477
    %2355 = vmatprep.subr.mxu0 0.0
    %2356 = vmatpush1.msra.mxu0 %v1478
    %2357 = vmatprep.subr.mxu0 0.0
    %2358 = vmatpush1.msra.mxu0 %v1479
    %2359 = vmatprep.subr.mxu0 0.0
    %2360 = vmatpush1.msra.mxu0 %v1480
    %2361 = vmatprep.subr.mxu0 0.0
    %2362 = vmatpush1.msra.mxu0 0.0
    %2363 = vmatprep.subr.mxu0 0.0
    %2364 = vmatpush1.msra.mxu0 0.0
    %2365 = vmatprep.subr.mxu0 0.0
    %2366 = vmatpush1.msra.mxu0 0.0
    %2367 = vmatprep.subr.mxu0 0.0
    %2368 = vmatpush1.msra.mxu0 0.0
    %2369 = vmatprep.subr.mxu0 0.0
    %2370 = vmatpush1.msra.mxu0 0.0
    %2371 = vmatprep.subr.mxu0 0.0
    %2372 = vmatpush1.msra.mxu0 0.0
    %2373 = vmatprep.subr.mxu0 0.0
    %2374 = vmatpush1.msra.mxu0 0.0
    %2375 = vmatprep.subr.mxu0 0.0
    %2376 = vmatpush1.msra.mxu0 0.0
    %2377 = vmatprep.subr.mxu0 0.0
    %2378 = vmatpush1.msra.mxu0 0.0
    %2379 = vmatprep.subr.mxu0 0.0
    %2380 = vmatpush1.msra.mxu0 0.0
    %2381 = vmatprep.subr.mxu0 0.0
    %2382 = vmatpush1.msra.mxu0 0.0
    %2383 = vmatprep.subr.mxu0 0.0
    %2384 = vmatpush1.msra.mxu0 0.0
    %2385 = vmatprep.subr.mxu0 0.0
    %2386 = vmatpush1.msra.mxu0 0.0
    %2387 = vmatprep.subr.mxu0 0.0
    %2388 = vmatpush1.msra.mxu0 0.0
    %2389 = vmatprep.subr.mxu0 0.0
    %2390 = vmatpush1.msra.mxu0 0.0
    %2391 = vmatprep.subr.mxu0 0.0
    %2392 = vmatpush1.msra.mxu0 0.0
    %2393 = vmatprep.subr.mxu0 0.0
    %2394 = vmatpush1.msra.mxu0 0.0
    %2395 = vmatprep.subr.mxu0 0.0
    %2396 = vmatpush1.msra.mxu0 0.0
    %2397 = vmatprep.subr.mxu0 0.0
    %2398 = vmatpush1.msra.mxu0 0.0
    %2399 = vmatprep.subr.mxu0 0.0
    %2400 = vmatpush1.msra.mxu0 0.0
    %2401 = vmatprep.subr.mxu0 0.0
    %2402 = vmatpush1.msra.mxu0 0.0
    %2403 = vmatprep.subr.mxu0 0.0
    %2404 = vmatpush1.msra.mxu0 0.0
    %2405 = vmatprep.subr.mxu0 0.0
    %2406 = vmatpush1.msra.mxu0 0.0
    %2407 = vmatprep.subr.mxu0 0.0
    %2408 = vmatpush1.msra.mxu0 0.0
    %2409 = vmatprep.subr.mxu0 0.0
    %2410 = vmatpush1.msra.mxu0 0.0
    %2411 = vmatprep.subr.mxu0 0.0
    %2412 = vmatpush1.msra.mxu0 0.0
    %2413 = vmatprep.subr.mxu0 0.0
    %2414 = vmatpush1.msra.mxu0 0.0
    %2415 = vmatprep.subr.mxu0 0.0
    %2416 = vmatpush1.msra.mxu0 0.0
    %2417 = vmatprep.mubr.f32.mxu0 0.0
    %2418 = vmatmul.mubr.f32.gmra.mrb[0].mxu0 %v2351
    %v2419 = vpop.f32.mrb[0].mxu0
    %v2420 = vadd.f32 0.0, %v2419
    %v2421 = vpop.f32.mrb[0].mxu0
    %2422 = vdwg.mxu0
    %v2423 = vadd.f32 %v1765, %v2420
    %v2424 = vxor.u32 %v2423, 2147483648
    %v2425 = vmul.f32 %v2424, 1.442695
    %v2426 = vpow.pop %v2425
    %v2427 = vadd.f32 %v2426, 1.0
    %v2428 = vrcp.pop %v2427
    %v2429 = vmul.f32 1.0, %v2428
    %v2430 = vtanh.pop %v2423
    %v2431 = vmul.f32 %v2429, %v2341
    %2433 = vrot.lane.b32.xlu0 %v2430, 64
    %v2434 = vpop.permute.xlu0 %2433
    %v2436 = vmul.f32 %v2429, %v2434
    %2438 = vrot.lane.b32.xlu0 %v2436, 32
    %v2439 = vpop.permute.xlu0 %2438
    %v2441 = vadd.f32 %v2431, %v2439
    %v2442 = vtanh.pop %v2441
    %2444 = vrot.lane.b32.xlu0 %v2442, 64
    %v2445 = vpop.permute.xlu0 %2444
    %v2447 = vmul.f32 %v2429, %v2445
    %2449 = vrot.lane.b32.xlu0 %v2447, 32
    %v2450 = vpop.permute.xlu0 %2449
    %v2451 = vsel %vm674, %v2450, 0
    %2453 = vmatprep.subr.mxu0 0.0
    %2454 = vmatpush1.msra.mxu0 %v1477
    %2455 = vmatprep.subr.mxu0 0.0
    %2456 = vmatpush1.msra.mxu0 %v1478
    %2457 = vmatprep.subr.mxu0 0.0
    %2458 = vmatpush1.msra.mxu0 %v1479
    %2459 = vmatprep.subr.mxu0 0.0
    %2460 = vmatpush1.msra.mxu0 %v1480
    %2461 = vmatprep.subr.mxu0 0.0
    %2462 = vmatpush1.msra.mxu0 0.0
    %2463 = vmatprep.subr.mxu0 0.0
    %2464 = vmatpush1.msra.mxu0 0.0
    %2465 = vmatprep.subr.mxu0 0.0
    %2466 = vmatpush1.msra.mxu0 0.0
    %2467 = vmatprep.subr.mxu0 0.0
    %2468 = vmatpush1.msra.mxu0 0.0
    %2469 = vmatprep.subr.mxu0 0.0
    %2470 = vmatpush1.msra.mxu0 0.0
    %2471 = vmatprep.subr.mxu0 0.0
    %2472 = vmatpush1.msra.mxu0 0.0
    %2473 = vmatprep.subr.mxu0 0.0
    %2474 = vmatpush1.msra.mxu0 0.0
    %2475 = vmatprep.subr.mxu0 0.0
    %2476 = vmatpush1.msra.mxu0 0.0
    %2477 = vmatprep.subr.mxu0 0.0
    %2478 = vmatpush1.msra.mxu0 0.0
    %2479 = vmatprep.subr.mxu0 0.0
    %2480 = vmatpush1.msra.mxu0 0.0
    %2481 = vmatprep.subr.mxu0 0.0
    %2482 = vmatpush1.msra.mxu0 0.0
    %2483 = vmatprep.subr.mxu0 0.0
    %2484 = vmatpush1.msra.mxu0 0.0
    %2485 = vmatprep.subr.mxu0 0.0
    %2486 = vmatpush1.msra.mxu0 0.0
    %2487 = vmatprep.subr.mxu0 0.0
    %2488 = vmatpush1.msra.mxu0 0.0
    %2489 = vmatprep.subr.mxu0 0.0
    %2490 = vmatpush1.msra.mxu0 0.0
    %2491 = vmatprep.subr.mxu0 0.0
    %2492 = vmatpush1.msra.mxu0 0.0
    %2493 = vmatprep.subr.mxu0 0.0
    %2494 = vmatpush1.msra.mxu0 0.0
    %2495 = vmatprep.subr.mxu0 0.0
    %2496 = vmatpush1.msra.mxu0 0.0
    %2497 = vmatprep.subr.mxu0 0.0
    %2498 = vmatpush1.msra.mxu0 0.0
    %2499 = vmatprep.subr.mxu0 0.0
    %2500 = vmatpush1.msra.mxu0 0.0
    %2501 = vmatprep.subr.mxu0 0.0
    %2502 = vmatpush1.msra.mxu0 0.0
    %2503 = vmatprep.subr.mxu0 0.0
    %2504 = vmatpush1.msra.mxu0 0.0
    %2505 = vmatprep.subr.mxu0 0.0
    %2506 = vmatpush1.msra.mxu0 0.0
    %2507 = vmatprep.subr.mxu0 0.0
    %2508 = vmatpush1.msra.mxu0 0.0
    %2509 = vmatprep.subr.mxu0 0.0
    %2510 = vmatpush1.msra.mxu0 0.0
    %2511 = vmatprep.subr.mxu0 0.0
    %2512 = vmatpush1.msra.mxu0 0.0
    %2513 = vmatprep.subr.mxu0 0.0
    %2514 = vmatpush1.msra.mxu0 0.0
    %2515 = vmatprep.subr.mxu0 0.0
    %2516 = vmatpush1.msra.mxu0 0.0
    %2517 = vmatprep.mubr.f32.mxu0 0.0
    %2518 = vmatmul.mubr.f32.gmra.mrb[0].mxu0 %v2451
    %v2519 = vpop.f32.mrb[0].mxu0
    %v2520 = vadd.f32 0.0, %v2519
    %v2521 = vpop.f32.mrb[0].mxu0
    %2522 = vdwg.mxu0
    %v2523 = vadd.f32 %v1835, %v2520
    %v2524 = vxor.u32 %v2523, 2147483648
    %v2525 = vmul.f32 %v2524, 1.442695
    %v2526 = vpow.pop %v2525
    %v2527 = vadd.f32 %v2526, 1.0
    %v2528 = vrcp.pop %v2527
    %v2529 = vmul.f32 1.0, %v2528
    %v2530 = vtanh.pop %v2523
    %v2531 = vmul.f32 %v2529, %v2441
    %2533 = vrot.lane.b32.xlu0 %v2530, 64
    %v2534 = vpop.permute.xlu0 %2533
    %v2536 = vmul.f32 %v2529, %v2534
    %2538 = vrot.lane.b32.xlu0 %v2536, 32
    %v2539 = vpop.permute.xlu0 %2538
    %v2541 = vadd.f32 %v2531, %v2539
    %v2542 = vtanh.pop %v2541
    %2544 = vrot.lane.b32.xlu0 %v2542, 64
    %v2545 = vpop.permute.xlu0 %2544
    %v2547 = vmul.f32 %v2529, %v2545
    %2549 = vrot.lane.b32.xlu0 %v2547, 32
    %v2550 = vpop.permute.xlu0 %2549
    %v2551 = vsel %vm674, %v2550, 0
    %2553 = vmatprep.subr.mxu0 0.0
    %2554 = vmatpush1.msra.mxu0 %v1477
    %2555 = vmatprep.subr.mxu0 0.0
    %2556 = vmatpush1.msra.mxu0 %v1478
    %2557 = vmatprep.subr.mxu0 0.0
    %2558 = vmatpush1.msra.mxu0 %v1479
    %2559 = vmatprep.subr.mxu0 0.0
    %2560 = vmatpush1.msra.mxu0 %v1480
    %2561 = vmatprep.subr.mxu0 0.0
    %2562 = vmatpush1.msra.mxu0 0.0
    %2563 = vmatprep.subr.mxu0 0.0
    %2564 = vmatpush1.msra.mxu0 0.0
    %2565 = vmatprep.subr.mxu0 0.0
    %2566 = vmatpush1.msra.mxu0 0.0
    %2567 = vmatprep.subr.mxu0 0.0
    %2568 = vmatpush1.msra.mxu0 0.0
    %2569 = vmatprep.subr.mxu0 0.0
    %2570 = vmatpush1.msra.mxu0 0.0
    %2571 = vmatprep.subr.mxu0 0.0
    %2572 = vmatpush1.msra.mxu0 0.0
    %2573 = vmatprep.subr.mxu0 0.0
    %2574 = vmatpush1.msra.mxu0 0.0
    %2575 = vmatprep.subr.mxu0 0.0
    %2576 = vmatpush1.msra.mxu0 0.0
    %2577 = vmatprep.subr.mxu0 0.0
    %2578 = vmatpush1.msra.mxu0 0.0
    %2579 = vmatprep.subr.mxu0 0.0
    %2580 = vmatpush1.msra.mxu0 0.0
    %2581 = vmatprep.subr.mxu0 0.0
    %2582 = vmatpush1.msra.mxu0 0.0
    %2583 = vmatprep.subr.mxu0 0.0
    %2584 = vmatpush1.msra.mxu0 0.0
    %2585 = vmatprep.subr.mxu0 0.0
    %2586 = vmatpush1.msra.mxu0 0.0
    %2587 = vmatprep.subr.mxu0 0.0
    %2588 = vmatpush1.msra.mxu0 0.0
    %2589 = vmatprep.subr.mxu0 0.0
    %2590 = vmatpush1.msra.mxu0 0.0
    %2591 = vmatprep.subr.mxu0 0.0
    %2592 = vmatpush1.msra.mxu0 0.0
    %2593 = vmatprep.subr.mxu0 0.0
    %2594 = vmatpush1.msra.mxu0 0.0
    %2595 = vmatprep.subr.mxu0 0.0
    %2596 = vmatpush1.msra.mxu0 0.0
    %2597 = vmatprep.subr.mxu0 0.0
    %2598 = vmatpush1.msra.mxu0 0.0
    %2599 = vmatprep.subr.mxu0 0.0
    %2600 = vmatpush1.msra.mxu0 0.0
    %2601 = vmatprep.subr.mxu0 0.0
    %2602 = vmatpush1.msra.mxu0 0.0
    %2603 = vmatprep.subr.mxu0 0.0
    %2604 = vmatpush1.msra.mxu0 0.0
    %2605 = vmatprep.subr.mxu0 0.0
    %2606 = vmatpush1.msra.mxu0 0.0
    %2607 = vmatprep.subr.mxu0 0.0
    %2608 = vmatpush1.msra.mxu0 0.0
    %2609 = vmatprep.subr.mxu0 0.0
    %2610 = vmatpush1.msra.mxu0 0.0
    %2611 = vmatprep.subr.mxu0 0.0
    %2612 = vmatpush1.msra.mxu0 0.0
    %2613 = vmatprep.subr.mxu0 0.0
    %2614 = vmatpush1.msra.mxu0 0.0
    %2615 = vmatprep.subr.mxu0 0.0
    %2616 = vmatpush1.msra.mxu0 0.0
    %2617 = vmatprep.mubr.f32.mxu0 0.0
    %2618 = vmatmul.mubr.f32.gmra.mrb[0].mxu0 %v2551
    %v2619 = vpop.f32.mrb[0].mxu0
    %v2620 = vadd.f32 0.0, %v2619
    %v2621 = vpop.f32.mrb[0].mxu0
    %2622 = vdwg.mxu0
    %v2623 = vadd.f32 %v1905, %v2620
    %v2624 = vxor.u32 %v2623, 2147483648
    %v2625 = vmul.f32 %v2624, 1.442695
    %v2626 = vpow.pop %v2625
    %v2627 = vadd.f32 %v2626, 1.0
    %v2628 = vrcp.pop %v2627
    %v2629 = vmul.f32 1.0, %v2628
    %v2630 = vtanh.pop %v2623
    %v2631 = vmul.f32 %v2629, %v2541
    %2633 = vrot.lane.b32.xlu0 %v2630, 64
    %v2634 = vpop.permute.xlu0 %2633
    %v2636 = vmul.f32 %v2629, %v2634
    %2638 = vrot.lane.b32.xlu0 %v2636, 32
    %v2639 = vpop.permute.xlu0 %2638
    %v2641 = vadd.f32 %v2631, %v2639
    %v2642 = vtanh.pop %v2641
    %2644 = vrot.lane.b32.xlu0 %v2642, 64
    %v2645 = vpop.permute.xlu0 %2644
    %v2647 = vmul.f32 %v2629, %v2645
    %2649 = vrot.lane.b32.xlu0 %v2647, 32
    %v2650 = vpop.permute.xlu0 %2649
    %v2651 = vsel %vm674, %v2650, 0
    %2653 = vmatprep.subr.mxu0 0.0
    %2654 = vmatpush1.msra.mxu0 %v1477
    %2655 = vmatprep.subr.mxu0 0.0
    %2656 = vmatpush1.msra.mxu0 %v1478
    %2657 = vmatprep.subr.mxu0 0.0
    %2658 = vmatpush1.msra.mxu0 %v1479
    %2659 = vmatprep.subr.mxu0 0.0
    %2660 = vmatpush1.msra.mxu0 %v1480
    %2661 = vmatprep.subr.mxu0 0.0
    %2662 = vmatpush1.msra.mxu0 0.0
    %2663 = vmatprep.subr.mxu0 0.0
    %2664 = vmatpush1.msra.mxu0 0.0
    %2665 = vmatprep.subr.mxu0 0.0
    %2666 = vmatpush1.msra.mxu0 0.0
    %2667 = vmatprep.subr.mxu0 0.0
    %2668 = vmatpush1.msra.mxu0 0.0
    %2669 = vmatprep.subr.mxu0 0.0
    %2670 = vmatpush1.msra.mxu0 0.0
    %2671 = vmatprep.subr.mxu0 0.0
    %2672 = vmatpush1.msra.mxu0 0.0
    %2673 = vmatprep.subr.mxu0 0.0
    %2674 = vmatpush1.msra.mxu0 0.0
    %2675 = vmatprep.subr.mxu0 0.0
    %2676 = vmatpush1.msra.mxu0 0.0
    %2677 = vmatprep.subr.mxu0 0.0
    %2678 = vmatpush1.msra.mxu0 0.0
    %2679 = vmatprep.subr.mxu0 0.0
    %2680 = vmatpush1.msra.mxu0 0.0
    %2681 = vmatprep.subr.mxu0 0.0
    %2682 = vmatpush1.msra.mxu0 0.0
    %2683 = vmatprep.subr.mxu0 0.0
    %2684 = vmatpush1.msra.mxu0 0.0
    %2685 = vmatprep.subr.mxu0 0.0
    %2686 = vmatpush1.msra.mxu0 0.0
    %2687 = vmatprep.subr.mxu0 0.0
    %2688 = vmatpush1.msra.mxu0 0.0
    %2689 = vmatprep.subr.mxu0 0.0
    %2690 = vmatpush1.msra.mxu0 0.0
    %2691 = vmatprep.subr.mxu0 0.0
    %2692 = vmatpush1.msra.mxu0 0.0
    %2693 = vmatprep.subr.mxu0 0.0
    %2694 = vmatpush1.msra.mxu0 0.0
    %2695 = vmatprep.subr.mxu0 0.0
    %2696 = vmatpush1.msra.mxu0 0.0
    %2697 = vmatprep.subr.mxu0 0.0
    %2698 = vmatpush1.msra.mxu0 0.0
    %2699 = vmatprep.subr.mxu0 0.0
    %2700 = vmatpush1.msra.mxu0 0.0
    %2701 = vmatprep.subr.mxu0 0.0
    %2702 = vmatpush1.msra.mxu0 0.0
    %2703 = vmatprep.subr.mxu0 0.0
    %2704 = vmatpush1.msra.mxu0 0.0
    %2705 = vmatprep.subr.mxu0 0.0
    %2706 = vmatpush1.msra.mxu0 0.0
    %2707 = vmatprep.subr.mxu0 0.0
    %2708 = vmatpush1.msra.mxu0 0.0
    %2709 = vmatprep.subr.mxu0 0.0
    %2710 = vmatpush1.msra.mxu0 0.0
    %2711 = vmatprep.subr.mxu0 0.0
    %2712 = vmatpush1.msra.mxu0 0.0
    %2713 = vmatprep.subr.mxu0 0.0
    %2714 = vmatpush1.msra.mxu0 0.0
    %2715 = vmatprep.subr.mxu0 0.0
    %2716 = vmatpush1.msra.mxu0 0.0
    %2717 = vmatprep.mubr.f32.mxu0 0.0
    %2718 = vmatmul.mubr.f32.gmra.mrb[0].mxu0 %v2651
    %v2719 = vpop.f32.mrb[0].mxu0
    %v2720 = vadd.f32 0.0, %v2719
    %v2721 = vpop.f32.mrb[0].mxu0
    %2722 = vdwg.mxu0
    %v2723 = vadd.f32 %v1975, %v2720
    %v2724 = vxor.u32 %v2723, 2147483648
    %v2725 = vmul.f32 %v2724, 1.442695
    %v2726 = vpow.pop %v2725
    %v2727 = vadd.f32 %v2726, 1.0
    %v2728 = vrcp.pop %v2727
    %v2729 = vmul.f32 1.0, %v2728
    %v2730 = vtanh.pop %v2723
    %v2731 = vmul.f32 %v2729, %v2641
    %2733 = vrot.lane.b32.xlu0 %v2730, 64
    %v2734 = vpop.permute.xlu0 %2733
    %v2736 = vmul.f32 %v2729, %v2734
    %2738 = vrot.lane.b32.xlu0 %v2736, 32
    %v2739 = vpop.permute.xlu0 %2738
    %v2741 = vadd.f32 %v2731, %v2739
    %v2742 = vtanh.pop %v2741
    %2744 = vrot.lane.b32.xlu0 %v2742, 64
    %v2745 = vpop.permute.xlu0 %2744
    %v2747 = vmul.f32 %v2729, %v2745
    %2749 = vrot.lane.b32.xlu0 %v2747, 32
    %v2750 = vpop.permute.xlu0 %2749
    %v2751 = vsel %vm674, %v2750, 0
    %2753 = vmatprep.subr.mxu0 0.0
    %2754 = vmatpush1.msra.mxu0 %v1477
    %2755 = vmatprep.subr.mxu0 0.0
    %2756 = vmatpush1.msra.mxu0 %v1478
    %2757 = vmatprep.subr.mxu0 0.0
    %2758 = vmatpush1.msra.mxu0 %v1479
    %2759 = vmatprep.subr.mxu0 0.0
    %2760 = vmatpush1.msra.mxu0 %v1480
    %2761 = vmatprep.subr.mxu0 0.0
    %2762 = vmatpush1.msra.mxu0 0.0
    %2763 = vmatprep.subr.mxu0 0.0
    %2764 = vmatpush1.msra.mxu0 0.0
    %2765 = vmatprep.subr.mxu0 0.0
    %2766 = vmatpush1.msra.mxu0 0.0
    %2767 = vmatprep.subr.mxu0 0.0
    %2768 = vmatpush1.msra.mxu0 0.0
    %2769 = vmatprep.subr.mxu0 0.0
    %2770 = vmatpush1.msra.mxu0 0.0
    %2771 = vmatprep.subr.mxu0 0.0
    %2772 = vmatpush1.msra.mxu0 0.0
    %2773 = vmatprep.subr.mxu0 0.0
    %2774 = vmatpush1.msra.mxu0 0.0
    %2775 = vmatprep.subr.mxu0 0.0
    %2776 = vmatpush1.msra.mxu0 0.0
    %2777 = vmatprep.subr.mxu0 0.0
    %2778 = vmatpush1.msra.mxu0 0.0
    %2779 = vmatprep.subr.mxu0 0.0
    %2780 = vmatpush1.msra.mxu0 0.0
    %2781 = vmatprep.subr.mxu0 0.0
    %2782 = vmatpush1.msra.mxu0 0.0
    %2783 = vmatprep.subr.mxu0 0.0
    %2784 = vmatpush1.msra.mxu0 0.0
    %2785 = vmatprep.subr.mxu0 0.0
    %2786 = vmatpush1.msra.mxu0 0.0
    %2787 = vmatprep.subr.mxu0 0.0
    %2788 = vmatpush1.msra.mxu0 0.0
    %2789 = vmatprep.subr.mxu0 0.0
    %2790 = vmatpush1.msra.mxu0 0.0
    %2791 = vmatprep.subr.mxu0 0.0
    %2792 = vmatpush1.msra.mxu0 0.0
    %2793 = vmatprep.subr.mxu0 0.0
    %2794 = vmatpush1.msra.mxu0 0.0
    %2795 = vmatprep.subr.mxu0 0.0
    %2796 = vmatpush1.msra.mxu0 0.0
    %2797 = vmatprep.subr.mxu0 0.0
    %2798 = vmatpush1.msra.mxu0 0.0
    %2799 = vmatprep.subr.mxu0 0.0
    %2800 = vmatpush1.msra.mxu0 0.0
    %2801 = vmatprep.subr.mxu0 0.0
    %2802 = vmatpush1.msra.mxu0 0.0
    %2803 = vmatprep.subr.mxu0 0.0
    %2804 = vmatpush1.msra.mxu0 0.0
    %2805 = vmatprep.subr.mxu0 0.0
    %2806 = vmatpush1.msra.mxu0 0.0
    %2807 = vmatprep.subr.mxu0 0.0
    %2808 = vmatpush1.msra.mxu0 0.0
    %2809 = vmatprep.subr.mxu0 0.0
    %2810 = vmatpush1.msra.mxu0 0.0
    %2811 = vmatprep.subr.mxu0 0.0
    %2812 = vmatpush1.msra.mxu0 0.0
    %2813 = vmatprep.subr.mxu0 0.0
    %2814 = vmatpush1.msra.mxu0 0.0
    %2815 = vmatprep.subr.mxu0 0.0
    %2816 = vmatpush1.msra.mxu0 0.0
    %2817 = vmatprep.mubr.f32.mxu0 0.0
    %2818 = vmatmul.mubr.f32.gmra.mrb[0].mxu0 %v2751
    %v2819 = vpop.f32.mrb[0].mxu0
    %v2820 = vadd.f32 0.0, %v2819
    %v2821 = vpop.f32.mrb[0].mxu0
    %2822 = vdwg.mxu0
    %v2823 = vadd.f32 %v2050, %v2820
    %v2824 = vxor.u32 %v2823, 2147483648
    %v2825 = vmul.f32 %v2824, 1.442695
    %v2826 = vpow.pop %v2825
    %v2827 = vadd.f32 %v2826, 1.0
    %v2828 = vrcp.pop %v2827
    %v2829 = vmul.f32 1.0, %v2828
    %v2830 = vtanh.pop %v2823
    %v2831 = vmul.f32 %v2829, %v2741
    %2833 = vrot.lane.b32.xlu0 %v2830, 64
    %v2834 = vpop.permute.xlu0 %2833
    %v2836 = vmul.f32 %v2829, %v2834
    %2838 = vrot.lane.b32.xlu0 %v2836, 32
    %v2839 = vpop.permute.xlu0 %2838
    %v2841 = vadd.f32 %v2831, %v2839
    %v2842 = vtanh.pop %v2841
    %2844 = vrot.lane.b32.xlu0 %v2842, 64
    %v2845 = vpop.permute.xlu0 %2844
    %v2847 = vmul.f32 %v2829, %v2845
    %v2848 = vld [vmem:[%s7] sm:$0xff]
    %v2849 = vld [vmem:[%s7 + $0x8] sm:$0xff]
    %v2850 = vld [vmem:[%s7 + $0x10] sm:$0xff]
    %v2851 = vld [vmem:[%s7 + $0x18] sm:$0xff]
    %v2852 = vld [vmem:[%s8] sm:$0x1]
    %v2854 = vlaneseq
    %v2855 = vshrl.u32 %v2854, 7
    %v2856 = vsub.s32 0, %v2855
    %v2857 = vrot.slane %v2852, %v2856
    %2860 = vrot.lane.b32.xlu0 %v2847, 32
    %v2861 = vpop.permute.xlu0 %2860
    %v2862 = vsel %vm674, %v2861, 0
    %2864 = vmatprep.subr.mxu0 0.0
    %2865 = vmatpush1.msra.mxu0 %v2848
    %2866 = vmatprep.subr.mxu0 0.0
    %2867 = vmatpush1.msra.mxu0 %v2849
    %2868 = vmatprep.subr.mxu0 0.0
    %2869 = vmatpush1.msra.mxu0 %v2850
    %2870 = vmatprep.subr.mxu0 0.0
    %2871 = vmatpush1.msra.mxu0 %v2851
    %2872 = vmatprep.subr.mxu0 0.0
    %2873 = vmatpush1.msra.mxu0 0.0
    %2874 = vmatprep.subr.mxu0 0.0
    %2875 = vmatpush1.msra.mxu0 0.0
    %2876 = vmatprep.subr.mxu0 0.0
    %2877 = vmatpush1.msra.mxu0 0.0
    %2878 = vmatprep.subr.mxu0 0.0
    %2879 = vmatpush1.msra.mxu0 0.0
    %2880 = vmatprep.subr.mxu0 0.0
    %2881 = vmatpush1.msra.mxu0 0.0
    %2882 = vmatprep.subr.mxu0 0.0
    %2883 = vmatpush1.msra.mxu0 0.0
    %2884 = vmatprep.subr.mxu0 0.0
    %2885 = vmatpush1.msra.mxu0 0.0
    %2886 = vmatprep.subr.mxu0 0.0
    %2887 = vmatpush1.msra.mxu0 0.0
    %2888 = vmatprep.subr.mxu0 0.0
    %2889 = vmatpush1.msra.mxu0 0.0
    %2890 = vmatprep.subr.mxu0 0.0
    %2891 = vmatpush1.msra.mxu0 0.0
    %2892 = vmatprep.subr.mxu0 0.0
    %2893 = vmatpush1.msra.mxu0 0.0
    %2894 = vmatprep.subr.mxu0 0.0
    %2895 = vmatpush1.msra.mxu0 0.0
    %2896 = vmatprep.subr.mxu0 0.0
    %2897 = vmatpush1.msra.mxu0 0.0
    %2898 = vmatprep.subr.mxu0 0.0
    %2899 = vmatpush1.msra.mxu0 0.0
    %2900 = vmatprep.subr.mxu0 0.0
    %2901 = vmatpush1.msra.mxu0 0.0
    %2902 = vmatprep.subr.mxu0 0.0
    %2903 = vmatpush1.msra.mxu0 0.0
    %2904 = vmatprep.subr.mxu0 0.0
    %2905 = vmatpush1.msra.mxu0 0.0
    %2906 = vmatprep.subr.mxu0 0.0
    %2907 = vmatpush1.msra.mxu0 0.0
    %2908 = vmatprep.subr.mxu0 0.0
    %2909 = vmatpush1.msra.mxu0 0.0
    %2910 = vmatprep.subr.mxu0 0.0
    %2911 = vmatpush1.msra.mxu0 0.0
    %2912 = vmatprep.subr.mxu0 0.0
    %2913 = vmatpush1.msra.mxu0 0.0
    %2914 = vmatprep.subr.mxu0 0.0
    %2915 = vmatpush1.msra.mxu0 0.0
    %2916 = vmatprep.subr.mxu0 0.0
    %2917 = vmatpush1.msra.mxu0 0.0
    %2918 = vmatprep.subr.mxu0 0.0
    %2919 = vmatpush1.msra.mxu0 0.0
    %2920 = vmatprep.subr.mxu0 0.0
    %2921 = vmatpush1.msra.mxu0 0.0
    %2922 = vmatprep.subr.mxu0 0.0
    %2923 = vmatpush1.msra.mxu0 0.0
    %2924 = vmatprep.subr.mxu0 0.0
    %2925 = vmatpush1.msra.mxu0 0.0
    %2926 = vmatprep.subr.mxu0 0.0
    %2927 = vmatpush1.msra.mxu0 0.0
    %2928 = vmatprep.mubr.f32.mxu0 0.0
    %2929 = vmatmul.mubr.f32.gmra.mrb[0].mxu0 %v2862
    %v2930 = vpop.f32.mrb[0].mxu0
    %v2931 = vadd.f32 %v2857, %v2930
    %v2932 = vpop.f32.mrb[0].mxu0
    %2933 = vdwg.mxu0
    %vm2934 = vcmask 74752
    %2935 = vst.msk [vmem:[#allocation7] sm:$0x3] %vm2934, %v2931
    // Predicated region
    $region46: #{model_forward.1} parent=1 // pred_check
      _
    $region47: #{model_forward.1} parent=1 // pred_check_branch
      %2937 = sbr.rel (0) target = $region49
    $region48: #{model_forward.1} parent=1 // pred_region
      %s2939 = ssub.s32 32, 32
      %2940 = vsyncadd [#allocation4], %s2939
      %s2942 = sshll.u32 [#allocation7], 4
      %s2943 = int_to_ptr.vmem [resolvable:$true] %s2942
      %2945 = dma.vmem_to_hbm [thread:$0]  %s2943, 32, %s9, [#allocation4]
    $region49: #{model_forward.1} parent=1 // pred_fallthru
      _
    // Predicated region
    $region50: #{model_forward.1} parent=1 // pred_check
      _
    $region51: #{model_forward.1} parent=1 // pred_check_branch
      %2947 = sbr.rel (0) target = $region53
    $region52: #{model_forward.1} parent=1 // pred_region
      %2948 = dma.done [#allocation4], 32
    $region53: #{model_forward.1} parent=1 // pred_fallthru
      _
    %2949 = vsyncpa [#allocation3], 1
    %2950 = vsyncpa [#allocation6], 1
    %2951 = vsyncpa [#allocation4], 1

</llo_original>
